<compile_context>
chip_gen: v7x
topology: tpu7x:2x2x1
jax: 0.10.0
libtpu: 0.0.40
codegen_flags: <defaults>
</compile_context>

<pallas_src>
import math
import functools

import numpy as np
import jax
import jax.numpy as jnp
from jax import lax
from jax.experimental import pallas as pl
from jax.experimental.pallas import tpu as pltpu


# ----------------------------------------------------------------------------
# Config (the `args` namespace of the PyTorch module), small but consistent.
# ----------------------------------------------------------------------------
CFG = dict(
    input_shape=16,
    rnn_hidden_dim=32,
    n_actions=5,
    num_atoms=8,
    n_agents=3,
    risk_level_range=4,
)


# ----------------------------------------------------------------------------
# Pallas kernel
# ----------------------------------------------------------------------------
def _rmix_kernel(
    # activations
    inp_ref, rinp_ref, h0_ref, rh0_ref,
    # self.net  (Linear -> ReLU -> ActivateLayer -> Linear -> ReLU)
    nw1_ref, nb1_ref, nw2_ref, nb2_ref,
    # self.rnn  (GRUCell)
    wih_ref, bih_ref, whh_ref, bhh_ref,
    # self.fc2
    f2w_ref, f2b_ref,
    # self.r_fc1
    rw1_ref, rb1_ref,
    # self.r_rnn (GRUCell)
    rwih_ref, rbih_ref, rwhh_ref, rbhh_ref,
    # self.current (no bias) and the offline-fused fc2 -> self.history chain
    curw_ref, hfw_ref, hfb_ref,
    # static helper matrices: within-group broadcast / group-sum / atom-position
    sb_ref, msum_ref, posf_ref,
    # single packed output slab
    out_ref,
    *, H, A, N, R, G, CHUNK, OFFS, SLAB,
):
    f32 = jnp.float32
    AN = A * N
    B = inp_ref.shape[0]
    (O_CVAR, O_Q, O_LOG, O_RLOG, O_H, O_RH, O_MLOG, O_MASK, O_END) = OFFS

    def matmul(x, w):
        return jnp.dot(x, w, preferred_element_type=f32)

    def gru(x, h_prev, wih, bih, whh, bhh):
        # PyTorch GRUCell gate order: reset, update, new.
        gi = matmul(x, wih) + bih
        gh = matmul(h_prev, whh) + bhh
        r = jax.nn.sigmoid(gi[:, 0:H] + gh[:, 0:H])
        z = jax.nn.sigmoid(gi[:, H:2 * H] + gh[:, H:2 * H])
        n = jnp.tanh(gi[:, 2 * H:3 * H] + r * gh[:, 2 * H:3 * H])
        return (1.0 - z) * n + z * h_prev

    # ---------------- main head: self.net -> self.rnn -> self.fc2 ----------
    x1 = jnp.maximum(matmul(inp_ref[...], nw1_ref[...]) + nb1_ref[...], 0.0)
    # TODO(synk): ActivateLayer is not defined in the provided source; it is
    # treated as an identity pass-through here.
    x2 = jnp.maximum(matmul(x1, nw2_ref[...]) + nb2_ref[...], 0.0)
    h = gru(x2, h0_ref[...], wih_ref[...], bih_ref[...], whh_ref[...], bhh_ref[...])
    logits = matmul(h, f2w_ref[...]) + f2b_ref[...]           # (B, A*N)

    # ---------------- risk-level controller net ----------------------------
    rx = jnp.maximum(matmul(rinp_ref[...], rw1_ref[...]) + rb1_ref[...], 0.0)
    r_h = gru(rx, rh0_ref[...], rwih_ref[...], rbih_ref[...],
              rwhh_ref[...], rbhh_ref[...])
    # fc2 -> history fused offline (exact: two back-to-back linears)
    history = matmul(r_h, hfw_ref[...]) + hfb_ref[...]        # (B, G*R), layout [g, r]
    current = matmul(logits, curw_ref[...])                   # (B, G)  (a_inputs = logits.detach())

    risk_logits = jnp.zeros((B, R), f32)
    for g in range(G):
        risk_logits = risk_logits + current[:, g:g + 1] * history[:, g * R:(g + 1) * R]
    risk_logits = risk_logits * (1.0 / math.sqrt(H))

    # argmax (first maximal index) directly on the logits — softmax dropped,
    # argmax(softmax(x)) == argmax(x) and raw-logit comparison is exact.
    mx = jnp.max(risk_logits, axis=1, keepdims=True)
    ridx = lax.broadcasted_iota(jnp.int32, (B, R), 1)
    cand = jnp.where(risk_logits == mx, ridx, jnp.full_like(ridx, R))
    k = jnp.min(cand, axis=1, keepdims=True).astype(f32)      # (B, 1)

    level = (k + 1.0) / float(R)                              # current_risk_level
    ran = jnp.ceil(level * float(N) - 1.0)                    # risk_atoms_num
    inv_ran = 1.0 / ran                                       # hoisted, computed once

    posf = posf_ref[...]                                      # (1, A*N): atom pos within action

    # Within-group broadcasts of every atom of every action via ONE constant
    # matmul on the MXU (columns [j*CHUNK, j*CHUNK+AN) hold atom j of each
    # action broadcast over that action's lanes; the trailing block is an
    # identity copy used so all comparisons stay in the same rounding domain).
    X = matmul(logits, sb_ref[...])                           # (B, N*CHUNK + CHUNK)
    l_cmp = X[:, N * CHUNK:N * CHUNK + AN]                    # copy of logits

    # rank[p] = #{j in group: x_j < x_p} + #{j < pos(p): x_j == x_p}
    rank = jnp.zeros((B, AN), f32)
    for j in range(N):                                        # N=8 full-width steps
        xj = X[:, j * CHUNK:j * CHUNK + AN]
        rank = (rank
                + (xj < l_cmp).astype(f32)
                + (xj == l_cmp).astype(f32) * (posf > float(j)).astype(f32))

    # Broadcast the ranks the same way, then build the per-action ascending
    # sort with a single pass of pure VALU selects (no lane reductions).
    XR = matmul(rank, sb_ref[...])
    sorted_full = jnp.zeros((B, AN), f32)
    for j in range(N):
        xj = X[:, j * CHUNK:j * CHUNK + AN]
        rj = XR[:, j * CHUNK:j * CHUNK + AN]
        sorted_full = sorted_full + jnp.where(rj == posf, xj, 0.0)

    atom_mask = (posf <= ran).astype(f32)                     # (B, A*N)
    masked_full = sorted_full * atom_mask                     # masked sorted logits

    # Per-action mean-Q and CVaR sums as tiny constant matmuls on the MXU.
    q = matmul(logits, msum_ref[...]) * (1.0 / float(N))      # (B, A)
    sel = (rank <= ran).astype(f32)                           # CVaR needs no sort
    cvar = matmul(logits * sel, msum_ref[...]) * inv_ran      # (B, A)

    masks_n = (posf[:, 0:N] <= ran).astype(f32)               # (B, N)

    # ---------------- single lane-dense packed output ----------------------
    out_ref[:, O_CVAR:O_CVAR + A] = cvar
    out_ref[:, O_Q:O_Q + A] = q
    out_ref[:, O_LOG:O_LOG + AN] = logits
    out_ref[:, O_RLOG:O_RLOG + R] = risk_logits
    out_ref[:, O_H:O_H + H] = h
    out_ref[:, O_RH:O_RH + H] = r_h
    out_ref[:, O_MLOG:O_MLOG + AN] = masked_full
    out_ref[:, O_MASK:O_MASK + N] = masks_n
    if O_END < SLAB:
        out_ref[:, O_END:SLAB] = jnp.zeros((B, SLAB - O_END), f32)


# ----------------------------------------------------------------------------
# Wrapper
# ----------------------------------------------------------------------------
def make_rmix_forward(cfg):
    H, A, N = cfg["rnn_hidden_dim"], cfg["n_actions"], cfg["num_atoms"]
    R, G = cfg["risk_level_range"], cfg["n_agents"]
    AN = A * N
    CHUNK = 128  # aligned chunk stride for the broadcast matmul output

    # packed-output layout
    O_CVAR = 0
    O_Q = O_CVAR + A
    O_LOG = O_Q + A
    O_RLOG = O_LOG + AN
    O_H = O_RLOG + R
    O_RH = O_H + H
    O_MLOG = O_RH + H
    O_MASK = O_MLOG + AN
    O_END = O_MASK + N
    SLAB = ((O_END + 127) // 128) * 128
    OFFS = (O_CVAR, O_Q, O_LOG, O_RLOG, O_H, O_RH, O_MLOG, O_MASK, O_END)

    # static helper matrices (built once with numpy)
    SB = np.zeros((AN, N * CHUNK + CHUNK), np.float32)
    for j in range(N):
        for a in range(A):
            SB[a * N + j, j * CHUNK + a * N:j * CHUNK + a * N + N] = 1.0
    for r in range(AN):
        SB[r, N * CHUNK + r] = 1.0                       # identity copy block
    MSUM = np.zeros((AN, A), np.float32)
    for a in range(A):
        MSUM[a * N:(a + 1) * N, a] = 1.0                 # per-action group sums
    POSF = (np.arange(AN) % N).astype(np.float32).reshape(1, AN)

    SB_j = jnp.asarray(SB)
    MSUM_j = jnp.asarray(MSUM)
    POSF_j = jnp.asarray(POSF)

    kernel = functools.partial(_rmix_kernel, H=H, A=A, N=N, R=R, G=G,
                               CHUNK=CHUNK, OFFS=OFFS, SLAB=SLAB)
    vmem = pl.BlockSpec(memory_space=pltpu.MemorySpace.VMEM)

    @jax.jit
    def forward(params, inputs, r_inputs, hidden_state, r_hidden_state):
        B = inputs.shape[0]
        HI = jax.lax.Precision.HIGHEST
        # fc2 -> history fused offline (no nonlinearity between them -> exact)
        hist_fw = jnp.dot(params["fc2_w"], params["hist_w"], precision=HI)
        hist_fb = jnp.dot(params["fc2_b"], params["hist_w"], precision=HI)
        args = (
            inputs, r_inputs, hidden_state, r_hidden_state,
            params["net_w1"], params["net_b1"], params["net_w2"], params["net_b2"],
            params["rnn_wih"], params["rnn_bih"], params["rnn_whh"], params["rnn_bhh"],
            params["fc2_w"], params["fc2_b"],
            params["rfc1_w"], params["rfc1_b"],
            params["rrnn_wih"], params["rrnn_bih"], params["rrnn_whh"], params["rrnn_bhh"],
            params["cur_w"], hist_fw, hist_fb,
            SB_j, MSUM_j, POSF_j,
        )
        slab = pl.pallas_call(
            kernel,
            out_shape=jax.ShapeDtypeStruct((B, SLAB), jnp.float32),
            in_specs=tuple(vmem for _ in args),
            out_specs=vmem,
        )(*args)
        cvar_q = slab[:, O_CVAR:O_CVAR + A]
        q = slab[:, O_Q:O_Q + A]
        logits = slab[:, O_LOG:O_LOG + AN].reshape(B, A, N)
        r_logits = slab[:, O_RLOG:O_RLOG + R]
        h = slab[:, O_H:O_H + H]
        r_h = slab[:, O_RH:O_RH + H]
        masked = slab[:, O_MLOG:O_MLOG + AN].reshape(B, A, N)
        masks = slab[:, O_MASK:O_MASK + N].reshape(B, 1, N)
        return cvar_q, q, logits, r_logits, h, r_h, masked, masks

    return forward


# ----------------------------------------------------------------------------
# Deterministic parameter init (PyTorch-style uniform(-1/sqrt(fan_in), ...))
# ----------------------------------------------------------------------------
def init_params(key, cfg):
    H, A, N = cfg["rnn_hidden_dim"], cfg["n_actions"], cfg["num_atoms"]
    R, G, IN = cfg["risk_level_range"], cfg["n_agents"], cfg["input_shape"]

    def uni(k, shape, fan_in):
        b = 1.0 / math.sqrt(fan_in)
        return jax.random.uniform(k, shape, jnp.float32, -b, b)

    ks = iter(jax.random.split(key, 18))
    p = {
        "net_w1": uni(next(ks), (IN, H), IN), "net_b1": uni(next(ks), (1, H), IN),
        "net_w2": uni(next(ks), (H, H), H),   "net_b2": uni(next(ks), (1, H), H),
        "rnn_wih": uni(next(ks), (H, 3 * H), H), "rnn_bih": uni(next(ks), (1, 3 * H), H),
        "rnn_whh": uni(next(ks), (H, 3 * H), H), "rnn_bhh": uni(next(ks), (1, 3 * H), H),
        "fc2_w": uni(next(ks), (H, A * N), H),   "fc2_b": uni(next(ks), (1, A * N), H),
        "rfc1_w": uni(next(ks), (IN, H), IN),    "rfc1_b": uni(next(ks), (1, H), IN),
        "rrnn_wih": uni(next(ks), (H, 3 * H), H), "rrnn_bih": uni(next(ks), (1, 3 * H), H),
        "rrnn_whh": uni(next(ks), (H, 3 * H), H), "rrnn_bhh": uni(next(ks), (1, 3 * H), H),
        "hist_w": uni(next(ks), (A * N, R * G), A * N),
        "cur_w": uni(next(ks), (A * N, G), A * N),
    }
    return p


# ----------------------------------------------------------------------------
# Pure-JAX reference of the PyTorch forward (for a sanity check)
# ----------------------------------------------------------------------------
def reference_forward(params, cfg, inputs, r_inputs, h0, rh0):
    H, A, N = cfg["rnn_hidden_dim"], cfg["n_actions"], cfg["num_atoms"]
    R, G = cfg["risk_level_range"], cfg["n_agents"]
    HI = jax.lax.Precision.HIGHEST
    dot = lambda a, b: jnp.dot(a, b, precision=HI)

    def gru(x, h, wih, bih, whh, bhh):
        gi = dot(x, wih) + bih
        gh = dot(h, whh) + bhh
        r = jax.nn.sigmoid(gi[:, :H] + gh[:, :H])
        z = jax.nn.sigmoid(gi[:, H:2 * H] + gh[:, H:2 * H])
        n = jnp.tanh(gi[:, 2 * H:] + r * gh[:, 2 * H:])
        return (1 - z) * n + z * h

    x = jax.nn.relu(dot(inputs, params["net_w1"]) + params["net_b1"])
    x = jax.nn.relu(dot(x, params["net_w2"]) + params["net_b2"])
    h = gru(x, h0, params["rnn_wih"], params["rnn_bih"], params["rnn_whh"], params["rnn_bhh"])
    logits_flat = dot(h, params["fc2_w"]) + params["fc2_b"]
    B = inputs.shape[0]
    logits = logits_flat.reshape(B, A, N)

    rx = jax.nn.relu(dot(r_inputs, params["rfc1_w"]) + params["rfc1_b"])
    r_h = gru(rx, rh0, params["rrnn_wih"], params["rrnn_bih"],
              params["rrnn_whh"], params["rrnn_bhh"])
    r_fc2 = dot(r_h, params["fc2_w"]) + params["fc2_b"]
    history = dot(r_fc2, params["hist_w"]).reshape(B, G, R)
    current = dot(logits_flat, params["cur_w"])                       # (B, G)
    risk_logits = jnp.einsum("bg,bgr->br", current, history) / np.sqrt(H)

    rw = jax.nn.softmax(risk_logits, axis=-1)
    level = (jnp.argmax(rw, axis=-1) + 1).astype(jnp.float32) / float(R)
    ran = jnp.ceil(level * N - 1.0)
    sorted_logits = jnp.sort(logits, axis=2)
    masks = (jnp.arange(N)[None, :] <= ran[:, None]).astype(jnp.float32)[:, None, :]
    sum_cvar = jnp.sum(sorted_logits * masks, axis=2)
    cvar_q = sum_cvar / ran[:, None]
    masked_logits = (sorted_logits * masks).reshape(B, A, N)
    q = jnp.mean(logits, axis=2)
    return cvar_q, q, logits, risk_logits, h, r_h, masked_logits, masks


# ----------------------------------------------------------------------------
if __name__ == "__main__":
    cfg = CFG
    key = jax.random.PRNGKey(0)
    kp, k1, k2, k3, k4 = jax.random.split(key, 5)

    params = init_params(kp, cfg)

    B = 2 * cfg["n_agents"]  # (batch=2) x (n_agents=3) agents, as in RMIX
    inputs = jax.random.normal(k1, (B, cfg["input_shape"]), jnp.float32)
    r_inputs = jax.random.normal(k2, (B, cfg["input_shape"]), jnp.float32)
    hidden = 0.1 * jax.random.normal(k3, (B, cfg["rnn_hidden_dim"]), jnp.float32)
    r_hidden = 0.1 * jax.random.normal(k4, (B, cfg["rnn_hidden_dim"]), jnp.float32)

    forward = make_rmix_forward(cfg)
    outs = forward(params, inputs, r_inputs, hidden, r_hidden)
    outs = jax.block_until_ready(outs)

    refs = reference_forward(params, cfg, inputs, r_inputs, hidden, r_hidden)
    names = ["cvar_q", "q", "logits", "r_logits", "h", "r_h", "masked_logits", "masks"]
    for name, got, ref in zip(names, outs, refs):
        assert got.shape == ref.shape, (name, got.shape, ref.shape)
        np.testing.assert_allclose(np.asarray(got), np.asarray(ref),
                                   rtol=2e-3, atol=2e-3, err_msg=name)

    print("KERNEL_OK")
</pallas_src>

<mosaic_0001>
module attributes {stable_mosaic.version = 11 : i64} {
  func.func @_rmix_kernel(%arg0: memref<6x16xf32, #tpu.memory_space<vmem>>, %arg1: memref<6x16xf32, #tpu.memory_space<vmem>>, %arg2: memref<6x32xf32, #tpu.memory_space<vmem>>, %arg3: memref<6x32xf32, #tpu.memory_space<vmem>>, %arg4: memref<16x32xf32, #tpu.memory_space<vmem>>, %arg5: memref<1x32xf32, #tpu.memory_space<vmem>>, %arg6: memref<32x32xf32, #tpu.memory_space<vmem>>, %arg7: memref<1x32xf32, #tpu.memory_space<vmem>>, %arg8: memref<32x96xf32, #tpu.memory_space<vmem>>, %arg9: memref<1x96xf32, #tpu.memory_space<vmem>>, %arg10: memref<32x96xf32, #tpu.memory_space<vmem>>, %arg11: memref<1x96xf32, #tpu.memory_space<vmem>>, %arg12: memref<32x40xf32, #tpu.memory_space<vmem>>, %arg13: memref<1x40xf32, #tpu.memory_space<vmem>>, %arg14: memref<16x32xf32, #tpu.memory_space<vmem>>, %arg15: memref<1x32xf32, #tpu.memory_space<vmem>>, %arg16: memref<32x96xf32, #tpu.memory_space<vmem>>, %arg17: memref<1x96xf32, #tpu.memory_space<vmem>>, %arg18: memref<32x96xf32, #tpu.memory_space<vmem>>, %arg19: memref<1x96xf32, #tpu.memory_space<vmem>>, %arg20: memref<40x3xf32, #tpu.memory_space<vmem>>, %arg21: memref<32x12xf32, #tpu.memory_space<vmem>>, %arg22: memref<1x12xf32, #tpu.memory_space<vmem>>, %arg23: memref<40x1152xf32, #tpu.memory_space<vmem>>, %arg24: memref<40x5xf32, #tpu.memory_space<vmem>>, %arg25: memref<1x40xf32, #tpu.memory_space<vmem>>, %arg26: memref<6x256xf32, #tpu.memory_space<vmem>>) attributes {dimension_semantics = [], scalar_prefetch = 0 : i64, scratch_operands = 0 : i64, tpu.core_type = #tpu.core_type<tc>} {
    %c0 = arith.constant 0 : index
    %c0_0 = arith.constant 0 : index
    %0 = vector.load %arg0[%c0, %c0_0] : memref<6x16xf32, #tpu.memory_space<vmem>>, vector<6x16xf32>
    %c0_1 = arith.constant 0 : index
    %c0_2 = arith.constant 0 : index
    %1 = vector.load %arg4[%c0_1, %c0_2] : memref<16x32xf32, #tpu.memory_space<vmem>>, vector<16x32xf32>
    %cst = arith.constant dense<0.000000e+00> : vector<6x32xf32>
    %2 = tpu.matmul %0, %1, %cst {dimension_numbers = #tpu.dot_dimension_numbers<[1], [0], [0], [1], [0, 0, 1, 1], [], []>} : vector<6x16xf32>, vector<16x32xf32>, vector<6x32xf32> -> vector<6x32xf32>
    %c0_3 = arith.constant 0 : index
    %c0_4 = arith.constant 0 : index
    %3 = vector.load %arg5[%c0_3, %c0_4] : memref<1x32xf32, #tpu.memory_space<vmem>>, vector<1x32xf32>
    %4 = vector.broadcast %3 : vector<1x32xf32> to vector<6x32xf32>
    %5 = arith.addf %2, %4 : vector<6x32xf32>
    %cst_5 = arith.constant 0.000000e+00 : f32
    %6 = vector.broadcast %cst_5 : f32 to vector<6x32xf32>
    %7 = arith.maximumf %5, %6 : vector<6x32xf32>
    %c0_6 = arith.constant 0 : index
    %c0_7 = arith.constant 0 : index
    %8 = vector.load %arg6[%c0_6, %c0_7] : memref<32x32xf32, #tpu.memory_space<vmem>>, vector<32x32xf32>
    %cst_8 = arith.constant dense<0.000000e+00> : vector<6x32xf32>
    %9 = tpu.matmul %7, %8, %cst_8 {dimension_numbers = #tpu.dot_dimension_numbers<[1], [0], [0], [1], [0, 0, 1, 1], [], []>} : vector<6x32xf32>, vector<32x32xf32>, vector<6x32xf32> -> vector<6x32xf32>
    %c0_9 = arith.constant 0 : index
    %c0_10 = arith.constant 0 : index
    %10 = vector.load %arg7[%c0_9, %c0_10] : memref<1x32xf32, #tpu.memory_space<vmem>>, vector<1x32xf32>
    %11 = vector.broadcast %10 : vector<1x32xf32> to vector<6x32xf32>
    %12 = arith.addf %9, %11 : vector<6x32xf32>
    %cst_11 = arith.constant 0.000000e+00 : f32
    %13 = vector.broadcast %cst_11 : f32 to vector<6x32xf32>
    %14 = arith.maximumf %12, %13 : vector<6x32xf32>
    %c0_12 = arith.constant 0 : index
    %c0_13 = arith.constant 0 : index
    %15 = vector.load %arg2[%c0_12, %c0_13] : memref<6x32xf32, #tpu.memory_space<vmem>>, vector<6x32xf32>
    %c0_14 = arith.constant 0 : index
    %c0_15 = arith.constant 0 : index
    %16 = vector.load %arg8[%c0_14, %c0_15] : memref<32x96xf32, #tpu.memory_space<vmem>>, vector<32x96xf32>
    %c0_16 = arith.constant 0 : index
    %c0_17 = arith.constant 0 : index
    %17 = vector.load %arg9[%c0_16, %c0_17] : memref<1x96xf32, #tpu.memory_space<vmem>>, vector<1x96xf32>
    %c0_18 = arith.constant 0 : index
    %c0_19 = arith.constant 0 : index
    %18 = vector.load %arg10[%c0_18, %c0_19] : memref<32x96xf32, #tpu.memory_space<vmem>>, vector<32x96xf32>
    %c0_20 = arith.constant 0 : index
    %c0_21 = arith.constant 0 : index
    %19 = vector.load %arg11[%c0_20, %c0_21] : memref<1x96xf32, #tpu.memory_space<vmem>>, vector<1x96xf32>
    %cst_22 = arith.constant dense<0.000000e+00> : vector<6x96xf32>
    %20 = tpu.matmul %14, %16, %cst_22 {dimension_numbers = #tpu.dot_dimension_numbers<[1], [0], [0], [1], [0, 0, 1, 1], [], []>} : vector<6x32xf32>, vector<32x96xf32>, vector<6x96xf32> -> vector<6x96xf32>
    %21 = vector.broadcast %17 : vector<1x96xf32> to vector<6x96xf32>
    %22 = arith.addf %20, %21 : vector<6x96xf32>
    %cst_23 = arith.constant dense<0.000000e+00> : vector<6x96xf32>
    %23 = tpu.matmul %15, %18, %cst_23 {dimension_numbers = #tpu.dot_dimension_numbers<[1], [0], [0], [1], [0, 0, 1, 1], [], []>} : vector<6x32xf32>, vector<32x96xf32>, vector<6x96xf32> -> vector<6x96xf32>
    %24 = vector.broadcast %19 : vector<1x96xf32> to vector<6x96xf32>
    %25 = arith.addf %23, %24 : vector<6x96xf32>
    %26 = vector.extract_strided_slice %22 {offsets = [0, 0], sizes = [6, 32], strides = [1, 1]} : vector<6x96xf32> to vector<6x32xf32>
    %27 = vector.extract_strided_slice %25 {offsets = [0, 0], sizes = [6, 32], strides = [1, 1]} : vector<6x96xf32> to vector<6x32xf32>
    %28 = arith.addf %26, %27 : vector<6x32xf32>
    %29 = arith.negf %28 : vector<6x32xf32>
    %30 = math.exp %29 : vector<6x32xf32>
    %cst_24 = arith.constant 1.000000e+00 : f32
    %31 = vector.broadcast %cst_24 : f32 to vector<6x32xf32>
    %32 = arith.addf %31, %30 : vector<6x32xf32>
    %33 = arith.divf %31, %32 : vector<6x32xf32>
    %34 = vector.extract_strided_slice %22 {offsets = [0, 32], sizes = [6, 32], strides = [1, 1]} : vector<6x96xf32> to vector<6x32xf32>
    %35 = vector.extract_strided_slice %25 {offsets = [0, 32], sizes = [6, 32], strides = [1, 1]} : vector<6x96xf32> to vector<6x32xf32>
    %36 = arith.addf %34, %35 : vector<6x32xf32>
    %37 = arith.negf %36 : vector<6x32xf32>
    %38 = math.exp %37 : vector<6x32xf32>
    %cst_25 = arith.constant 1.000000e+00 : f32
    %39 = vector.broadcast %cst_25 : f32 to vector<6x32xf32>
    %40 = arith.addf %39, %38 : vector<6x32xf32>
    %41 = arith.divf %39, %40 : vector<6x32xf32>
    %42 = vector.extract_strided_slice %22 {offsets = [0, 64], sizes = [6, 32], strides = [1, 1]} : vector<6x96xf32> to vector<6x32xf32>
    %43 = vector.extract_strided_slice %25 {offsets = [0, 64], sizes = [6, 32], strides = [1, 1]} : vector<6x96xf32> to vector<6x32xf32>
    %44 = arith.mulf %33, %43 : vector<6x32xf32>
    %45 = arith.addf %42, %44 : vector<6x32xf32>
    %46 = math.tanh %45 : vector<6x32xf32>
    %cst_26 = arith.constant 1.000000e+00 : f32
    %47 = vector.broadcast %cst_26 : f32 to vector<6x32xf32>
    %48 = arith.subf %47, %41 : vector<6x32xf32>
    %49 = arith.mulf %48, %46 : vector<6x32xf32>
    %50 = arith.mulf %41, %15 : vector<6x32xf32>
    %51 = arith.addf %49, %50 : vector<6x32xf32>
    %c0_27 = arith.constant 0 : index
    %c0_28 = arith.constant 0 : index
    %52 = vector.load %arg12[%c0_27, %c0_28] : memref<32x40xf32, #tpu.memory_space<vmem>>, vector<32x40xf32>
    %cst_29 = arith.constant dense<0.000000e+00> : vector<6x40xf32>
    %53 = tpu.matmul %51, %52, %cst_29 {dimension_numbers = #tpu.dot_dimension_numbers<[1], [0], [0], [1], [0, 0, 1, 1], [], []>} : vector<6x32xf32>, vector<32x40xf32>, vector<6x40xf32> -> vector<6x40xf32>
    %c0_30 = arith.constant 0 : index
    %c0_31 = arith.constant 0 : index
    %54 = vector.load %arg13[%c0_30, %c0_31] : memref<1x40xf32, #tpu.memory_space<vmem>>, vector<1x40xf32>
    %55 = vector.broadcast %54 : vector<1x40xf32> to vector<6x40xf32>
    %56 = arith.addf %53, %55 : vector<6x40xf32>
    %c0_32 = arith.constant 0 : index
    %c0_33 = arith.constant 0 : index
    %57 = vector.load %arg1[%c0_32, %c0_33] : memref<6x16xf32, #tpu.memory_space<vmem>>, vector<6x16xf32>
    %c0_34 = arith.constant 0 : index
    %c0_35 = arith.constant 0 : index
    %58 = vector.load %arg14[%c0_34, %c0_35] : memref<16x32xf32, #tpu.memory_space<vmem>>, vector<16x32xf32>
    %cst_36 = arith.constant dense<0.000000e+00> : vector<6x32xf32>
    %59 = tpu.matmul %57, %58, %cst_36 {dimension_numbers = #tpu.dot_dimension_numbers<[1], [0], [0], [1], [0, 0, 1, 1], [], []>} : vector<6x16xf32>, vector<16x32xf32>, vector<6x32xf32> -> vector<6x32xf32>
    %c0_37 = arith.constant 0 : index
    %c0_38 = arith.constant 0 : index
    %60 = vector.load %arg15[%c0_37, %c0_38] : memref<1x32xf32, #tpu.memory_space<vmem>>, vector<1x32xf32>
    %61 = vector.broadcast %60 : vector<1x32xf32> to vector<6x32xf32>
    %62 = arith.addf %59, %61 : vector<6x32xf32>
    %cst_39 = arith.constant 0.000000e+00 : f32
    %63 = vector.broadcast %cst_39 : f32 to vector<6x32xf32>
    %64 = arith.maximumf %62, %63 : vector<6x32xf32>
    %c0_40 = arith.constant 0 : index
    %c0_41 = arith.constant 0 : index
    %65 = vector.load %arg3[%c0_40, %c0_41] : memref<6x32xf32, #tpu.memory_space<vmem>>, vector<6x32xf32>
    %c0_42 = arith.constant 0 : index
    %c0_43 = arith.constant 0 : index
    %66 = vector.load %arg16[%c0_42, %c0_43] : memref<32x96xf32, #tpu.memory_space<vmem>>, vector<32x96xf32>
    %c0_44 = arith.constant 0 : index
    %c0_45 = arith.constant 0 : index
    %67 = vector.load %arg17[%c0_44, %c0_45] : memref<1x96xf32, #tpu.memory_space<vmem>>, vector<1x96xf32>
    %c0_46 = arith.constant 0 : index
    %c0_47 = arith.constant 0 : index
    %68 = vector.load %arg18[%c0_46, %c0_47] : memref<32x96xf32, #tpu.memory_space<vmem>>, vector<32x96xf32>
    %c0_48 = arith.constant 0 : index
    %c0_49 = arith.constant 0 : index
    %69 = vector.load %arg19[%c0_48, %c0_49] : memref<1x96xf32, #tpu.memory_space<vmem>>, vector<1x96xf32>
    %cst_50 = arith.constant dense<0.000000e+00> : vector<6x96xf32>
    %70 = tpu.matmul %64, %66, %cst_50 {dimension_numbers = #tpu.dot_dimension_numbers<[1], [0], [0], [1], [0, 0, 1, 1], [], []>} : vector<6x32xf32>, vector<32x96xf32>, vector<6x96xf32> -> vector<6x96xf32>
    %71 = vector.broadcast %67 : vector<1x96xf32> to vector<6x96xf32>
    %72 = arith.addf %70, %71 : vector<6x96xf32>
    %cst_51 = arith.constant dense<0.000000e+00> : vector<6x96xf32>
    %73 = tpu.matmul %65, %68, %cst_51 {dimension_numbers = #tpu.dot_dimension_numbers<[1], [0], [0], [1], [0, 0, 1, 1], [], []>} : vector<6x32xf32>, vector<32x96xf32>, vector<6x96xf32> -> vector<6x96xf32>
    %74 = vector.broadcast %69 : vector<1x96xf32> to vector<6x96xf32>
    %75 = arith.addf %73, %74 : vector<6x96xf32>
    %76 = vector.extract_strided_slice %72 {offsets = [0, 0], sizes = [6, 32], strides = [1, 1]} : vector<6x96xf32> to vector<6x32xf32>
    %77 = vector.extract_strided_slice %75 {offsets = [0, 0], sizes = [6, 32], strides = [1, 1]} : vector<6x96xf32> to vector<6x32xf32>
    %78 = arith.addf %76, %77 : vector<6x32xf32>
    %79 = arith.negf %78 : vector<6x32xf32>
    %80 = math.exp %79 : vector<6x32xf32>
    %cst_52 = arith.constant 1.000000e+00 : f32
    %81 = vector.broadcast %cst_52 : f32 to vector<6x32xf32>
    %82 = arith.addf %81, %80 : vector<6x32xf32>
    %83 = arith.divf %81, %82 : vector<6x32xf32>
    %84 = vector.extract_strided_slice %72 {offsets = [0, 32], sizes = [6, 32], strides = [1, 1]} : vector<6x96xf32> to vector<6x32xf32>
    %85 = vector.extract_strided_slice %75 {offsets = [0, 32], sizes = [6, 32], strides = [1, 1]} : vector<6x96xf32> to vector<6x32xf32>
    %86 = arith.addf %84, %85 : vector<6x32xf32>
    %87 = arith.negf %86 : vector<6x32xf32>
    %88 = math.exp %87 : vector<6x32xf32>
    %cst_53 = arith.constant 1.000000e+00 : f32
    %89 = vector.broadcast %cst_53 : f32 to vector<6x32xf32>
    %90 = arith.addf %89, %88 : vector<6x32xf32>
    %91 = arith.divf %89, %90 : vector<6x32xf32>
    %92 = vector.extract_strided_slice %72 {offsets = [0, 64], sizes = [6, 32], strides = [1, 1]} : vector<6x96xf32> to vector<6x32xf32>
    %93 = vector.extract_strided_slice %75 {offsets = [0, 64], sizes = [6, 32], strides = [1, 1]} : vector<6x96xf32> to vector<6x32xf32>
    %94 = arith.mulf %83, %93 : vector<6x32xf32>
    %95 = arith.addf %92, %94 : vector<6x32xf32>
    %96 = math.tanh %95 : vector<6x32xf32>
    %cst_54 = arith.constant 1.000000e+00 : f32
    %97 = vector.broadcast %cst_54 : f32 to vector<6x32xf32>
    %98 = arith.subf %97, %91 : vector<6x32xf32>
    %99 = arith.mulf %98, %96 : vector<6x32xf32>
    %100 = arith.mulf %91, %65 : vector<6x32xf32>
    %101 = arith.addf %99, %100 : vector<6x32xf32>
    %c0_55 = arith.constant 0 : index
    %c0_56 = arith.constant 0 : index
    %102 = vector.load %arg21[%c0_55, %c0_56] : memref<32x12xf32, #tpu.memory_space<vmem>>, vector<32x12xf32>
    %cst_57 = arith.constant dense<0.000000e+00> : vector<6x12xf32>
    %103 = tpu.matmul %101, %102, %cst_57 {dimension_numbers = #tpu.dot_dimension_numbers<[1], [0], [0], [1], [0, 0, 1, 1], [], []>} : vector<6x32xf32>, vector<32x12xf32>, vector<6x12xf32> -> vector<6x12xf32>
    %c0_58 = arith.constant 0 : index
    %c0_59 = arith.constant 0 : index
    %104 = vector.load %arg22[%c0_58, %c0_59] : memref<1x12xf32, #tpu.memory_space<vmem>>, vector<1x12xf32>
    %105 = vector.broadcast %104 : vector<1x12xf32> to vector<6x12xf32>
    %106 = arith.addf %103, %105 : vector<6x12xf32>
    %c0_60 = arith.constant 0 : index
    %c0_61 = arith.constant 0 : index
    %107 = vector.load %arg20[%c0_60, %c0_61] : memref<40x3xf32, #tpu.memory_space<vmem>>, vector<40x3xf32>
    %cst_62 = arith.constant dense<0.000000e+00> : vector<6x3xf32>
    %108 = tpu.matmul %56, %107, %cst_62 {dimension_numbers = #tpu.dot_dimension_numbers<[1], [0], [0], [1], [0, 0, 1, 1], [], []>} : vector<6x40xf32>, vector<40x3xf32>, vector<6x3xf32> -> vector<6x3xf32>
    %cst_63 = arith.constant 0.000000e+00 : f32
    %109 = vector.broadcast %cst_63 : f32 to vector<6x4xf32>
    %110 = vector.extract_strided_slice %108 {offsets = [0, 0], sizes = [6, 1], strides = [1, 1]} : vector<6x3xf32> to vector<6x1xf32>
    %111 = vector.extract_strided_slice %106 {offsets = [0, 0], sizes = [6, 4], strides = [1, 1]} : vector<6x12xf32> to vector<6x4xf32>
    %112 = vector.broadcast %110 : vector<6x1xf32> to vector<6x4xf32>
    %113 = arith.mulf %112, %111 : vector<6x4xf32>
    %114 = arith.addf %109, %113 : vector<6x4xf32>
    %115 = vector.extract_strided_slice %108 {offsets = [0, 1], sizes = [6, 1], strides = [1, 1]} : vector<6x3xf32> to vector<6x1xf32>
    %116 = vector.extract_strided_slice %106 {offsets = [0, 4], sizes = [6, 4], strides = [1, 1]} : vector<6x12xf32> to vector<6x4xf32>
    %117 = vector.broadcast %115 : vector<6x1xf32> to vector<6x4xf32>
    %118 = arith.mulf %117, %116 : vector<6x4xf32>
    %119 = arith.addf %114, %118 : vector<6x4xf32>
    %120 = vector.extract_strided_slice %108 {offsets = [0, 2], sizes = [6, 1], strides = [1, 1]} : vector<6x3xf32> to vector<6x1xf32>
    %121 = vector.extract_strided_slice %106 {offsets = [0, 8], sizes = [6, 4], strides = [1, 1]} : vector<6x12xf32> to vector<6x4xf32>
    %122 = vector.broadcast %120 : vector<6x1xf32> to vector<6x4xf32>
    %123 = arith.mulf %122, %121 : vector<6x4xf32>
    %124 = arith.addf %119, %123 : vector<6x4xf32>
    %cst_64 = arith.constant 0.176776692 : f32
    %125 = vector.broadcast %cst_64 : f32 to vector<6x4xf32>
    %126 = arith.mulf %124, %125 : vector<6x4xf32>
    %cst_65 = arith.constant dense<0xFF800000> : vector<6xf32>
    %127 = vector.multi_reduction <maximumf>, %126, %cst_65 [1] : vector<6x4xf32> to vector<6xf32>
    %128 = vector.shape_cast %127 : vector<6xf32> to vector<6x1xf32>
    %129 = tpu.iota {dimensions = array<i32: 1>} : vector<6x4xi32>
    %130 = vector.broadcast %128 : vector<6x1xf32> to vector<6x4xf32>
    %131 = arith.cmpf oeq, %126, %130 : vector<6x4xf32>
    %c4_i32 = arith.constant 4 : i32
    %132 = vector.broadcast %c4_i32 : i32 to vector<6x4xi32>
    %133 = arith.select %131, %129, %132 : vector<6x4xi1>, vector<6x4xi32>
    %cst_66 = arith.constant dense<2147483647> : vector<6xi32>
    %134 = vector.multi_reduction <minsi>, %133, %cst_66 [1] : vector<6x4xi32> to vector<6xi32>
    %135 = vector.shape_cast %134 : vector<6xi32> to vector<6x1xi32>
    %136 = arith.sitofp %135 : vector<6x1xi32> to vector<6x1xf32>
    %cst_67 = arith.constant 1.000000e+00 : f32
    %137 = vector.broadcast %cst_67 : f32 to vector<6x1xf32>
    %138 = arith.addf %136, %137 : vector<6x1xf32>
    %cst_68 = arith.constant 4.000000e+00 : f32
    %139 = vector.broadcast %cst_68 : f32 to vector<6x1xf32>
    %140 = arith.divf %138, %139 : vector<6x1xf32>
    %cst_69 = arith.constant 8.000000e+00 : f32
    %141 = vector.broadcast %cst_69 : f32 to vector<6x1xf32>
    %142 = arith.mulf %140, %141 : vector<6x1xf32>
    %cst_70 = arith.constant 1.000000e+00 : f32
    %143 = vector.broadcast %cst_70 : f32 to vector<6x1xf32>
    %144 = arith.subf %142, %143 : vector<6x1xf32>
    %145 = math.ceil %144 : vector<6x1xf32>
    %cst_71 = arith.constant 1.000000e+00 : f32
    %146 = vector.broadcast %cst_71 : f32 to vector<6x1xf32>
    %147 = arith.divf %146, %145 : vector<6x1xf32>
    %c0_72 = arith.constant 0 : index
    %c0_73 = arith.constant 0 : index
    %148 = vector.load %arg25[%c0_72, %c0_73] : memref<1x40xf32, #tpu.memory_space<vmem>>, vector<1x40xf32>
    %c0_74 = arith.constant 0 : index
    %c0_75 = arith.constant 0 : index
    %149 = vector.load %arg23[%c0_74, %c0_75] : memref<40x1152xf32, #tpu.memory_space<vmem>>, vector<40x1152xf32>
    %cst_76 = arith.constant dense<0.000000e+00> : vector<6x1152xf32>
    %150 = tpu.matmul %56, %149, %cst_76 {dimension_numbers = #tpu.dot_dimension_numbers<[1], [0], [0], [1], [0, 0, 1, 1], [], []>} : vector<6x40xf32>, vector<40x1152xf32>, vector<6x1152xf32> -> vector<6x1152xf32>
    %151 = vector.extract_strided_slice %150 {offsets = [0, 1024], sizes = [6, 40], strides = [1, 1]} : vector<6x1152xf32> to vector<6x40xf32>
    %cst_77 = arith.constant 0.000000e+00 : f32
    %152 = vector.broadcast %cst_77 : f32 to vector<6x40xf32>
    %153 = vector.extract_strided_slice %150 {offsets = [0, 0], sizes = [6, 40], strides = [1, 1]} : vector<6x1152xf32> to vector<6x40xf32>
    %154 = arith.cmpf olt, %153, %151 : vector<6x40xf32>
    %155 = arith.extui %154 : vector<6x40xi1> to vector<6x40xi32>
    %156 = arith.sitofp %155 : vector<6x40xi32> to vector<6x40xf32>
    %157 = arith.addf %152, %156 : vector<6x40xf32>
    %158 = arith.cmpf oeq, %153, %151 : vector<6x40xf32>
    %159 = arith.extui %158 : vector<6x40xi1> to vector<6x40xi32>
    %160 = arith.sitofp %159 : vector<6x40xi32> to vector<6x40xf32>
    %cst_78 = arith.constant 0.000000e+00 : f32
    %161 = vector.broadcast %cst_78 : f32 to vector<1x40xf32>
    %162 = arith.cmpf ogt, %148, %161 : vector<1x40xf32>
    %163 = arith.extui %162 : vector<1x40xi1> to vector<1x40xi32>
    %164 = arith.sitofp %163 : vector<1x40xi32> to vector<1x40xf32>
    %165 = vector.broadcast %164 : vector<1x40xf32> to vector<6x40xf32>
    %166 = arith.mulf %160, %165 : vector<6x40xf32>
    %167 = arith.addf %157, %166 : vector<6x40xf32>
    %168 = vector.extract_strided_slice %150 {offsets = [0, 128], sizes = [6, 40], strides = [1, 1]} : vector<6x1152xf32> to vector<6x40xf32>
    %169 = arith.cmpf olt, %168, %151 : vector<6x40xf32>
    %170 = arith.extui %169 : vector<6x40xi1> to vector<6x40xi32>
    %171 = arith.sitofp %170 : vector<6x40xi32> to vector<6x40xf32>
    %172 = arith.addf %167, %171 : vector<6x40xf32>
    %173 = arith.cmpf oeq, %168, %151 : vector<6x40xf32>
    %174 = arith.extui %173 : vector<6x40xi1> to vector<6x40xi32>
    %175 = arith.sitofp %174 : vector<6x40xi32> to vector<6x40xf32>
    %cst_79 = arith.constant 1.000000e+00 : f32
    %176 = vector.broadcast %cst_79 : f32 to vector<1x40xf32>
    %177 = arith.cmpf ogt, %148, %176 : vector<1x40xf32>
    %178 = arith.extui %177 : vector<1x40xi1> to vector<1x40xi32>
    %179 = arith.sitofp %178 : vector<1x40xi32> to vector<1x40xf32>
    %180 = vector.broadcast %179 : vector<1x40xf32> to vector<6x40xf32>
    %181 = arith.mulf %175, %180 : vector<6x40xf32>
    %182 = arith.addf %172, %181 : vector<6x40xf32>
    %183 = vector.extract_strided_slice %150 {offsets = [0, 256], sizes = [6, 40], strides = [1, 1]} : vector<6x1152xf32> to vector<6x40xf32>
    %184 = arith.cmpf olt, %183, %151 : vector<6x40xf32>
    %185 = arith.extui %184 : vector<6x40xi1> to vector<6x40xi32>
    %186 = arith.sitofp %185 : vector<6x40xi32> to vector<6x40xf32>
    %187 = arith.addf %182, %186 : vector<6x40xf32>
    %188 = arith.cmpf oeq, %183, %151 : vector<6x40xf32>
    %189 = arith.extui %188 : vector<6x40xi1> to vector<6x40xi32>
    %190 = arith.sitofp %189 : vector<6x40xi32> to vector<6x40xf32>
    %cst_80 = arith.constant 2.000000e+00 : f32
    %191 = vector.broadcast %cst_80 : f32 to vector<1x40xf32>
    %192 = arith.cmpf ogt, %148, %191 : vector<1x40xf32>
    %193 = arith.extui %192 : vector<1x40xi1> to vector<1x40xi32>
    %194 = arith.sitofp %193 : vector<1x40xi32> to vector<1x40xf32>
    %195 = vector.broadcast %194 : vector<1x40xf32> to vector<6x40xf32>
    %196 = arith.mulf %190, %195 : vector<6x40xf32>
    %197 = arith.addf %187, %196 : vector<6x40xf32>
    %198 = vector.extract_strided_slice %150 {offsets = [0, 384], sizes = [6, 40], strides = [1, 1]} : vector<6x1152xf32> to vector<6x40xf32>
    %199 = arith.cmpf olt, %198, %151 : vector<6x40xf32>
    %200 = arith.extui %199 : vector<6x40xi1> to vector<6x40xi32>
    %201 = arith.sitofp %200 : vector<6x40xi32> to vector<6x40xf32>
    %202 = arith.addf %197, %201 : vector<6x40xf32>
    %203 = arith.cmpf oeq, %198, %151 : vector<6x40xf32>
    %204 = arith.extui %203 : vector<6x40xi1> to vector<6x40xi32>
    %205 = arith.sitofp %204 : vector<6x40xi32> to vector<6x40xf32>
    %cst_81 = arith.constant 3.000000e+00 : f32
    %206 = vector.broadcast %cst_81 : f32 to vector<1x40xf32>
    %207 = arith.cmpf ogt, %148, %206 : vector<1x40xf32>
    %208 = arith.extui %207 : vector<1x40xi1> to vector<1x40xi32>
    %209 = arith.sitofp %208 : vector<1x40xi32> to vector<1x40xf32>
    %210 = vector.broadcast %209 : vector<1x40xf32> to vector<6x40xf32>
    %211 = arith.mulf %205, %210 : vector<6x40xf32>
    %212 = arith.addf %202, %211 : vector<6x40xf32>
    %213 = vector.extract_strided_slice %150 {offsets = [0, 512], sizes = [6, 40], strides = [1, 1]} : vector<6x1152xf32> to vector<6x40xf32>
    %214 = arith.cmpf olt, %213, %151 : vector<6x40xf32>
    %215 = arith.extui %214 : vector<6x40xi1> to vector<6x40xi32>
    %216 = arith.sitofp %215 : vector<6x40xi32> to vector<6x40xf32>
    %217 = arith.addf %212, %216 : vector<6x40xf32>
    %218 = arith.cmpf oeq, %213, %151 : vector<6x40xf32>
    %219 = arith.extui %218 : vector<6x40xi1> to vector<6x40xi32>
    %220 = arith.sitofp %219 : vector<6x40xi32> to vector<6x40xf32>
    %cst_82 = arith.constant 4.000000e+00 : f32
    %221 = vector.broadcast %cst_82 : f32 to vector<1x40xf32>
    %222 = arith.cmpf ogt, %148, %221 : vector<1x40xf32>
    %223 = arith.extui %222 : vector<1x40xi1> to vector<1x40xi32>
    %224 = arith.sitofp %223 : vector<1x40xi32> to vector<1x40xf32>
    %225 = vector.broadcast %224 : vector<1x40xf32> to vector<6x40xf32>
    %226 = arith.mulf %220, %225 : vector<6x40xf32>
    %227 = arith.addf %217, %226 : vector<6x40xf32>
    %228 = vector.extract_strided_slice %150 {offsets = [0, 640], sizes = [6, 40], strides = [1, 1]} : vector<6x1152xf32> to vector<6x40xf32>
    %229 = arith.cmpf olt, %228, %151 : vector<6x40xf32>
    %230 = arith.extui %229 : vector<6x40xi1> to vector<6x40xi32>
    %231 = arith.sitofp %230 : vector<6x40xi32> to vector<6x40xf32>
    %232 = arith.addf %227, %231 : vector<6x40xf32>
    %233 = arith.cmpf oeq, %228, %151 : vector<6x40xf32>
    %234 = arith.extui %233 : vector<6x40xi1> to vector<6x40xi32>
    %235 = arith.sitofp %234 : vector<6x40xi32> to vector<6x40xf32>
    %cst_83 = arith.constant 5.000000e+00 : f32
    %236 = vector.broadcast %cst_83 : f32 to vector<1x40xf32>
    %237 = arith.cmpf ogt, %148, %236 : vector<1x40xf32>
    %238 = arith.extui %237 : vector<1x40xi1> to vector<1x40xi32>
    %239 = arith.sitofp %238 : vector<1x40xi32> to vector<1x40xf32>
    %240 = vector.broadcast %239 : vector<1x40xf32> to vector<6x40xf32>
    %241 = arith.mulf %235, %240 : vector<6x40xf32>
    %242 = arith.addf %232, %241 : vector<6x40xf32>
    %243 = vector.extract_strided_slice %150 {offsets = [0, 768], sizes = [6, 40], strides = [1, 1]} : vector<6x1152xf32> to vector<6x40xf32>
    %244 = arith.cmpf olt, %243, %151 : vector<6x40xf32>
    %245 = arith.extui %244 : vector<6x40xi1> to vector<6x40xi32>
    %246 = arith.sitofp %245 : vector<6x40xi32> to vector<6x40xf32>
    %247 = arith.addf %242, %246 : vector<6x40xf32>
    %248 = arith.cmpf oeq, %243, %151 : vector<6x40xf32>
    %249 = arith.extui %248 : vector<6x40xi1> to vector<6x40xi32>
    %250 = arith.sitofp %249 : vector<6x40xi32> to vector<6x40xf32>
    %cst_84 = arith.constant 6.000000e+00 : f32
    %251 = vector.broadcast %cst_84 : f32 to vector<1x40xf32>
    %252 = arith.cmpf ogt, %148, %251 : vector<1x40xf32>
    %253 = arith.extui %252 : vector<1x40xi1> to vector<1x40xi32>
    %254 = arith.sitofp %253 : vector<1x40xi32> to vector<1x40xf32>
    %255 = vector.broadcast %254 : vector<1x40xf32> to vector<6x40xf32>
    %256 = arith.mulf %250, %255 : vector<6x40xf32>
    %257 = arith.addf %247, %256 : vector<6x40xf32>
    %258 = vector.extract_strided_slice %150 {offsets = [0, 896], sizes = [6, 40], strides = [1, 1]} : vector<6x1152xf32> to vector<6x40xf32>
    %259 = arith.cmpf olt, %258, %151 : vector<6x40xf32>
    %260 = arith.extui %259 : vector<6x40xi1> to vector<6x40xi32>
    %261 = arith.sitofp %260 : vector<6x40xi32> to vector<6x40xf32>
    %262 = arith.addf %257, %261 : vector<6x40xf32>
    %263 = arith.cmpf oeq, %258, %151 : vector<6x40xf32>
    %264 = arith.extui %263 : vector<6x40xi1> to vector<6x40xi32>
    %265 = arith.sitofp %264 : vector<6x40xi32> to vector<6x40xf32>
    %cst_85 = arith.constant 7.000000e+00 : f32
    %266 = vector.broadcast %cst_85 : f32 to vector<1x40xf32>
    %267 = arith.cmpf ogt, %148, %266 : vector<1x40xf32>
    %268 = arith.extui %267 : vector<1x40xi1> to vector<1x40xi32>
    %269 = arith.sitofp %268 : vector<1x40xi32> to vector<1x40xf32>
    %270 = vector.broadcast %269 : vector<1x40xf32> to vector<6x40xf32>
    %271 = arith.mulf %265, %270 : vector<6x40xf32>
    %272 = arith.addf %262, %271 : vector<6x40xf32>
    %c0_86 = arith.constant 0 : index
    %c0_87 = arith.constant 0 : index
    %273 = vector.load %arg23[%c0_86, %c0_87] : memref<40x1152xf32, #tpu.memory_space<vmem>>, vector<40x1152xf32>
    %cst_88 = arith.constant dense<0.000000e+00> : vector<6x1152xf32>
    %274 = tpu.matmul %272, %273, %cst_88 {dimension_numbers = #tpu.dot_dimension_numbers<[1], [0], [0], [1], [0, 0, 1, 1], [], []>} : vector<6x40xf32>, vector<40x1152xf32>, vector<6x1152xf32> -> vector<6x1152xf32>
    %cst_89 = arith.constant 0.000000e+00 : f32
    %275 = vector.broadcast %cst_89 : f32 to vector<6x40xf32>
    %276 = vector.extract_strided_slice %150 {offsets = [0, 0], sizes = [6, 40], strides = [1, 1]} : vector<6x1152xf32> to vector<6x40xf32>
    %277 = vector.extract_strided_slice %274 {offsets = [0, 0], sizes = [6, 40], strides = [1, 1]} : vector<6x1152xf32> to vector<6x40xf32>
    %278 = vector.broadcast %148 : vector<1x40xf32> to vector<6x40xf32>
    %279 = arith.cmpf oeq, %277, %278 : vector<6x40xf32>
    %cst_90 = arith.constant 0.000000e+00 : f32
    %280 = vector.broadcast %cst_90 : f32 to vector<6x40xf32>
    %281 = arith.select %279, %276, %280 : vector<6x40xi1>, vector<6x40xf32>
    %282 = arith.addf %275, %281 : vector<6x40xf32>
    %283 = vector.extract_strided_slice %150 {offsets = [0, 128], sizes = [6, 40], strides = [1, 1]} : vector<6x1152xf32> to vector<6x40xf32>
    %284 = vector.extract_strided_slice %274 {offsets = [0, 128], sizes = [6, 40], strides = [1, 1]} : vector<6x1152xf32> to vector<6x40xf32>
    %285 = vector.broadcast %148 : vector<1x40xf32> to vector<6x40xf32>
    %286 = arith.cmpf oeq, %284, %285 : vector<6x40xf32>
    %cst_91 = arith.constant 0.000000e+00 : f32
    %287 = vector.broadcast %cst_91 : f32 to vector<6x40xf32>
    %288 = arith.select %286, %283, %287 : vector<6x40xi1>, vector<6x40xf32>
    %289 = arith.addf %282, %288 : vector<6x40xf32>
    %290 = vector.extract_strided_slice %150 {offsets = [0, 256], sizes = [6, 40], strides = [1, 1]} : vector<6x1152xf32> to vector<6x40xf32>
    %291 = vector.extract_strided_slice %274 {offsets = [0, 256], sizes = [6, 40], strides = [1, 1]} : vector<6x1152xf32> to vector<6x40xf32>
    %292 = vector.broadcast %148 : vector<1x40xf32> to vector<6x40xf32>
    %293 = arith.cmpf oeq, %291, %292 : vector<6x40xf32>
    %cst_92 = arith.constant 0.000000e+00 : f32
    %294 = vector.broadcast %cst_92 : f32 to vector<6x40xf32>
    %295 = arith.select %293, %290, %294 : vector<6x40xi1>, vector<6x40xf32>
    %296 = arith.addf %289, %295 : vector<6x40xf32>
    %297 = vector.extract_strided_slice %150 {offsets = [0, 384], sizes = [6, 40], strides = [1, 1]} : vector<6x1152xf32> to vector<6x40xf32>
    %298 = vector.extract_strided_slice %274 {offsets = [0, 384], sizes = [6, 40], strides = [1, 1]} : vector<6x1152xf32> to vector<6x40xf32>
    %299 = vector.broadcast %148 : vector<1x40xf32> to vector<6x40xf32>
    %300 = arith.cmpf oeq, %298, %299 : vector<6x40xf32>
    %cst_93 = arith.constant 0.000000e+00 : f32
    %301 = vector.broadcast %cst_93 : f32 to vector<6x40xf32>
    %302 = arith.select %300, %297, %301 : vector<6x40xi1>, vector<6x40xf32>
    %303 = arith.addf %296, %302 : vector<6x40xf32>
    %304 = vector.extract_strided_slice %150 {offsets = [0, 512], sizes = [6, 40], strides = [1, 1]} : vector<6x1152xf32> to vector<6x40xf32>
    %305 = vector.extract_strided_slice %274 {offsets = [0, 512], sizes = [6, 40], strides = [1, 1]} : vector<6x1152xf32> to vector<6x40xf32>
    %306 = vector.broadcast %148 : vector<1x40xf32> to vector<6x40xf32>
    %307 = arith.cmpf oeq, %305, %306 : vector<6x40xf32>
    %cst_94 = arith.constant 0.000000e+00 : f32
    %308 = vector.broadcast %cst_94 : f32 to vector<6x40xf32>
    %309 = arith.select %307, %304, %308 : vector<6x40xi1>, vector<6x40xf32>
    %310 = arith.addf %303, %309 : vector<6x40xf32>
    %311 = vector.extract_strided_slice %150 {offsets = [0, 640], sizes = [6, 40], strides = [1, 1]} : vector<6x1152xf32> to vector<6x40xf32>
    %312 = vector.extract_strided_slice %274 {offsets = [0, 640], sizes = [6, 40], strides = [1, 1]} : vector<6x1152xf32> to vector<6x40xf32>
    %313 = vector.broadcast %148 : vector<1x40xf32> to vector<6x40xf32>
    %314 = arith.cmpf oeq, %312, %313 : vector<6x40xf32>
    %cst_95 = arith.constant 0.000000e+00 : f32
    %315 = vector.broadcast %cst_95 : f32 to vector<6x40xf32>
    %316 = arith.select %314, %311, %315 : vector<6x40xi1>, vector<6x40xf32>
    %317 = arith.addf %310, %316 : vector<6x40xf32>
    %318 = vector.extract_strided_slice %150 {offsets = [0, 768], sizes = [6, 40], strides = [1, 1]} : vector<6x1152xf32> to vector<6x40xf32>
    %319 = vector.extract_strided_slice %274 {offsets = [0, 768], sizes = [6, 40], strides = [1, 1]} : vector<6x1152xf32> to vector<6x40xf32>
    %320 = vector.broadcast %148 : vector<1x40xf32> to vector<6x40xf32>
    %321 = arith.cmpf oeq, %319, %320 : vector<6x40xf32>
    %cst_96 = arith.constant 0.000000e+00 : f32
    %322 = vector.broadcast %cst_96 : f32 to vector<6x40xf32>
    %323 = arith.select %321, %318, %322 : vector<6x40xi1>, vector<6x40xf32>
    %324 = arith.addf %317, %323 : vector<6x40xf32>
    %325 = vector.extract_strided_slice %150 {offsets = [0, 896], sizes = [6, 40], strides = [1, 1]} : vector<6x1152xf32> to vector<6x40xf32>
    %326 = vector.extract_strided_slice %274 {offsets = [0, 896], sizes = [6, 40], strides = [1, 1]} : vector<6x1152xf32> to vector<6x40xf32>
    %327 = vector.broadcast %148 : vector<1x40xf32> to vector<6x40xf32>
    %328 = arith.cmpf oeq, %326, %327 : vector<6x40xf32>
    %cst_97 = arith.constant 0.000000e+00 : f32
    %329 = vector.broadcast %cst_97 : f32 to vector<6x40xf32>
    %330 = arith.select %328, %325, %329 : vector<6x40xi1>, vector<6x40xf32>
    %331 = arith.addf %324, %330 : vector<6x40xf32>
    %332 = vector.broadcast %148 : vector<1x40xf32> to vector<6x40xf32>
    %333 = vector.broadcast %145 : vector<6x1xf32> to vector<6x40xf32>
    %334 = arith.cmpf ole, %332, %333 : vector<6x40xf32>
    %335 = arith.extui %334 : vector<6x40xi1> to vector<6x40xi32>
    %336 = arith.sitofp %335 : vector<6x40xi32> to vector<6x40xf32>
    %337 = arith.mulf %331, %336 : vector<6x40xf32>
    %c0_98 = arith.constant 0 : index
    %c0_99 = arith.constant 0 : index
    %338 = vector.load %arg24[%c0_98, %c0_99] : memref<40x5xf32, #tpu.memory_space<vmem>>, vector<40x5xf32>
    %cst_100 = arith.constant dense<0.000000e+00> : vector<6x5xf32>
    %339 = tpu.matmul %56, %338, %cst_100 {dimension_numbers = #tpu.dot_dimension_numbers<[1], [0], [0], [1], [0, 0, 1, 1], [], []>} : vector<6x40xf32>, vector<40x5xf32>, vector<6x5xf32> -> vector<6x5xf32>
    %cst_101 = arith.constant 1.250000e-01 : f32
    %340 = vector.broadcast %cst_101 : f32 to vector<6x5xf32>
    %341 = arith.mulf %339, %340 : vector<6x5xf32>
    %342 = vector.broadcast %145 : vector<6x1xf32> to vector<6x40xf32>
    %343 = arith.cmpf ole, %272, %342 : vector<6x40xf32>
    %344 = arith.extui %343 : vector<6x40xi1> to vector<6x40xi32>
    %345 = arith.sitofp %344 : vector<6x40xi32> to vector<6x40xf32>
    %346 = arith.mulf %56, %345 : vector<6x40xf32>
    %c0_102 = arith.constant 0 : index
    %c0_103 = arith.constant 0 : index
    %347 = vector.load %arg24[%c0_102, %c0_103] : memref<40x5xf32, #tpu.memory_space<vmem>>, vector<40x5xf32>
    %cst_104 = arith.constant dense<0.000000e+00> : vector<6x5xf32>
    %348 = tpu.matmul %346, %347, %cst_104 {dimension_numbers = #tpu.dot_dimension_numbers<[1], [0], [0], [1], [0, 0, 1, 1], [], []>} : vector<6x40xf32>, vector<40x5xf32>, vector<6x5xf32> -> vector<6x5xf32>
    %349 = vector.broadcast %147 : vector<6x1xf32> to vector<6x5xf32>
    %350 = arith.mulf %348, %349 : vector<6x5xf32>
    %351 = vector.extract_strided_slice %148 {offsets = [0, 0], sizes = [1, 8], strides = [1, 1]} : vector<1x40xf32> to vector<1x8xf32>
    %352 = vector.broadcast %351 : vector<1x8xf32> to vector<6x8xf32>
    %353 = vector.broadcast %145 : vector<6x1xf32> to vector<6x8xf32>
    %354 = arith.cmpf ole, %352, %353 : vector<6x8xf32>
    %355 = arith.extui %354 : vector<6x8xi1> to vector<6x8xi32>
    %356 = arith.sitofp %355 : vector<6x8xi32> to vector<6x8xf32>
    %c0_105 = arith.constant 0 : index
    %c0_106 = arith.constant 0 : index
    %357 = vector.load %arg26[%c0_105, %c0_106] : memref<6x256xf32, #tpu.memory_space<vmem>>, vector<6x5xf32>
    tpu.vector_store %arg26[%c0_105, %c0_106], %350 {strides = array<i32>} : memref<6x256xf32, #tpu.memory_space<vmem>>, vector<6x5xf32>,
    %c0_107 = arith.constant 0 : index
    %c5 = arith.constant 5 : index
    %358 = vector.load %arg26[%c0_107, %c5] : memref<6x256xf32, #tpu.memory_space<vmem>>, vector<6x5xf32>
    tpu.vector_store %arg26[%c0_107, %c5], %341 {strides = array<i32>} : memref<6x256xf32, #tpu.memory_space<vmem>>, vector<6x5xf32>,
    %c0_108 = arith.constant 0 : index
    %c10 = arith.constant 10 : index
    %359 = vector.load %arg26[%c0_108, %c10] : memref<6x256xf32, #tpu.memory_space<vmem>>, vector<6x40xf32>
    tpu.vector_store %arg26[%c0_108, %c10], %56 {strides = array<i32>} : memref<6x256xf32, #tpu.memory_space<vmem>>, vector<6x40xf32>,
    %c0_109 = arith.constant 0 : index
    %c50 = arith.constant 50 : index
    %360 = vector.load %arg26[%c0_109, %c50] : memref<6x256xf32, #tpu.memory_space<vmem>>, vector<6x4xf32>
    tpu.vector_store %arg26[%c0_109, %c50], %126 {strides = array<i32>} : memref<6x256xf32, #tpu.memory_space<vmem>>, vector<6x4xf32>,
    %c0_110 = arith.constant 0 : index
    %c54 = arith.constant 54 : index
    %361 = vector.load %arg26[%c0_110, %c54] : memref<6x256xf32, #tpu.memory_space<vmem>>, vector<6x32xf32>
    tpu.vector_store %arg26[%c0_110, %c54], %51 {strides = array<i32>} : memref<6x256xf32, #tpu.memory_space<vmem>>, vector<6x32xf32>,
    %c0_111 = arith.constant 0 : index
    %c86 = arith.constant 86 : index
    %362 = vector.load %arg26[%c0_111, %c86] : memref<6x256xf32, #tpu.memory_space<vmem>>, vector<6x32xf32>
    tpu.vector_store %arg26[%c0_111, %c86], %101 {strides = array<i32>} : memref<6x256xf32, #tpu.memory_space<vmem>>, vector<6x32xf32>,
    %c0_112 = arith.constant 0 : index
    %c118 = arith.constant 118 : index
    %363 = vector.load %arg26[%c0_112, %c118] : memref<6x256xf32, #tpu.memory_space<vmem>>, vector<6x40xf32>
    tpu.vector_store %arg26[%c0_112, %c118], %337 {strides = array<i32>} : memref<6x256xf32, #tpu.memory_space<vmem>>, vector<6x40xf32>,
    %c0_113 = arith.constant 0 : index
    %c158 = arith.constant 158 : index
    %364 = vector.load %arg26[%c0_113, %c158] : memref<6x256xf32, #tpu.memory_space<vmem>>, vector<6x8xf32>
    tpu.vector_store %arg26[%c0_113, %c158], %356 {strides = array<i32>} : memref<6x256xf32, #tpu.memory_space<vmem>>, vector<6x8xf32>,
    %cst_114 = arith.constant 0.000000e+00 : f32
    %365 = vector.broadcast %cst_114 : f32 to vector<6x90xf32>
    %c0_115 = arith.constant 0 : index
    %c166 = arith.constant 166 : index
    %366 = vector.load %arg26[%c0_115, %c166] : memref<6x256xf32, #tpu.memory_space<vmem>>, vector<6x90xf32>
    tpu.vector_store %arg26[%c0_115, %c166], %365 {strides = array<i32>} : memref<6x256xf32, #tpu.memory_space<vmem>>, vector<6x90xf32>,
    return
  }
}

</mosaic_0001>

<llo_original>
// kernel: forward.1
$region0: #{forward.1}
  #allocation0 [shape = 'u32[]', space=smem, size = 0x4, offset = 0x4, fixed_abs, tag = 'smem constant byte address 0x4 - core index']
  #allocation1 [shape = 'u32[144,128]{1,0:T(1,128)}', space=vmem, size = 0x12000, scoped, tag = 'internal scratch']
  %s0 = inlined_call_operand.vmem [shape: f32[6,16], index: 0, kind: input, shape index: {}]
  %s1 = inlined_call_operand.hbm [shape: f32[6,16], index: 1, kind: input, shape index: {}]
  %s2 = inlined_call_operand.vmem [shape: f32[6,32], index: 2, kind: input, shape index: {}]
  %s3 = inlined_call_operand.hbm [shape: f32[6,32], index: 3, kind: input, shape index: {}]
  %s4 = inlined_call_operand.vmem [shape: f32[16,32], index: 4, kind: input, shape index: {}]
  %s5 = inlined_call_operand.vmem [shape: f32[1,32], index: 5, kind: input, shape index: {}]
  %s6 = inlined_call_operand.vmem [shape: f32[32,32], index: 6, kind: input, shape index: {}]
  %s7 = inlined_call_operand.hbm [shape: f32[1,32], index: 7, kind: input, shape index: {}]
  %s8 = inlined_call_operand.vmem [shape: f32[32,96], index: 8, kind: input, shape index: {}]
  %s9 = inlined_call_operand.hbm [shape: f32[1,96], index: 9, kind: input, shape index: {}]
  %s10 = inlined_call_operand.hbm [shape: f32[32,96], index: 10, kind: input, shape index: {}]
  %s11 = inlined_call_operand.hbm [shape: f32[1,96], index: 11, kind: input, shape index: {}]
  %s12 = inlined_call_operand.vmem [shape: f32[32,40], index: 12, kind: input, shape index: {}]
  %s13 = inlined_call_operand.vmem [shape: f32[1,40], index: 13, kind: input, shape index: {}]
  %s14 = inlined_call_operand.vmem [shape: f32[16,32], index: 14, kind: input, shape index: {}]
  %s15 = inlined_call_operand.hbm [shape: f32[1,32], index: 15, kind: input, shape index: {}]
  %s16 = inlined_call_operand.hbm [shape: f32[32,96], index: 16, kind: input, shape index: {}]
  %s17 = inlined_call_operand.hbm [shape: f32[1,96], index: 17, kind: input, shape index: {}]
  %s18 = inlined_call_operand.hbm [shape: f32[32,96], index: 18, kind: input, shape index: {}]
  %s19 = inlined_call_operand.hbm [shape: f32[1,96], index: 19, kind: input, shape index: {}]
  %s20 = inlined_call_operand.vmem [shape: f32[40,3], index: 20, kind: input, shape index: {}]
  %s21 = inlined_call_operand.vmem [shape: f32[32,12], index: 21, kind: input, shape index: {}]
  %s22 = inlined_call_operand.vmem [shape: f32[1,12], index: 22, kind: input, shape index: {}]
  %s23 = inlined_call_operand.hbm [shape: f32[40,1152], index: 23, kind: input, shape index: {}]
  %s24 = inlined_call_operand.vmem [shape: f32[40,5], index: 24, kind: input, shape index: {}]
  %s25 = inlined_call_operand.vmem [shape: f32[1,40], index: 25, kind: input, shape index: {}]
  %s26 = inlined_call_operand.vmem [shape: f32[6,256], index: 26, kind: output, shape index: {}]
  %s27 = sld [smem:[#allocation0]]
  $region162: #{forward.1} parent=0
    _
  %s29 = ssub.s32 1, %s27
  %s30 = scalar_select 0, %s29, %s27
  $region1: #{forward.1} parent=0
    #allocation2 [shape = 'u8[4096]{0}', space=vmem, size = 0x1000, scoped, tag = 'input window, operand 1, single buffered']
    #allocation3 [shape = 's32[1]{0}', space=sflag, size = 0x4, scoped, tag = 'scoped memory for forward.1']
    #allocation4 [shape = 'u8[4096]{0}', space=vmem, size = 0x1000, scoped, tag = 'input window, operand 3, single buffered']
    #allocation5 [shape = 's32[1]{0}', space=sflag, size = 0x4, scoped, tag = 'scoped memory for forward.1']
    #allocation6 [shape = 'u8[512]{0}', space=vmem, size = 0x400, scoped, tag = 'input window, operand 7, single buffered']
    #allocation7 [shape = 'u8[512]{0}', space=vmem, size = 0x400, scoped, tag = 'input window, operand 9, single buffered']
    #allocation8 [shape = 's32[1]{0}', space=sflag, size = 0x4, scoped, tag = 'scoped memory for forward.1']
    #allocation9 [shape = 'u8[16384]{0}', space=vmem, size = 0x4000, scoped, tag = 'input window, operand 10, single buffered']
    #allocation10 [shape = 'u8[512]{0}', space=vmem, size = 0x400, scoped, tag = 'input window, operand 11, single buffered']
    #allocation11 [shape = 's32[1]{0}', space=sflag, size = 0x4, scoped, tag = 'scoped memory for forward.1']
    #allocation12 [shape = 'u8[512]{0}', space=vmem, size = 0x400, scoped, tag = 'input window, operand 15, single buffered']
    #allocation13 [shape = 'u8[16384]{0}', space=vmem, size = 0x4000, scoped, tag = 'input window, operand 16, single buffered']
    #allocation14 [shape = 's32[1]{0}', space=sflag, size = 0x4, scoped, tag = 'scoped memory for forward.1']
    #allocation15 [shape = 'u8[512]{0}', space=vmem, size = 0x400, scoped, tag = 'input window, operand 17, single buffered']
    #allocation16 [shape = 'u8[16384]{0}', space=vmem, size = 0x4000, scoped, tag = 'input window, operand 18, single buffered']
    #allocation17 [shape = 's32[1]{0}', space=sflag, size = 0x4, scoped, tag = 'scoped memory for forward.1']
    #allocation18 [shape = 'u8[512]{0}', space=vmem, size = 0x400, scoped, tag = 'input window, operand 19, single buffered']
    #allocation19 [shape = 'u8[184320]{0}', space=vmem, size = 0x2d000, scoped, tag = 'input window, operand 23, single buffered']
    #allocation20 [shape = 's32[1]{0}', space=sflag, size = 0x4, scoped, tag = 'scoped memory for forward.1']
    %31 = vsyncpa [#allocation3], 0
    %32 = vsyncpa [#allocation5], 0
    %33 = vsyncpa [#allocation8], 0
    %34 = vsyncpa [#allocation11], 0
    %35 = vsyncpa [#allocation14], 0
    %36 = vsyncpa [#allocation17], 0
    %37 = vsyncpa [#allocation20], 0
    // Predicated region
    $region2: #{forward.1} parent=1 // pred_check
      _
    $region3: #{forward.1} parent=1 // pred_check_branch
      %39 = sbr.rel (0) target = $region5
    $region4: #{forward.1} parent=1 // pred_region
      _
    $region5: #{forward.1} parent=1 // pred_fallthru
      _
    // Predicated region
    $region6: #{forward.1} parent=1 // pred_check
      _
    $region7: #{forward.1} parent=1 // pred_check_branch
      %41 = sbr.rel (0) target = $region9
    $region8: #{forward.1} parent=1 // pred_region
      %s43 = ssub.s32 128, 128
      %44 = vsyncadd [#allocation3], %s43
      %s46 = sshll.u32 [#allocation2], 4
      %s47 = int_to_ptr.vmem [resolvable:$true] %s46
      %49 = dma.hbm_to_vmem [thread:$0]  %s1, 128, %s47, [#allocation3]
    $region9: #{forward.1} parent=1 // pred_fallthru
      _
    // Predicated region
    $region10: #{forward.1} parent=1 // pred_check
      _
    $region11: #{forward.1} parent=1 // pred_check_branch
      %51 = sbr.rel (0) target = $region13
    $region12: #{forward.1} parent=1 // pred_region
      _
    $region13: #{forward.1} parent=1 // pred_fallthru
      _
    // Predicated region
    $region14: #{forward.1} parent=1 // pred_check
      _
    $region15: #{forward.1} parent=1 // pred_check_branch
      %53 = sbr.rel (0) target = $region17
    $region16: #{forward.1} parent=1 // pred_region
      %s55 = ssub.s32 128, 128
      %56 = vsyncadd [#allocation5], %s55
      %s58 = sshll.u32 [#allocation4], 4
      %s59 = int_to_ptr.vmem [resolvable:$true] %s58
      %61 = dma.hbm_to_vmem [thread:$0]  %s3, 128, %s59, [#allocation5]
    $region17: #{forward.1} parent=1 // pred_fallthru
      _
    // Predicated region
    $region18: #{forward.1} parent=1 // pred_check
      _
    $region19: #{forward.1} parent=1 // pred_check_branch
      %63 = sbr.rel (0) target = $region21
    $region20: #{forward.1} parent=1 // pred_region
      _
    $region21: #{forward.1} parent=1 // pred_fallthru
      _
    // Predicated region
    $region22: #{forward.1} parent=1 // pred_check
      _
    $region23: #{forward.1} parent=1 // pred_check_branch
      %65 = sbr.rel (0) target = $region25
    $region24: #{forward.1} parent=1 // pred_region
      _
    $region25: #{forward.1} parent=1 // pred_fallthru
      _
    // Predicated region
    $region26: #{forward.1} parent=1 // pred_check
      _
    $region27: #{forward.1} parent=1 // pred_check_branch
      %67 = sbr.rel (0) target = $region29
    $region28: #{forward.1} parent=1 // pred_region
      _
    $region29: #{forward.1} parent=1 // pred_fallthru
      _
    // Predicated region
    $region30: #{forward.1} parent=1 // pred_check
      _
    $region31: #{forward.1} parent=1 // pred_check_branch
      %69 = sbr.rel (0) target = $region33
    $region32: #{forward.1} parent=1 // pred_region
      %s71 = ssub.s32 16, 16
      %72 = vsyncadd [#allocation5], %s71
      %s74 = sshll.u32 [#allocation6], 4
      %s75 = int_to_ptr.vmem [resolvable:$true] %s74
      %77 = dma.hbm_to_vmem [thread:$0]  %s7, 16, %s75, [#allocation5]
    $region33: #{forward.1} parent=1 // pred_fallthru
      _
    // Predicated region
    $region34: #{forward.1} parent=1 // pred_check
      _
    $region35: #{forward.1} parent=1 // pred_check_branch
      %79 = sbr.rel (0) target = $region37
    $region36: #{forward.1} parent=1 // pred_region
      _
    $region37: #{forward.1} parent=1 // pred_fallthru
      _
    // Predicated region
    $region38: #{forward.1} parent=1 // pred_check
      _
    $region39: #{forward.1} parent=1 // pred_check_branch
      %81 = sbr.rel (0) target = $region41
    $region40: #{forward.1} parent=1 // pred_region
      %s83 = ssub.s32 16, 16
      %84 = vsyncadd [#allocation8], %s83
      %s86 = sshll.u32 [#allocation7], 4
      %s87 = int_to_ptr.vmem [resolvable:$true] %s86
      %89 = dma.hbm_to_vmem [thread:$0]  %s9, 16, %s87, [#allocation8]
    $region41: #{forward.1} parent=1 // pred_fallthru
      _
    // Predicated region
    $region42: #{forward.1} parent=1 // pred_check
      _
    $region43: #{forward.1} parent=1 // pred_check_branch
      %91 = sbr.rel (0) target = $region45
    $region44: #{forward.1} parent=1 // pred_region
      %s93 = ssub.s32 512, 512
      %94 = vsyncadd [#allocation8], %s93
      %s95 = sshll.u32 [#allocation9], 4
      %s96 = int_to_ptr.vmem [resolvable:$true] %s95
      %101 = dma.hbm_to_vmem [thread:$0]  %s10, 512, %s96, [#allocation8], 128, 128, 8
    $region45: #{forward.1} parent=1 // pred_fallthru
      _
    // Predicated region
    $region46: #{forward.1} parent=1 // pred_check
      _
    $region47: #{forward.1} parent=1 // pred_check_branch
      %103 = sbr.rel (0) target = $region49
    $region48: #{forward.1} parent=1 // pred_region
      %s105 = ssub.s32 16, 16
      %106 = vsyncadd [#allocation11], %s105
      %s108 = sshll.u32 [#allocation10], 4
      %s109 = int_to_ptr.vmem [resolvable:$true] %s108
      %111 = dma.hbm_to_vmem [thread:$0]  %s11, 16, %s109, [#allocation11]
    $region49: #{forward.1} parent=1 // pred_fallthru
      _
    // Predicated region
    $region50: #{forward.1} parent=1 // pred_check
      _
    $region51: #{forward.1} parent=1 // pred_check_branch
      %113 = sbr.rel (0) target = $region53
    $region52: #{forward.1} parent=1 // pred_region
      _
    $region53: #{forward.1} parent=1 // pred_fallthru
      _
    // Predicated region
    $region54: #{forward.1} parent=1 // pred_check
      _
    $region55: #{forward.1} parent=1 // pred_check_branch
      %115 = sbr.rel (0) target = $region57
    $region56: #{forward.1} parent=1 // pred_region
      _
    $region57: #{forward.1} parent=1 // pred_fallthru
      _
    // Predicated region
    $region58: #{forward.1} parent=1 // pred_check
      _
    $region59: #{forward.1} parent=1 // pred_check_branch
      %117 = sbr.rel (0) target = $region61
    $region60: #{forward.1} parent=1 // pred_region
      _
    $region61: #{forward.1} parent=1 // pred_fallthru
      _
    // Predicated region
    $region62: #{forward.1} parent=1 // pred_check
      _
    $region63: #{forward.1} parent=1 // pred_check_branch
      %119 = sbr.rel (0) target = $region65
    $region64: #{forward.1} parent=1 // pred_region
      %s121 = ssub.s32 16, 16
      %122 = vsyncadd [#allocation11], %s121
      %s124 = sshll.u32 [#allocation12], 4
      %s125 = int_to_ptr.vmem [resolvable:$true] %s124
      %127 = dma.hbm_to_vmem [thread:$0]  %s15, 16, %s125, [#allocation11]
    $region65: #{forward.1} parent=1 // pred_fallthru
      _
    // Predicated region
    $region66: #{forward.1} parent=1 // pred_check
      _
    $region67: #{forward.1} parent=1 // pred_check_branch
      %129 = sbr.rel (0) target = $region69
    $region68: #{forward.1} parent=1 // pred_region
      %s131 = ssub.s32 512, 512
      %132 = vsyncadd [#allocation14], %s131
      %s133 = sshll.u32 [#allocation13], 4
      %s134 = int_to_ptr.vmem [resolvable:$true] %s133
      %139 = dma.hbm_to_vmem [thread:$0]  %s16, 512, %s134, [#allocation14], 128, 128, 8
    $region69: #{forward.1} parent=1 // pred_fallthru
      _
    // Predicated region
    $region70: #{forward.1} parent=1 // pred_check
      _
    $region71: #{forward.1} parent=1 // pred_check_branch
      %141 = sbr.rel (0) target = $region73
    $region72: #{forward.1} parent=1 // pred_region
      %s143 = ssub.s32 16, 16
      %144 = vsyncadd [#allocation14], %s143
      %s146 = sshll.u32 [#allocation15], 4
      %s147 = int_to_ptr.vmem [resolvable:$true] %s146
      %149 = dma.hbm_to_vmem [thread:$0]  %s17, 16, %s147, [#allocation14]
    $region73: #{forward.1} parent=1 // pred_fallthru
      _
    // Predicated region
    $region74: #{forward.1} parent=1 // pred_check
      _
    $region75: #{forward.1} parent=1 // pred_check_branch
      %151 = sbr.rel (0) target = $region77
    $region76: #{forward.1} parent=1 // pred_region
      %s153 = ssub.s32 512, 512
      %154 = vsyncadd [#allocation17], %s153
      %s155 = sshll.u32 [#allocation16], 4
      %s156 = int_to_ptr.vmem [resolvable:$true] %s155
      %161 = dma.hbm_to_vmem [thread:$0]  %s18, 512, %s156, [#allocation17], 128, 128, 8
    $region77: #{forward.1} parent=1 // pred_fallthru
      _
    // Predicated region
    $region78: #{forward.1} parent=1 // pred_check
      _
    $region79: #{forward.1} parent=1 // pred_check_branch
      %163 = sbr.rel (0) target = $region81
    $region80: #{forward.1} parent=1 // pred_region
      %s165 = ssub.s32 16, 16
      %166 = vsyncadd [#allocation17], %s165
      %s168 = sshll.u32 [#allocation18], 4
      %s169 = int_to_ptr.vmem [resolvable:$true] %s168
      %171 = dma.hbm_to_vmem [thread:$0]  %s19, 16, %s169, [#allocation17]
    $region81: #{forward.1} parent=1 // pred_fallthru
      _
    // Predicated region
    $region82: #{forward.1} parent=1 // pred_check
      _
    $region83: #{forward.1} parent=1 // pred_check_branch
      %173 = sbr.rel (0) target = $region85
    $region84: #{forward.1} parent=1 // pred_region
      _
    $region85: #{forward.1} parent=1 // pred_fallthru
      _
    // Predicated region
    $region86: #{forward.1} parent=1 // pred_check
      _
    $region87: #{forward.1} parent=1 // pred_check_branch
      %175 = sbr.rel (0) target = $region89
    $region88: #{forward.1} parent=1 // pred_region
      _
    $region89: #{forward.1} parent=1 // pred_fallthru
      _
    // Predicated region
    $region90: #{forward.1} parent=1 // pred_check
      _
    $region91: #{forward.1} parent=1 // pred_check_branch
      %177 = sbr.rel (0) target = $region93
    $region92: #{forward.1} parent=1 // pred_region
      _
    $region93: #{forward.1} parent=1 // pred_fallthru
      _
    // Predicated region
    $region94: #{forward.1} parent=1 // pred_check
      _
    $region95: #{forward.1} parent=1 // pred_check_branch
      %179 = sbr.rel (0) target = $region97
    $region96: #{forward.1} parent=1 // pred_region
      %s181 = ssub.s32 5760, 5760
      %182 = vsyncadd [#allocation20], %s181
      %s183 = sshll.u32 [#allocation19], 4
      %s184 = int_to_ptr.vmem [resolvable:$true] %s183
      %189 = dma.hbm_to_vmem [thread:$0]  %s23, 5760, %s184, [#allocation20], 1152, 1152, 72
    $region97: #{forward.1} parent=1 // pred_fallthru
      _
    // Predicated region
    $region98: #{forward.1} parent=1 // pred_check
      _
    $region99: #{forward.1} parent=1 // pred_check_branch
      %191 = sbr.rel (0) target = $region101
    $region100: #{forward.1} parent=1 // pred_region
      _
    $region101: #{forward.1} parent=1 // pred_fallthru
      _
    // Predicated region
    $region102: #{forward.1} parent=1 // pred_check
      _
    $region103: #{forward.1} parent=1 // pred_check_branch
      %193 = sbr.rel (0) target = $region105
    $region104: #{forward.1} parent=1 // pred_region
      _
    $region105: #{forward.1} parent=1 // pred_fallthru
      _
    // Predicated region
    $region106: #{forward.1} parent=1 // pred_check
      _
    $region107: #{forward.1} parent=1 // pred_check_branch
      %195 = sbr.rel (0) target = $region109
    $region108: #{forward.1} parent=1 // pred_region
      %196 = dma.done [#allocation3], 128
    $region109: #{forward.1} parent=1 // pred_fallthru
      _
    // Predicated region
    $region110: #{forward.1} parent=1 // pred_check
      _
    $region111: #{forward.1} parent=1 // pred_check_branch
      %198 = sbr.rel (0) target = $region113
    $region112: #{forward.1} parent=1 // pred_region
      %199 = dma.done [#allocation5], 128
    $region113: #{forward.1} parent=1 // pred_fallthru
      _
    // Predicated region
    $region114: #{forward.1} parent=1 // pred_check
      _
    $region115: #{forward.1} parent=1 // pred_check_branch
      %201 = sbr.rel (0) target = $region117
    $region116: #{forward.1} parent=1 // pred_region
      %202 = dma.done [#allocation5], 16
    $region117: #{forward.1} parent=1 // pred_fallthru
      _
    // Predicated region
    $region118: #{forward.1} parent=1 // pred_check
      _
    $region119: #{forward.1} parent=1 // pred_check_branch
      %204 = sbr.rel (0) target = $region121
    $region120: #{forward.1} parent=1 // pred_region
      %205 = dma.done [#allocation8], 16
    $region121: #{forward.1} parent=1 // pred_fallthru
      _
    // Predicated region
    $region122: #{forward.1} parent=1 // pred_check
      _
    $region123: #{forward.1} parent=1 // pred_check_branch
      %207 = sbr.rel (0) target = $region125
    $region124: #{forward.1} parent=1 // pred_region
      %208 = dma.done [#allocation8], 512
    $region125: #{forward.1} parent=1 // pred_fallthru
      _
    // Predicated region
    $region126: #{forward.1} parent=1 // pred_check
      _
    $region127: #{forward.1} parent=1 // pred_check_branch
      %210 = sbr.rel (0) target = $region129
    $region128: #{forward.1} parent=1 // pred_region
      %211 = dma.done [#allocation11], 16
    $region129: #{forward.1} parent=1 // pred_fallthru
      _
    // Predicated region
    $region130: #{forward.1} parent=1 // pred_check
      _
    $region131: #{forward.1} parent=1 // pred_check_branch
      %213 = sbr.rel (0) target = $region133
    $region132: #{forward.1} parent=1 // pred_region
      %214 = dma.done [#allocation11], 16
    $region133: #{forward.1} parent=1 // pred_fallthru
      _
    // Predicated region
    $region134: #{forward.1} parent=1 // pred_check
      _
    $region135: #{forward.1} parent=1 // pred_check_branch
      %216 = sbr.rel (0) target = $region137
    $region136: #{forward.1} parent=1 // pred_region
      %217 = dma.done [#allocation14], 512
    $region137: #{forward.1} parent=1 // pred_fallthru
      _
    // Predicated region
    $region138: #{forward.1} parent=1 // pred_check
      _
    $region139: #{forward.1} parent=1 // pred_check_branch
      %219 = sbr.rel (0) target = $region141
    $region140: #{forward.1} parent=1 // pred_region
      %220 = dma.done [#allocation14], 16
    $region141: #{forward.1} parent=1 // pred_fallthru
      _
    // Predicated region
    $region142: #{forward.1} parent=1 // pred_check
      _
    $region143: #{forward.1} parent=1 // pred_check_branch
      %222 = sbr.rel (0) target = $region145
    $region144: #{forward.1} parent=1 // pred_region
      %223 = dma.done [#allocation17], 512
    $region145: #{forward.1} parent=1 // pred_fallthru
      _
    // Predicated region
    $region146: #{forward.1} parent=1 // pred_check
      _
    $region147: #{forward.1} parent=1 // pred_check_branch
      %225 = sbr.rel (0) target = $region149
    $region148: #{forward.1} parent=1 // pred_region
      %226 = dma.done [#allocation17], 16
    $region149: #{forward.1} parent=1 // pred_fallthru
      _
    // Predicated region
    $region150: #{forward.1} parent=1 // pred_check
      _
    $region151: #{forward.1} parent=1 // pred_check_branch
      %228 = sbr.rel (0) target = $region153
    $region152: #{forward.1} parent=1 // pred_region
      %229 = dma.done [#allocation20], 5760
    $region153: #{forward.1} parent=1 // pred_fallthru
      _
    %v230 = vld [vmem:[%s0] sm:$0x3f]
    %v231 = vld [vmem:[%s4] sm:$0xff]
    %v232 = vld [vmem:[%s4 + $0x8] sm:$0xff]
    %v233 = vld [vmem:[%s5] sm:$0x1]
    %v235 = vlaneseq
    %v236 = vshrl.u32 %v235, 7
    %v237 = vsub.s32 0, %v236
    %v238 = vrot.slane %v233, %v237
    %vm240 = vcmask 130048
    %v242 = vsel %vm240, %v230, 0
    %244 = vmatprep.subr.mxu0 0.0
    %245 = vmatpush1.msra.mxu0 %v231
    %246 = vmatprep.subr.mxu0 0.0
    %247 = vmatpush1.msra.mxu0 %v232
    %248 = vmatprep.subr.mxu0 0.0
    %249 = vmatpush1.msra.mxu0 0.0
    %250 = vmatprep.subr.mxu0 0.0
    %251 = vmatpush1.msra.mxu0 0.0
    %252 = vmatprep.subr.mxu0 0.0
    %253 = vmatpush1.msra.mxu0 0.0
    %254 = vmatprep.subr.mxu0 0.0
    %255 = vmatpush1.msra.mxu0 0.0
    %256 = vmatprep.subr.mxu0 0.0
    %257 = vmatpush1.msra.mxu0 0.0
    %258 = vmatprep.subr.mxu0 0.0
    %259 = vmatpush1.msra.mxu0 0.0
    %260 = vmatprep.subr.mxu0 0.0
    %261 = vmatpush1.msra.mxu0 0.0
    %262 = vmatprep.subr.mxu0 0.0
    %263 = vmatpush1.msra.mxu0 0.0
    %264 = vmatprep.subr.mxu0 0.0
    %265 = vmatpush1.msra.mxu0 0.0
    %266 = vmatprep.subr.mxu0 0.0
    %267 = vmatpush1.msra.mxu0 0.0
    %268 = vmatprep.subr.mxu0 0.0
    %269 = vmatpush1.msra.mxu0 0.0
    %270 = vmatprep.subr.mxu0 0.0
    %271 = vmatpush1.msra.mxu0 0.0
    %272 = vmatprep.subr.mxu0 0.0
    %273 = vmatpush1.msra.mxu0 0.0
    %274 = vmatprep.subr.mxu0 0.0
    %275 = vmatpush1.msra.mxu0 0.0
    %276 = vmatprep.subr.mxu0 0.0
    %277 = vmatpush1.msra.mxu0 0.0
    %278 = vmatprep.subr.mxu0 0.0
    %279 = vmatpush1.msra.mxu0 0.0
    %280 = vmatprep.subr.mxu0 0.0
    %281 = vmatpush1.msra.mxu0 0.0
    %282 = vmatprep.subr.mxu0 0.0
    %283 = vmatpush1.msra.mxu0 0.0
    %284 = vmatprep.subr.mxu0 0.0
    %285 = vmatpush1.msra.mxu0 0.0
    %286 = vmatprep.subr.mxu0 0.0
    %287 = vmatpush1.msra.mxu0 0.0
    %288 = vmatprep.subr.mxu0 0.0
    %289 = vmatpush1.msra.mxu0 0.0
    %290 = vmatprep.subr.mxu0 0.0
    %291 = vmatpush1.msra.mxu0 0.0
    %292 = vmatprep.subr.mxu0 0.0
    %293 = vmatpush1.msra.mxu0 0.0
    %294 = vmatprep.subr.mxu0 0.0
    %295 = vmatpush1.msra.mxu0 0.0
    %296 = vmatprep.subr.mxu0 0.0
    %297 = vmatpush1.msra.mxu0 0.0
    %298 = vmatprep.subr.mxu0 0.0
    %299 = vmatpush1.msra.mxu0 0.0
    %300 = vmatprep.subr.mxu0 0.0
    %301 = vmatpush1.msra.mxu0 0.0
    %302 = vmatprep.subr.mxu0 0.0
    %303 = vmatpush1.msra.mxu0 0.0
    %304 = vmatprep.subr.mxu0 0.0
    %305 = vmatpush1.msra.mxu0 0.0
    %306 = vmatprep.subr.mxu0 0.0
    %307 = vmatpush1.msra.mxu0 0.0
    %308 = vmatprep.mubr.f32.mxu0 0.0
    %309 = vmatmul.mubr.f32.gmra.mrb[0].mxu0 %v242
    %v310 = vpop.f32.mrb[0].mxu0
    %v311 = vadd.f32 %v238, %v310
    %v312 = vpop.f32.mrb[0].mxu0
    %313 = vdwg.mxu0
    %v314 = vmax.f32 %v311, 0.0
    %v315 = vld [vmem:[%s6] sm:$0xff]
    %v316 = vld [vmem:[%s6 + $0x8] sm:$0xff]
    %v317 = vld [vmem:[%s6 + $0x10] sm:$0xff]
    %v318 = vld [vmem:[%s6 + $0x18] sm:$0xff]
    %v319 = vld [vmem:[#allocation6] sm:$0x1]
    %v321 = vlaneseq
    %v322 = vshrl.u32 %v321, 7
    %v323 = vsub.s32 0, %v322
    %v324 = vrot.slane %v319, %v323
    %vm326 = vcmask 261120
    %v328 = vsel %vm326, %v314, 0
    %330 = vmatprep.subr.mxu0 0.0
    %331 = vmatpush1.msra.mxu0 %v315
    %332 = vmatprep.subr.mxu0 0.0
    %333 = vmatpush1.msra.mxu0 %v316
    %334 = vmatprep.subr.mxu0 0.0
    %335 = vmatpush1.msra.mxu0 %v317
    %336 = vmatprep.subr.mxu0 0.0
    %337 = vmatpush1.msra.mxu0 %v318
    %338 = vmatprep.subr.mxu0 0.0
    %339 = vmatpush1.msra.mxu0 0.0
    %340 = vmatprep.subr.mxu0 0.0
    %341 = vmatpush1.msra.mxu0 0.0
    %342 = vmatprep.subr.mxu0 0.0
    %343 = vmatpush1.msra.mxu0 0.0
    %344 = vmatprep.subr.mxu0 0.0
    %345 = vmatpush1.msra.mxu0 0.0
    %346 = vmatprep.subr.mxu0 0.0
    %347 = vmatpush1.msra.mxu0 0.0
    %348 = vmatprep.subr.mxu0 0.0
    %349 = vmatpush1.msra.mxu0 0.0
    %350 = vmatprep.subr.mxu0 0.0
    %351 = vmatpush1.msra.mxu0 0.0
    %352 = vmatprep.subr.mxu0 0.0
    %353 = vmatpush1.msra.mxu0 0.0
    %354 = vmatprep.subr.mxu0 0.0
    %355 = vmatpush1.msra.mxu0 0.0
    %356 = vmatprep.subr.mxu0 0.0
    %357 = vmatpush1.msra.mxu0 0.0
    %358 = vmatprep.subr.mxu0 0.0
    %359 = vmatpush1.msra.mxu0 0.0
    %360 = vmatprep.subr.mxu0 0.0
    %361 = vmatpush1.msra.mxu0 0.0
    %362 = vmatprep.subr.mxu0 0.0
    %363 = vmatpush1.msra.mxu0 0.0
    %364 = vmatprep.subr.mxu0 0.0
    %365 = vmatpush1.msra.mxu0 0.0
    %366 = vmatprep.subr.mxu0 0.0
    %367 = vmatpush1.msra.mxu0 0.0
    %368 = vmatprep.subr.mxu0 0.0
    %369 = vmatpush1.msra.mxu0 0.0
    %370 = vmatprep.subr.mxu0 0.0
    %371 = vmatpush1.msra.mxu0 0.0
    %372 = vmatprep.subr.mxu0 0.0
    %373 = vmatpush1.msra.mxu0 0.0
    %374 = vmatprep.subr.mxu0 0.0
    %375 = vmatpush1.msra.mxu0 0.0
    %376 = vmatprep.subr.mxu0 0.0
    %377 = vmatpush1.msra.mxu0 0.0
    %378 = vmatprep.subr.mxu0 0.0
    %379 = vmatpush1.msra.mxu0 0.0
    %380 = vmatprep.subr.mxu0 0.0
    %381 = vmatpush1.msra.mxu0 0.0
    %382 = vmatprep.subr.mxu0 0.0
    %383 = vmatpush1.msra.mxu0 0.0
    %384 = vmatprep.subr.mxu0 0.0
    %385 = vmatpush1.msra.mxu0 0.0
    %386 = vmatprep.subr.mxu0 0.0
    %387 = vmatpush1.msra.mxu0 0.0
    %388 = vmatprep.subr.mxu0 0.0
    %389 = vmatpush1.msra.mxu0 0.0
    %390 = vmatprep.subr.mxu0 0.0
    %391 = vmatpush1.msra.mxu0 0.0
    %392 = vmatprep.subr.mxu0 0.0
    %393 = vmatpush1.msra.mxu0 0.0
    %394 = vmatprep.mubr.f32.mxu0 0.0
    %395 = vmatmul.mubr.f32.gmra.mrb[0].mxu0 %v328
    %v396 = vpop.f32.mrb[0].mxu0
    %v397 = vadd.f32 %v324, %v396
    %v398 = vpop.f32.mrb[0].mxu0
    %399 = vdwg.mxu0
    %v400 = vmax.f32 %v397, 0.0
    %v401 = vld [vmem:[%s2] sm:$0x3f]
    %v402 = vld [vmem:[%s8] sm:$0xff]
    %v403 = vld [vmem:[%s8 + $0x8] sm:$0xff]
    %v404 = vld [vmem:[%s8 + $0x10] sm:$0xff]
    %v405 = vld [vmem:[%s8 + $0x18] sm:$0xff]
    %v406 = vld [vmem:[#allocation7] sm:$0x1]
    %v407 = vld [vmem:[#allocation9] sm:$0xff]
    %v408 = vld [vmem:[#allocation9 + $0x8] sm:$0xff]
    %v409 = vld [vmem:[#allocation9 + $0x10] sm:$0xff]
    %v410 = vld [vmem:[#allocation9 + $0x18] sm:$0xff]
    %v411 = vld [vmem:[#allocation10] sm:$0x1]
    %v413 = vlaneseq
    %v414 = vshrl.u32 %v413, 7
    %v415 = vsub.s32 0, %v414
    %v416 = vrot.slane %v406, %v415
    %v419 = vsel %vm326, %v400, 0
    %421 = vmatprep.subr.mxu0 0.0
    %422 = vmatpush1.msra.mxu0 %v402
    %423 = vmatprep.subr.mxu0 0.0
    %424 = vmatpush1.msra.mxu0 %v403
    %425 = vmatprep.subr.mxu0 0.0
    %426 = vmatpush1.msra.mxu0 %v404
    %427 = vmatprep.subr.mxu0 0.0
    %428 = vmatpush1.msra.mxu0 %v405
    %429 = vmatprep.subr.mxu0 0.0
    %430 = vmatpush1.msra.mxu0 0.0
    %431 = vmatprep.subr.mxu0 0.0
    %432 = vmatpush1.msra.mxu0 0.0
    %433 = vmatprep.subr.mxu0 0.0
    %434 = vmatpush1.msra.mxu0 0.0
    %435 = vmatprep.subr.mxu0 0.0
    %436 = vmatpush1.msra.mxu0 0.0
    %437 = vmatprep.subr.mxu0 0.0
    %438 = vmatpush1.msra.mxu0 0.0
    %439 = vmatprep.subr.mxu0 0.0
    %440 = vmatpush1.msra.mxu0 0.0
    %441 = vmatprep.subr.mxu0 0.0
    %442 = vmatpush1.msra.mxu0 0.0
    %443 = vmatprep.subr.mxu0 0.0
    %444 = vmatpush1.msra.mxu0 0.0
    %445 = vmatprep.subr.mxu0 0.0
    %446 = vmatpush1.msra.mxu0 0.0
    %447 = vmatprep.subr.mxu0 0.0
    %448 = vmatpush1.msra.mxu0 0.0
    %449 = vmatprep.subr.mxu0 0.0
    %450 = vmatpush1.msra.mxu0 0.0
    %451 = vmatprep.subr.mxu0 0.0
    %452 = vmatpush1.msra.mxu0 0.0
    %453 = vmatprep.subr.mxu0 0.0
    %454 = vmatpush1.msra.mxu0 0.0
    %455 = vmatprep.subr.mxu0 0.0
    %456 = vmatpush1.msra.mxu0 0.0
    %457 = vmatprep.subr.mxu0 0.0
    %458 = vmatpush1.msra.mxu0 0.0
    %459 = vmatprep.subr.mxu0 0.0
    %460 = vmatpush1.msra.mxu0 0.0
    %461 = vmatprep.subr.mxu0 0.0
    %462 = vmatpush1.msra.mxu0 0.0
    %463 = vmatprep.subr.mxu0 0.0
    %464 = vmatpush1.msra.mxu0 0.0
    %465 = vmatprep.subr.mxu0 0.0
    %466 = vmatpush1.msra.mxu0 0.0
    %467 = vmatprep.subr.mxu0 0.0
    %468 = vmatpush1.msra.mxu0 0.0
    %469 = vmatprep.subr.mxu0 0.0
    %470 = vmatpush1.msra.mxu0 0.0
    %471 = vmatprep.subr.mxu0 0.0
    %472 = vmatpush1.msra.mxu0 0.0
    %473 = vmatprep.subr.mxu0 0.0
    %474 = vmatpush1.msra.mxu0 0.0
    %475 = vmatprep.subr.mxu0 0.0
    %476 = vmatpush1.msra.mxu0 0.0
    %477 = vmatprep.subr.mxu0 0.0
    %478 = vmatpush1.msra.mxu0 0.0
    %479 = vmatprep.subr.mxu0 0.0
    %480 = vmatpush1.msra.mxu0 0.0
    %481 = vmatprep.subr.mxu0 0.0
    %482 = vmatpush1.msra.mxu0 0.0
    %483 = vmatprep.subr.mxu0 0.0
    %484 = vmatpush1.msra.mxu0 0.0
    %485 = vmatprep.mubr.f32.mxu0 0.0
    %486 = vmatmul.mubr.f32.gmra.mrb[0].mxu0 %v419
    %v487 = vpop.f32.mrb[0].mxu0
    %v488 = vadd.f32 %v416, %v487
    %v489 = vpop.f32.mrb[0].mxu0
    %490 = vdwg.mxu0
    %v492 = vlaneseq
    %v493 = vshrl.u32 %v492, 7
    %v494 = vsub.s32 0, %v493
    %v495 = vrot.slane %v411, %v494
    %v498 = vsel %vm326, %v401, 0
    %500 = vmatprep.subr.mxu0 0.0
    %501 = vmatpush1.msra.mxu0 %v407
    %502 = vmatprep.subr.mxu0 0.0
    %503 = vmatpush1.msra.mxu0 %v408
    %504 = vmatprep.subr.mxu0 0.0
    %505 = vmatpush1.msra.mxu0 %v409
    %506 = vmatprep.subr.mxu0 0.0
    %507 = vmatpush1.msra.mxu0 %v410
    %508 = vmatprep.subr.mxu0 0.0
    %509 = vmatpush1.msra.mxu0 0.0
    %510 = vmatprep.subr.mxu0 0.0
    %511 = vmatpush1.msra.mxu0 0.0
    %512 = vmatprep.subr.mxu0 0.0
    %513 = vmatpush1.msra.mxu0 0.0
    %514 = vmatprep.subr.mxu0 0.0
    %515 = vmatpush1.msra.mxu0 0.0
    %516 = vmatprep.subr.mxu0 0.0
    %517 = vmatpush1.msra.mxu0 0.0
    %518 = vmatprep.subr.mxu0 0.0
    %519 = vmatpush1.msra.mxu0 0.0
    %520 = vmatprep.subr.mxu0 0.0
    %521 = vmatpush1.msra.mxu0 0.0
    %522 = vmatprep.subr.mxu0 0.0
    %523 = vmatpush1.msra.mxu0 0.0
    %524 = vmatprep.subr.mxu0 0.0
    %525 = vmatpush1.msra.mxu0 0.0
    %526 = vmatprep.subr.mxu0 0.0
    %527 = vmatpush1.msra.mxu0 0.0
    %528 = vmatprep.subr.mxu0 0.0
    %529 = vmatpush1.msra.mxu0 0.0
    %530 = vmatprep.subr.mxu0 0.0
    %531 = vmatpush1.msra.mxu0 0.0
    %532 = vmatprep.subr.mxu0 0.0
    %533 = vmatpush1.msra.mxu0 0.0
    %534 = vmatprep.subr.mxu0 0.0
    %535 = vmatpush1.msra.mxu0 0.0
    %536 = vmatprep.subr.mxu0 0.0
    %537 = vmatpush1.msra.mxu0 0.0
    %538 = vmatprep.subr.mxu0 0.0
    %539 = vmatpush1.msra.mxu0 0.0
    %540 = vmatprep.subr.mxu0 0.0
    %541 = vmatpush1.msra.mxu0 0.0
    %542 = vmatprep.subr.mxu0 0.0
    %543 = vmatpush1.msra.mxu0 0.0
    %544 = vmatprep.subr.mxu0 0.0
    %545 = vmatpush1.msra.mxu0 0.0
    %546 = vmatprep.subr.mxu0 0.0
    %547 = vmatpush1.msra.mxu0 0.0
    %548 = vmatprep.subr.mxu0 0.0
    %549 = vmatpush1.msra.mxu0 0.0
    %550 = vmatprep.subr.mxu0 0.0
    %551 = vmatpush1.msra.mxu0 0.0
    %552 = vmatprep.subr.mxu0 0.0
    %553 = vmatpush1.msra.mxu0 0.0
    %554 = vmatprep.subr.mxu0 0.0
    %555 = vmatpush1.msra.mxu0 0.0
    %556 = vmatprep.subr.mxu0 0.0
    %557 = vmatpush1.msra.mxu0 0.0
    %558 = vmatprep.subr.mxu0 0.0
    %559 = vmatpush1.msra.mxu0 0.0
    %560 = vmatprep.subr.mxu0 0.0
    %561 = vmatpush1.msra.mxu0 0.0
    %562 = vmatprep.subr.mxu0 0.0
    %563 = vmatpush1.msra.mxu0 0.0
    %564 = vmatprep.mubr.f32.mxu0 0.0
    %565 = vmatmul.mubr.f32.gmra.mrb[0].mxu0 %v498
    %v566 = vpop.f32.mrb[0].mxu0
    %v567 = vadd.f32 %v495, %v566
    %v568 = vpop.f32.mrb[0].mxu0
    %569 = vdwg.mxu0
    %v570 = vadd.f32 %v488, %v567
    %v571 = vxor.u32 %v570, 2147483648
    %v572 = vmul.f32 %v571, 1.442695
    %v573 = vpow.pop %v572
    %v574 = vadd.f32 %v573, 1.0
    %v575 = vrcp.pop %v574
    %v576 = vmul.f32 1.0, %v575
    %578 = vrot.lane.b32.xlu0 %v567, 64
    %v579 = vpop.permute.xlu0 %578
    %v581 = vmul.f32 %v576, %v579
    %583 = vrot.lane.b32.xlu0 %v581, 64
    %v584 = vpop.permute.xlu0 %583
    %v586 = vadd.f32 %v488, %v584
    %v587 = vtanh.pop %v586
    %v588 = vsub.f32 1.0, %v576
    %590 = vrot.lane.b32.xlu0 %v587, 96
    %v591 = vpop.permute.xlu0 %590
    %v593 = vmul.f32 %v588, %v591
    %594 = vrot.lane.b32.xlu0 %v401, 32
    %v595 = vpop.permute.xlu0 %594
    %v597 = vmul.f32 %v576, %v595
    %v598 = vadd.f32 %v593, %v597
    %v599 = vld [vmem:[%s12] sm:$0xff]
    %v600 = vld [vmem:[%s12 + $0x8] sm:$0xff]
    %v601 = vld [vmem:[%s12 + $0x10] sm:$0xff]
    %v602 = vld [vmem:[%s12 + $0x18] sm:$0xff]
    %v603 = vld [vmem:[%s13] sm:$0x1]
    %v605 = vlaneseq
    %v606 = vshrl.u32 %v605, 7
    %v607 = vsub.s32 0, %v606
    %v608 = vrot.slane %v603, %v607
    %611 = vrot.lane.b32.xlu0 %v598, 96
    %v612 = vpop.permute.xlu0 %611
    %v613 = vsel %vm326, %v612, 0
    %615 = vmatprep.subr.mxu0 0.0
    %616 = vmatpush1.msra.mxu0 %v599
    %617 = vmatprep.subr.mxu0 0.0
    %618 = vmatpush1.msra.mxu0 %v600
    %619 = vmatprep.subr.mxu0 0.0
    %620 = vmatpush1.msra.mxu0 %v601
    %621 = vmatprep.subr.mxu0 0.0
    %622 = vmatpush1.msra.mxu0 %v602
    %623 = vmatprep.subr.mxu0 0.0
    %624 = vmatpush1.msra.mxu0 0.0
    %625 = vmatprep.subr.mxu0 0.0
    %626 = vmatpush1.msra.mxu0 0.0
    %627 = vmatprep.subr.mxu0 0.0
    %628 = vmatpush1.msra.mxu0 0.0
    %629 = vmatprep.subr.mxu0 0.0
    %630 = vmatpush1.msra.mxu0 0.0
    %631 = vmatprep.subr.mxu0 0.0
    %632 = vmatpush1.msra.mxu0 0.0
    %633 = vmatprep.subr.mxu0 0.0
    %634 = vmatpush1.msra.mxu0 0.0
    %635 = vmatprep.subr.mxu0 0.0
    %636 = vmatpush1.msra.mxu0 0.0
    %637 = vmatprep.subr.mxu0 0.0
    %638 = vmatpush1.msra.mxu0 0.0
    %639 = vmatprep.subr.mxu0 0.0
    %640 = vmatpush1.msra.mxu0 0.0
    %641 = vmatprep.subr.mxu0 0.0
    %642 = vmatpush1.msra.mxu0 0.0
    %643 = vmatprep.subr.mxu0 0.0
    %644 = vmatpush1.msra.mxu0 0.0
    %645 = vmatprep.subr.mxu0 0.0
    %646 = vmatpush1.msra.mxu0 0.0
    %647 = vmatprep.subr.mxu0 0.0
    %648 = vmatpush1.msra.mxu0 0.0
    %649 = vmatprep.subr.mxu0 0.0
    %650 = vmatpush1.msra.mxu0 0.0
    %651 = vmatprep.subr.mxu0 0.0
    %652 = vmatpush1.msra.mxu0 0.0
    %653 = vmatprep.subr.mxu0 0.0
    %654 = vmatpush1.msra.mxu0 0.0
    %655 = vmatprep.subr.mxu0 0.0
    %656 = vmatpush1.msra.mxu0 0.0
    %657 = vmatprep.subr.mxu0 0.0
    %658 = vmatpush1.msra.mxu0 0.0
    %659 = vmatprep.subr.mxu0 0.0
    %660 = vmatpush1.msra.mxu0 0.0
    %661 = vmatprep.subr.mxu0 0.0
    %662 = vmatpush1.msra.mxu0 0.0
    %663 = vmatprep.subr.mxu0 0.0
    %664 = vmatpush1.msra.mxu0 0.0
    %665 = vmatprep.subr.mxu0 0.0
    %666 = vmatpush1.msra.mxu0 0.0
    %667 = vmatprep.subr.mxu0 0.0
    %668 = vmatpush1.msra.mxu0 0.0
    %669 = vmatprep.subr.mxu0 0.0
    %670 = vmatpush1.msra.mxu0 0.0
    %671 = vmatprep.subr.mxu0 0.0
    %672 = vmatpush1.msra.mxu0 0.0
    %673 = vmatprep.subr.mxu0 0.0
    %674 = vmatpush1.msra.mxu0 0.0
    %675 = vmatprep.subr.mxu0 0.0
    %676 = vmatpush1.msra.mxu0 0.0
    %677 = vmatprep.subr.mxu0 0.0
    %678 = vmatpush1.msra.mxu0 0.0
    %679 = vmatprep.mubr.f32.mxu0 0.0
    %680 = vmatmul.mubr.f32.gmra.mrb[0].mxu0 %v613
    %v681 = vpop.f32.mrb[0].mxu0
    %v682 = vadd.f32 %v608, %v681
    %v683 = vpop.f32.mrb[0].mxu0
    %684 = vdwg.mxu0
    %v685 = vld [vmem:[#allocation2] sm:$0x3f]
    %v686 = vld [vmem:[%s14] sm:$0xff]
    %v687 = vld [vmem:[%s14 + $0x8] sm:$0xff]
    %v688 = vld [vmem:[#allocation12] sm:$0x1]
    %v690 = vlaneseq
    %v691 = vshrl.u32 %v690, 7
    %v692 = vsub.s32 0, %v691
    %v693 = vrot.slane %v688, %v692
    %v696 = vsel %vm240, %v685, 0
    %698 = vmatprep.subr.mxu0 0.0
    %699 = vmatpush1.msra.mxu0 %v686
    %700 = vmatprep.subr.mxu0 0.0
    %701 = vmatpush1.msra.mxu0 %v687
    %702 = vmatprep.subr.mxu0 0.0
    %703 = vmatpush1.msra.mxu0 0.0
    %704 = vmatprep.subr.mxu0 0.0
    %705 = vmatpush1.msra.mxu0 0.0
    %706 = vmatprep.subr.mxu0 0.0
    %707 = vmatpush1.msra.mxu0 0.0
    %708 = vmatprep.subr.mxu0 0.0
    %709 = vmatpush1.msra.mxu0 0.0
    %710 = vmatprep.subr.mxu0 0.0
    %711 = vmatpush1.msra.mxu0 0.0
    %712 = vmatprep.subr.mxu0 0.0
    %713 = vmatpush1.msra.mxu0 0.0
    %714 = vmatprep.subr.mxu0 0.0
    %715 = vmatpush1.msra.mxu0 0.0
    %716 = vmatprep.subr.mxu0 0.0
    %717 = vmatpush1.msra.mxu0 0.0
    %718 = vmatprep.subr.mxu0 0.0
    %719 = vmatpush1.msra.mxu0 0.0
    %720 = vmatprep.subr.mxu0 0.0
    %721 = vmatpush1.msra.mxu0 0.0
    %722 = vmatprep.subr.mxu0 0.0
    %723 = vmatpush1.msra.mxu0 0.0
    %724 = vmatprep.subr.mxu0 0.0
    %725 = vmatpush1.msra.mxu0 0.0
    %726 = vmatprep.subr.mxu0 0.0
    %727 = vmatpush1.msra.mxu0 0.0
    %728 = vmatprep.subr.mxu0 0.0
    %729 = vmatpush1.msra.mxu0 0.0
    %730 = vmatprep.subr.mxu0 0.0
    %731 = vmatpush1.msra.mxu0 0.0
    %732 = vmatprep.subr.mxu0 0.0
    %733 = vmatpush1.msra.mxu0 0.0
    %734 = vmatprep.subr.mxu0 0.0
    %735 = vmatpush1.msra.mxu0 0.0
    %736 = vmatprep.subr.mxu0 0.0
    %737 = vmatpush1.msra.mxu0 0.0
    %738 = vmatprep.subr.mxu0 0.0
    %739 = vmatpush1.msra.mxu0 0.0
    %740 = vmatprep.subr.mxu0 0.0
    %741 = vmatpush1.msra.mxu0 0.0
    %742 = vmatprep.subr.mxu0 0.0
    %743 = vmatpush1.msra.mxu0 0.0
    %744 = vmatprep.subr.mxu0 0.0
    %745 = vmatpush1.msra.mxu0 0.0
    %746 = vmatprep.subr.mxu0 0.0
    %747 = vmatpush1.msra.mxu0 0.0
    %748 = vmatprep.subr.mxu0 0.0
    %749 = vmatpush1.msra.mxu0 0.0
    %750 = vmatprep.subr.mxu0 0.0
    %751 = vmatpush1.msra.mxu0 0.0
    %752 = vmatprep.subr.mxu0 0.0
    %753 = vmatpush1.msra.mxu0 0.0
    %754 = vmatprep.subr.mxu0 0.0
    %755 = vmatpush1.msra.mxu0 0.0
    %756 = vmatprep.subr.mxu0 0.0
    %757 = vmatpush1.msra.mxu0 0.0
    %758 = vmatprep.subr.mxu0 0.0
    %759 = vmatpush1.msra.mxu0 0.0
    %760 = vmatprep.subr.mxu0 0.0
    %761 = vmatpush1.msra.mxu0 0.0
    %762 = vmatprep.mubr.f32.mxu0 0.0
    %763 = vmatmul.mubr.f32.gmra.mrb[0].mxu0 %v696
    %v764 = vpop.f32.mrb[0].mxu0
    %v765 = vadd.f32 %v693, %v764
    %v766 = vpop.f32.mrb[0].mxu0
    %767 = vdwg.mxu0
    %v768 = vmax.f32 %v765, 0.0
    %v769 = vld [vmem:[#allocation4] sm:$0x3f]
    %v770 = vld [vmem:[#allocation13] sm:$0xff]
    %v771 = vld [vmem:[#allocation13 + $0x8] sm:$0xff]
    %v772 = vld [vmem:[#allocation13 + $0x10] sm:$0xff]
    %v773 = vld [vmem:[#allocation13 + $0x18] sm:$0xff]
    %v774 = vld [vmem:[#allocation15] sm:$0x1]
    %v775 = vld [vmem:[#allocation16] sm:$0xff]
    %v776 = vld [vmem:[#allocation16 + $0x8] sm:$0xff]
    %v777 = vld [vmem:[#allocation16 + $0x10] sm:$0xff]
    %v778 = vld [vmem:[#allocation16 + $0x18] sm:$0xff]
    %v779 = vld [vmem:[#allocation18] sm:$0x1]
    %v781 = vlaneseq
    %v782 = vshrl.u32 %v781, 7
    %v783 = vsub.s32 0, %v782
    %v784 = vrot.slane %v774, %v783
    %v787 = vsel %vm326, %v768, 0
    %789 = vmatprep.subr.mxu0 0.0
    %790 = vmatpush1.msra.mxu0 %v770
    %791 = vmatprep.subr.mxu0 0.0
    %792 = vmatpush1.msra.mxu0 %v771
    %793 = vmatprep.subr.mxu0 0.0
    %794 = vmatpush1.msra.mxu0 %v772
    %795 = vmatprep.subr.mxu0 0.0
    %796 = vmatpush1.msra.mxu0 %v773
    %797 = vmatprep.subr.mxu0 0.0
    %798 = vmatpush1.msra.mxu0 0.0
    %799 = vmatprep.subr.mxu0 0.0
    %800 = vmatpush1.msra.mxu0 0.0
    %801 = vmatprep.subr.mxu0 0.0
    %802 = vmatpush1.msra.mxu0 0.0
    %803 = vmatprep.subr.mxu0 0.0
    %804 = vmatpush1.msra.mxu0 0.0
    %805 = vmatprep.subr.mxu0 0.0
    %806 = vmatpush1.msra.mxu0 0.0
    %807 = vmatprep.subr.mxu0 0.0
    %808 = vmatpush1.msra.mxu0 0.0
    %809 = vmatprep.subr.mxu0 0.0
    %810 = vmatpush1.msra.mxu0 0.0
    %811 = vmatprep.subr.mxu0 0.0
    %812 = vmatpush1.msra.mxu0 0.0
    %813 = vmatprep.subr.mxu0 0.0
    %814 = vmatpush1.msra.mxu0 0.0
    %815 = vmatprep.subr.mxu0 0.0
    %816 = vmatpush1.msra.mxu0 0.0
    %817 = vmatprep.subr.mxu0 0.0
    %818 = vmatpush1.msra.mxu0 0.0
    %819 = vmatprep.subr.mxu0 0.0
    %820 = vmatpush1.msra.mxu0 0.0
    %821 = vmatprep.subr.mxu0 0.0
    %822 = vmatpush1.msra.mxu0 0.0
    %823 = vmatprep.subr.mxu0 0.0
    %824 = vmatpush1.msra.mxu0 0.0
    %825 = vmatprep.subr.mxu0 0.0
    %826 = vmatpush1.msra.mxu0 0.0
    %827 = vmatprep.subr.mxu0 0.0
    %828 = vmatpush1.msra.mxu0 0.0
    %829 = vmatprep.subr.mxu0 0.0
    %830 = vmatpush1.msra.mxu0 0.0
    %831 = vmatprep.subr.mxu0 0.0
    %832 = vmatpush1.msra.mxu0 0.0
    %833 = vmatprep.subr.mxu0 0.0
    %834 = vmatpush1.msra.mxu0 0.0
    %835 = vmatprep.subr.mxu0 0.0
    %836 = vmatpush1.msra.mxu0 0.0
    %837 = vmatprep.subr.mxu0 0.0
    %838 = vmatpush1.msra.mxu0 0.0
    %839 = vmatprep.subr.mxu0 0.0
    %840 = vmatpush1.msra.mxu0 0.0
    %841 = vmatprep.subr.mxu0 0.0
    %842 = vmatpush1.msra.mxu0 0.0
    %843 = vmatprep.subr.mxu0 0.0
    %844 = vmatpush1.msra.mxu0 0.0
    %845 = vmatprep.subr.mxu0 0.0
    %846 = vmatpush1.msra.mxu0 0.0
    %847 = vmatprep.subr.mxu0 0.0
    %848 = vmatpush1.msra.mxu0 0.0
    %849 = vmatprep.subr.mxu0 0.0
    %850 = vmatpush1.msra.mxu0 0.0
    %851 = vmatprep.subr.mxu0 0.0
    %852 = vmatpush1.msra.mxu0 0.0
    %853 = vmatprep.mubr.f32.mxu0 0.0
    %854 = vmatmul.mubr.f32.gmra.mrb[0].mxu0 %v787
    %v855 = vpop.f32.mrb[0].mxu0
    %v856 = vadd.f32 %v784, %v855
    %v857 = vpop.f32.mrb[0].mxu0
    %858 = vdwg.mxu0
    %v860 = vlaneseq
    %v861 = vshrl.u32 %v860, 7
    %v862 = vsub.s32 0, %v861
    %v863 = vrot.slane %v779, %v862
    %v866 = vsel %vm326, %v769, 0
    %868 = vmatprep.subr.mxu0 0.0
    %869 = vmatpush1.msra.mxu0 %v775
    %870 = vmatprep.subr.mxu0 0.0
    %871 = vmatpush1.msra.mxu0 %v776
    %872 = vmatprep.subr.mxu0 0.0
    %873 = vmatpush1.msra.mxu0 %v777
    %874 = vmatprep.subr.mxu0 0.0
    %875 = vmatpush1.msra.mxu0 %v778
    %876 = vmatprep.subr.mxu0 0.0
    %877 = vmatpush1.msra.mxu0 0.0
    %878 = vmatprep.subr.mxu0 0.0
    %879 = vmatpush1.msra.mxu0 0.0
    %880 = vmatprep.subr.mxu0 0.0
    %881 = vmatpush1.msra.mxu0 0.0
    %882 = vmatprep.subr.mxu0 0.0
    %883 = vmatpush1.msra.mxu0 0.0
    %884 = vmatprep.subr.mxu0 0.0
    %885 = vmatpush1.msra.mxu0 0.0
    %886 = vmatprep.subr.mxu0 0.0
    %887 = vmatpush1.msra.mxu0 0.0
    %888 = vmatprep.subr.mxu0 0.0
    %889 = vmatpush1.msra.mxu0 0.0
    %890 = vmatprep.subr.mxu0 0.0
    %891 = vmatpush1.msra.mxu0 0.0
    %892 = vmatprep.subr.mxu0 0.0
    %893 = vmatpush1.msra.mxu0 0.0
    %894 = vmatprep.subr.mxu0 0.0
    %895 = vmatpush1.msra.mxu0 0.0
    %896 = vmatprep.subr.mxu0 0.0
    %897 = vmatpush1.msra.mxu0 0.0
    %898 = vmatprep.subr.mxu0 0.0
    %899 = vmatpush1.msra.mxu0 0.0
    %900 = vmatprep.subr.mxu0 0.0
    %901 = vmatpush1.msra.mxu0 0.0
    %902 = vmatprep.subr.mxu0 0.0
    %903 = vmatpush1.msra.mxu0 0.0
    %904 = vmatprep.subr.mxu0 0.0
    %905 = vmatpush1.msra.mxu0 0.0
    %906 = vmatprep.subr.mxu0 0.0
    %907 = vmatpush1.msra.mxu0 0.0
    %908 = vmatprep.subr.mxu0 0.0
    %909 = vmatpush1.msra.mxu0 0.0
    %910 = vmatprep.subr.mxu0 0.0
    %911 = vmatpush1.msra.mxu0 0.0
    %912 = vmatprep.subr.mxu0 0.0
    %913 = vmatpush1.msra.mxu0 0.0
    %914 = vmatprep.subr.mxu0 0.0
    %915 = vmatpush1.msra.mxu0 0.0
    %916 = vmatprep.subr.mxu0 0.0
    %917 = vmatpush1.msra.mxu0 0.0
    %918 = vmatprep.subr.mxu0 0.0
    %919 = vmatpush1.msra.mxu0 0.0
    %920 = vmatprep.subr.mxu0 0.0
    %921 = vmatpush1.msra.mxu0 0.0
    %922 = vmatprep.subr.mxu0 0.0
    %923 = vmatpush1.msra.mxu0 0.0
    %924 = vmatprep.subr.mxu0 0.0
    %925 = vmatpush1.msra.mxu0 0.0
    %926 = vmatprep.subr.mxu0 0.0
    %927 = vmatpush1.msra.mxu0 0.0
    %928 = vmatprep.subr.mxu0 0.0
    %929 = vmatpush1.msra.mxu0 0.0
    %930 = vmatprep.subr.mxu0 0.0
    %931 = vmatpush1.msra.mxu0 0.0
    %932 = vmatprep.mubr.f32.mxu0 0.0
    %933 = vmatmul.mubr.f32.gmra.mrb[0].mxu0 %v866
    %v934 = vpop.f32.mrb[0].mxu0
    %v935 = vadd.f32 %v863, %v934
    %v936 = vpop.f32.mrb[0].mxu0
    %937 = vdwg.mxu0
    %v938 = vadd.f32 %v856, %v935
    %v939 = vxor.u32 %v938, 2147483648
    %v940 = vmul.f32 %v939, 1.442695
    %v941 = vpow.pop %v940
    %v942 = vadd.f32 %v941, 1.0
    %v943 = vrcp.pop %v942
    %v944 = vmul.f32 1.0, %v943
    %946 = vrot.lane.b32.xlu0 %v935, 64
    %v947 = vpop.permute.xlu0 %946
    %v949 = vmul.f32 %v944, %v947
    %951 = vrot.lane.b32.xlu0 %v949, 64
    %v952 = vpop.permute.xlu0 %951
    %v954 = vadd.f32 %v856, %v952
    %v955 = vtanh.pop %v954
    %v956 = vsub.f32 1.0, %v944
    %958 = vrot.lane.b32.xlu0 %v955, 96
    %v959 = vpop.permute.xlu0 %958
    %v961 = vmul.f32 %v956, %v959
    %962 = vrot.lane.b32.xlu0 %v769, 32
    %v963 = vpop.permute.xlu0 %962
    %v965 = vmul.f32 %v944, %v963
    %v966 = vadd.f32 %v961, %v965
    %v967 = vld [vmem:[%s21] sm:$0xff]
    %v968 = vld [vmem:[%s21 + $0x8] sm:$0xff]
    %v969 = vld [vmem:[%s21 + $0x10] sm:$0xff]
    %v970 = vld [vmem:[%s21 + $0x18] sm:$0xff]
    %v971 = vld [vmem:[%s22] sm:$0x1]
    %v973 = vlaneseq
    %v974 = vshrl.u32 %v973, 7
    %v975 = vsub.s32 0, %v974
    %v976 = vrot.slane %v971, %v975
    %979 = vrot.lane.b32.xlu0 %v966, 96
    %v980 = vpop.permute.xlu0 %979
    %v981 = vsel %vm326, %v980, 0
    %983 = vmatprep.subr.mxu0 0.0
    %984 = vmatpush1.msra.mxu0 %v967
    %985 = vmatprep.subr.mxu0 0.0
    %986 = vmatpush1.msra.mxu0 %v968
    %987 = vmatprep.subr.mxu0 0.0
    %988 = vmatpush1.msra.mxu0 %v969
    %989 = vmatprep.subr.mxu0 0.0
    %990 = vmatpush1.msra.mxu0 %v970
    %991 = vmatprep.subr.mxu0 0.0
    %992 = vmatpush1.msra.mxu0 0.0
    %993 = vmatprep.subr.mxu0 0.0
    %994 = vmatpush1.msra.mxu0 0.0
    %995 = vmatprep.subr.mxu0 0.0
    %996 = vmatpush1.msra.mxu0 0.0
    %997 = vmatprep.subr.mxu0 0.0
    %998 = vmatpush1.msra.mxu0 0.0
    %999 = vmatprep.subr.mxu0 0.0
    %1000 = vmatpush1.msra.mxu0 0.0
    %1001 = vmatprep.subr.mxu0 0.0
    %1002 = vmatpush1.msra.mxu0 0.0
    %1003 = vmatprep.subr.mxu0 0.0
    %1004 = vmatpush1.msra.mxu0 0.0
    %1005 = vmatprep.subr.mxu0 0.0
    %1006 = vmatpush1.msra.mxu0 0.0
    %1007 = vmatprep.subr.mxu0 0.0
    %1008 = vmatpush1.msra.mxu0 0.0
    %1009 = vmatprep.subr.mxu0 0.0
    %1010 = vmatpush1.msra.mxu0 0.0
    %1011 = vmatprep.subr.mxu0 0.0
    %1012 = vmatpush1.msra.mxu0 0.0
    %1013 = vmatprep.subr.mxu0 0.0
    %1014 = vmatpush1.msra.mxu0 0.0
    %1015 = vmatprep.subr.mxu0 0.0
    %1016 = vmatpush1.msra.mxu0 0.0
    %1017 = vmatprep.subr.mxu0 0.0
    %1018 = vmatpush1.msra.mxu0 0.0
    %1019 = vmatprep.subr.mxu0 0.0
    %1020 = vmatpush1.msra.mxu0 0.0
    %1021 = vmatprep.subr.mxu0 0.0
    %1022 = vmatpush1.msra.mxu0 0.0
    %1023 = vmatprep.subr.mxu0 0.0
    %1024 = vmatpush1.msra.mxu0 0.0
    %1025 = vmatprep.subr.mxu0 0.0
    %1026 = vmatpush1.msra.mxu0 0.0
    %1027 = vmatprep.subr.mxu0 0.0
    %1028 = vmatpush1.msra.mxu0 0.0
    %1029 = vmatprep.subr.mxu0 0.0
    %1030 = vmatpush1.msra.mxu0 0.0
    %1031 = vmatprep.subr.mxu0 0.0
    %1032 = vmatpush1.msra.mxu0 0.0
    %1033 = vmatprep.subr.mxu0 0.0
    %1034 = vmatpush1.msra.mxu0 0.0
    %1035 = vmatprep.subr.mxu0 0.0
    %1036 = vmatpush1.msra.mxu0 0.0
    %1037 = vmatprep.subr.mxu0 0.0
    %1038 = vmatpush1.msra.mxu0 0.0
    %1039 = vmatprep.subr.mxu0 0.0
    %1040 = vmatpush1.msra.mxu0 0.0
    %1041 = vmatprep.subr.mxu0 0.0
    %1042 = vmatpush1.msra.mxu0 0.0
    %1043 = vmatprep.subr.mxu0 0.0
    %1044 = vmatpush1.msra.mxu0 0.0
    %1045 = vmatprep.subr.mxu0 0.0
    %1046 = vmatpush1.msra.mxu0 0.0
    %1047 = vmatprep.mubr.f32.mxu0 0.0
    %1048 = vmatmul.mubr.f32.gmra.mrb[0].mxu0 %v981
    %v1049 = vpop.f32.mrb[0].mxu0
    %v1050 = vadd.f32 %v976, %v1049
    %v1051 = vpop.f32.mrb[0].mxu0
    %1052 = vdwg.mxu0
    %v1053 = vld [vmem:[%s20] sm:$0xff]
    %v1054 = vld [vmem:[%s20 + $0x8] sm:$0xff]
    %v1055 = vld [vmem:[%s20 + $0x10] sm:$0xff]
    %v1056 = vld [vmem:[%s20 + $0x18] sm:$0xff]
    %v1057 = vld [vmem:[%s20 + $0x20] sm:$0xff]
    %vm1058 = vcmask 326656
    %v1060 = vsel %vm1058, %v682, 0
    %1062 = vmatprep.subr.mxu0 0.0
    %1063 = vmatpush1.msra.mxu0 %v1053
    %1064 = vmatprep.subr.mxu0 0.0
    %1065 = vmatpush1.msra.mxu0 %v1054
    %1066 = vmatprep.subr.mxu0 0.0
    %1067 = vmatpush1.msra.mxu0 %v1055
    %1068 = vmatprep.subr.mxu0 0.0
    %1069 = vmatpush1.msra.mxu0 %v1056
    %1070 = vmatprep.subr.mxu0 0.0
    %1071 = vmatpush1.msra.mxu0 %v1057
    %1072 = vmatprep.subr.mxu0 0.0
    %1073 = vmatpush1.msra.mxu0 0.0
    %1074 = vmatprep.subr.mxu0 0.0
    %1075 = vmatpush1.msra.mxu0 0.0
    %1076 = vmatprep.subr.mxu0 0.0
    %1077 = vmatpush1.msra.mxu0 0.0
    %1078 = vmatprep.subr.mxu0 0.0
    %1079 = vmatpush1.msra.mxu0 0.0
    %1080 = vmatprep.subr.mxu0 0.0
    %1081 = vmatpush1.msra.mxu0 0.0
    %1082 = vmatprep.subr.mxu0 0.0
    %1083 = vmatpush1.msra.mxu0 0.0
    %1084 = vmatprep.subr.mxu0 0.0
    %1085 = vmatpush1.msra.mxu0 0.0
    %1086 = vmatprep.subr.mxu0 0.0
    %1087 = vmatpush1.msra.mxu0 0.0
    %1088 = vmatprep.subr.mxu0 0.0
    %1089 = vmatpush1.msra.mxu0 0.0
    %1090 = vmatprep.subr.mxu0 0.0
    %1091 = vmatpush1.msra.mxu0 0.0
    %1092 = vmatprep.subr.mxu0 0.0
    %1093 = vmatpush1.msra.mxu0 0.0
    %1094 = vmatprep.subr.mxu0 0.0
    %1095 = vmatpush1.msra.mxu0 0.0
    %1096 = vmatprep.subr.mxu0 0.0
    %1097 = vmatpush1.msra.mxu0 0.0
    %1098 = vmatprep.subr.mxu0 0.0
    %1099 = vmatpush1.msra.mxu0 0.0
    %1100 = vmatprep.subr.mxu0 0.0
    %1101 = vmatpush1.msra.mxu0 0.0
    %1102 = vmatprep.subr.mxu0 0.0
    %1103 = vmatpush1.msra.mxu0 0.0
    %1104 = vmatprep.subr.mxu0 0.0
    %1105 = vmatpush1.msra.mxu0 0.0
    %1106 = vmatprep.subr.mxu0 0.0
    %1107 = vmatpush1.msra.mxu0 0.0
    %1108 = vmatprep.subr.mxu0 0.0
    %1109 = vmatpush1.msra.mxu0 0.0
    %1110 = vmatprep.subr.mxu0 0.0
    %1111 = vmatpush1.msra.mxu0 0.0
    %1112 = vmatprep.subr.mxu0 0.0
    %1113 = vmatpush1.msra.mxu0 0.0
    %1114 = vmatprep.subr.mxu0 0.0
    %1115 = vmatpush1.msra.mxu0 0.0
    %1116 = vmatprep.subr.mxu0 0.0
    %1117 = vmatpush1.msra.mxu0 0.0
    %1118 = vmatprep.subr.mxu0 0.0
    %1119 = vmatpush1.msra.mxu0 0.0
    %1120 = vmatprep.subr.mxu0 0.0
    %1121 = vmatpush1.msra.mxu0 0.0
    %1122 = vmatprep.subr.mxu0 0.0
    %1123 = vmatpush1.msra.mxu0 0.0
    %1124 = vmatprep.subr.mxu0 0.0
    %1125 = vmatpush1.msra.mxu0 0.0
    %1126 = vmatprep.mubr.f32.mxu0 0.0
    %1127 = vmatmul.mubr.f32.gmra.mrb[0].mxu0 %v1060
    %v1128 = vpop.f32.mrb[0].mxu0
    %v1129 = vadd.f32 0.0, %v1128
    %v1130 = vpop.f32.mrb[0].mxu0
    %1131 = vdwg.mxu0
    %1133 = vset.pattern.permute.xlu0 0
    %1134 = vperm.xlu0 %1133, %v1129
    %v1135 = vpop.permute.xlu0 %1134
    %v1137 = vmul.f32 %v1135, %v1050
    %v1138 = vadd.f32 %v1137, 0.0
    %1139 = vset.pattern.permute.xlu0 1
    %1140 = vperm.xlu0 %1139, %v1129
    %v1141 = vpop.permute.xlu0 %1140
    %v1143 = vmul.f32 %v1141, %v1050
    %1145 = vrot.lane.b32.xlu0 %v1143, 124
    %v1146 = vpop.permute.xlu0 %1145
    %v1148 = vadd.f32 %v1138, %v1146
    %1149 = vset.pattern.permute.xlu0 2
    %1150 = vperm.xlu0 %1149, %v1129
    %v1151 = vpop.permute.xlu0 %1150
    %v1153 = vmul.f32 %v1151, %v1050
    %1155 = vrot.lane.b32.xlu0 %v1153, 120
    %v1156 = vpop.permute.xlu0 %1155
    %v1158 = vadd.f32 %v1148, %v1156
    %v1159 = vmul.f32 %v1158, 0.17677669
    %vm1160 = vcmask 29696
    %v1161 = vsel %vm1160, %v1159, -inf
    %1162 = vmax.xlane.f32.xlu0 %v1161
    %v1163 = vpop.xlane.xlu0 %1162
    %v1164 = vlaneseq
    %v1165 = vand.u32 %v1164, 127
    %vm1166 = vcmp.eq.f32.partialorder %v1159, %v1163
    %v1167 = vsel %vm1166, %v1165, 4
    %v1168 = vsel %vm1160, %v1167, 2147483647
    %v1169 = vand.u32 %v1168, 65535
    %v1170 = vshra.s32 %v1168, 16
    %v1171 = vcvt.s32.f32 %v1169
    %v1172 = vcvt.s32.f32 %v1170
    %1173 = vmin.xlane.f32.xlu0 %v1172
    %v1174 = vpop.xlane.xlu0 %1173
    %vm1175 = vcmp.eq.f32.partialorder %v1172, %v1174
    %v1176 = vsel %vm1175, %v1171, inf
    %1177 = vmin.xlane.f32.xlu0 %v1176
    %v1178 = vpop.xlane.xlu0 %1177
    %v1179 = vcvt.f32.s32 %v1178
    %v1180 = vcvt.f32.s32 %v1174
    %v1181 = vshll.u32 %v1180, 16
    %v1182 = vadd.s32 %v1181, %v1179
    %v1183 = vcvt.s32.f32 %v1182
    %v1184 = vadd.f32 %v1183, 1.0
    %v1185 = vrcp.pop 4.0
    %v1186 = vmul.f32 %v1184, %v1185
    %v1187 = vmul.f32 %v1186, 8.0
    %v1188 = vsub.f32 %v1187, 1.0
    %v1189 = vceil.f32 %v1188
    %v1190 = vrcp.pop %v1189
    %v1191 = vmul.f32 1.0, %v1190
    %v1192 = vld [vmem:[%s25] sm:$0x1]
    %v1193 = vld [vmem:[#allocation19] sm:$0xff]
    %v1194 = vld [vmem:[#allocation19 + $0x8] sm:$0xff]
    %v1195 = vld [vmem:[#allocation19 + $0x10] sm:$0xff]
    %v1196 = vld [vmem:[#allocation19 + $0x18] sm:$0xff]
    %v1197 = vld [vmem:[#allocation19 + $0x20] sm:$0xff]
    %v1198 = vld [vmem:[#allocation19 + $0x28] sm:$0xff]
    %v1199 = vld [vmem:[#allocation19 + $0x30] sm:$0xff]
    %v1200 = vld [vmem:[#allocation19 + $0x38] sm:$0xff]
    %v1201 = vld [vmem:[#allocation19 + $0x40] sm:$0xff]
    %v1202 = vld [vmem:[#allocation19 + $0x48] sm:$0xff]
    %v1203 = vld [vmem:[#allocation19 + $0x50] sm:$0xff]
    %v1204 = vld [vmem:[#allocation19 + $0x58] sm:$0xff]
    %v1205 = vld [vmem:[#allocation19 + $0x60] sm:$0xff]
    %v1206 = vld [vmem:[#allocation19 + $0x68] sm:$0xff]
    %v1207 = vld [vmem:[#allocation19 + $0x70] sm:$0xff]
    %v1208 = vld [vmem:[#allocation19 + $0x78] sm:$0xff]
    %v1209 = vld [vmem:[#allocation19 + $0x80] sm:$0xff]
    %v1210 = vld [vmem:[#allocation19 + $0x88] sm:$0xff]
    %v1211 = vld [vmem:[#allocation19 + $0x90] sm:$0xff]
    %v1212 = vld [vmem:[#allocation19 + $0x98] sm:$0xff]
    %v1213 = vld [vmem:[#allocation19 + $0xa0] sm:$0xff]
    %v1214 = vld [vmem:[#allocation19 + $0xa8] sm:$0xff]
    %v1215 = vld [vmem:[#allocation19 + $0xb0] sm:$0xff]
    %v1216 = vld [vmem:[#allocation19 + $0xb8] sm:$0xff]
    %v1217 = vld [vmem:[#allocation19 + $0xc0] sm:$0xff]
    %v1218 = vld [vmem:[#allocation19 + $0xc8] sm:$0xff]
    %v1219 = vld [vmem:[#allocation19 + $0xd0] sm:$0xff]
    %v1220 = vld [vmem:[#allocation19 + $0xd8] sm:$0xff]
    %v1221 = vld [vmem:[#allocation19 + $0xe0] sm:$0xff]
    %v1222 = vld [vmem:[#allocation19 + $0xe8] sm:$0xff]
    %v1223 = vld [vmem:[#allocation19 + $0xf0] sm:$0xff]
    %v1224 = vld [vmem:[#allocation19 + $0xf8] sm:$0xff]
    %v1225 = vld [vmem:[#allocation19 + $0x100] sm:$0xff]
    %v1226 = vld [vmem:[#allocation19 + $0x108] sm:$0xff]
    %v1227 = vld [vmem:[#allocation19 + $0x110] sm:$0xff]
    %v1228 = vld [vmem:[#allocation19 + $0x118] sm:$0xff]
    %v1229 = vld [vmem:[#allocation19 + $0x120] sm:$0xff]
    %v1230 = vld [vmem:[#allocation19 + $0x128] sm:$0xff]
    %v1231 = vld [vmem:[#allocation19 + $0x130] sm:$0xff]
    %v1232 = vld [vmem:[#allocation19 + $0x138] sm:$0xff]
    %v1233 = vld [vmem:[#allocation19 + $0x140] sm:$0xff]
    %v1234 = vld [vmem:[#allocation19 + $0x148] sm:$0xff]
    %v1235 = vld [vmem:[#allocation19 + $0x150] sm:$0xff]
    %v1236 = vld [vmem:[#allocation19 + $0x158] sm:$0xff]
    %v1237 = vld [vmem:[#allocation19 + $0x160] sm:$0xff]
    %1238 = vmatprep.subr.mxu0 %v1194
    %1239 = vmatpush1.msra.mxu0 %v1193
    %1240 = vmatprep.subr.mxu0 %v1203
    %1241 = vmatpush1.msra.mxu0 %v1202
    %1242 = vmatprep.subr.mxu0 %v1212
    %1243 = vmatpush1.msra.mxu0 %v1211
    %1244 = vmatprep.subr.mxu0 %v1221
    %1245 = vmatpush1.msra.mxu0 %v1220
    %1246 = vmatprep.subr.mxu0 %v1230
    %1247 = vmatpush1.msra.mxu0 %v1229
    %1248 = vmatprep.subr.mxu0 0.0
    %1249 = vmatpush1.msra.mxu0 0.0
    %1250 = vmatprep.subr.mxu0 0.0
    %1251 = vmatpush1.msra.mxu0 0.0
    %1252 = vmatprep.subr.mxu0 0.0
    %1253 = vmatpush1.msra.mxu0 0.0
    %1254 = vmatprep.subr.mxu0 0.0
    %1255 = vmatpush1.msra.mxu0 0.0
    %1256 = vmatprep.subr.mxu0 0.0
    %1257 = vmatpush1.msra.mxu0 0.0
    %1258 = vmatprep.subr.mxu0 0.0
    %1259 = vmatpush1.msra.mxu0 0.0
    %1260 = vmatprep.subr.mxu0 0.0
    %1261 = vmatpush1.msra.mxu0 0.0
    %1262 = vmatprep.subr.mxu0 0.0
    %1263 = vmatpush1.msra.mxu0 0.0
    %1264 = vmatprep.subr.mxu0 0.0
    %1265 = vmatpush1.msra.mxu0 0.0
    %1266 = vmatprep.subr.mxu0 0.0
    %1267 = vmatpush1.msra.mxu0 0.0
    %1268 = vmatprep.subr.mxu0 0.0
    %1269 = vmatpush1.msra.mxu0 0.0
    %1270 = vmatprep.subr.mxu0 0.0
    %1271 = vmatpush1.msra.mxu0 0.0
    %1272 = vmatprep.subr.mxu0 0.0
    %1273 = vmatpush1.msra.mxu0 0.0
    %1274 = vmatprep.subr.mxu0 0.0
    %1275 = vmatpush1.msra.mxu0 0.0
    %1276 = vmatprep.subr.mxu0 0.0
    %1277 = vmatpush1.msra.mxu0 0.0
    %1278 = vmatprep.subr.mxu0 0.0
    %1279 = vmatpush1.msra.mxu0 0.0
    %1280 = vmatprep.subr.mxu0 0.0
    %1281 = vmatpush1.msra.mxu0 0.0
    %1282 = vmatprep.subr.mxu0 0.0
    %1283 = vmatpush1.msra.mxu0 0.0
    %1284 = vmatprep.subr.mxu0 0.0
    %1285 = vmatpush1.msra.mxu0 0.0
    %1286 = vmatprep.subr.mxu0 0.0
    %1287 = vmatpush1.msra.mxu0 0.0
    %1288 = vmatprep.subr.mxu0 0.0
    %1289 = vmatpush1.msra.mxu0 0.0
    %1290 = vmatprep.subr.mxu0 0.0
    %1291 = vmatpush1.msra.mxu0 0.0
    %1292 = vmatprep.subr.mxu0 0.0
    %1293 = vmatpush1.msra.mxu0 0.0
    %1294 = vmatprep.subr.mxu0 0.0
    %1295 = vmatpush1.msra.mxu0 0.0
    %1296 = vmatprep.subr.mxu0 0.0
    %1297 = vmatpush1.msra.mxu0 0.0
    %1298 = vmatprep.subr.mxu0 0.0
    %1299 = vmatpush1.msra.mxu0 0.0
    %1300 = vmatprep.subr.mxu0 0.0
    %1301 = vmatpush1.msra.mxu0 0.0
    %1302 = vmatprep.mubr.f32.mxu0 0.0
    %1303 = vmatmul.mubr.f32.gmra.mrb[0].mxu0 %v1060
    %v1304 = vpop.f32.mrb[0].mxu0
    %v1305 = vadd.f32 0.0, %v1304
    %v1306 = vpop.f32.mrb[0].mxu0
    %v1307 = vadd.f32 0.0, %v1306
    %1308 = vdwg.mxu0
    %1309 = vmatprep.subr.mxu0 %v1196
    %1310 = vmatpush1.msra.mxu0 %v1195
    %1311 = vmatprep.subr.mxu0 %v1205
    %1312 = vmatpush1.msra.mxu0 %v1204
    %1313 = vmatprep.subr.mxu0 %v1214
    %1314 = vmatpush1.msra.mxu0 %v1213
    %1315 = vmatprep.subr.mxu0 %v1223
    %1316 = vmatpush1.msra.mxu0 %v1222
    %1317 = vmatprep.subr.mxu0 %v1232
    %1318 = vmatpush1.msra.mxu0 %v1231
    %1319 = vmatprep.subr.mxu0 0.0
    %1320 = vmatpush1.msra.mxu0 0.0
    %1321 = vmatprep.subr.mxu0 0.0
    %1322 = vmatpush1.msra.mxu0 0.0
    %1323 = vmatprep.subr.mxu0 0.0
    %1324 = vmatpush1.msra.mxu0 0.0
    %1325 = vmatprep.subr.mxu0 0.0
    %1326 = vmatpush1.msra.mxu0 0.0
    %1327 = vmatprep.subr.mxu0 0.0
    %1328 = vmatpush1.msra.mxu0 0.0
    %1329 = vmatprep.subr.mxu0 0.0
    %1330 = vmatpush1.msra.mxu0 0.0
    %1331 = vmatprep.subr.mxu0 0.0
    %1332 = vmatpush1.msra.mxu0 0.0
    %1333 = vmatprep.subr.mxu0 0.0
    %1334 = vmatpush1.msra.mxu0 0.0
    %1335 = vmatprep.subr.mxu0 0.0
    %1336 = vmatpush1.msra.mxu0 0.0
    %1337 = vmatprep.subr.mxu0 0.0
    %1338 = vmatpush1.msra.mxu0 0.0
    %1339 = vmatprep.subr.mxu0 0.0
    %1340 = vmatpush1.msra.mxu0 0.0
    %1341 = vmatprep.subr.mxu0 0.0
    %1342 = vmatpush1.msra.mxu0 0.0
    %1343 = vmatprep.subr.mxu0 0.0
    %1344 = vmatpush1.msra.mxu0 0.0
    %1345 = vmatprep.subr.mxu0 0.0
    %1346 = vmatpush1.msra.mxu0 0.0
    %1347 = vmatprep.subr.mxu0 0.0
    %1348 = vmatpush1.msra.mxu0 0.0
    %1349 = vmatprep.subr.mxu0 0.0
    %1350 = vmatpush1.msra.mxu0 0.0
    %1351 = vmatprep.subr.mxu0 0.0
    %1352 = vmatpush1.msra.mxu0 0.0
    %1353 = vmatprep.subr.mxu0 0.0
    %1354 = vmatpush1.msra.mxu0 0.0
    %1355 = vmatprep.subr.mxu0 0.0
    %1356 = vmatpush1.msra.mxu0 0.0
    %1357 = vmatprep.subr.mxu0 0.0
    %1358 = vmatpush1.msra.mxu0 0.0
    %1359 = vmatprep.subr.mxu0 0.0
    %1360 = vmatpush1.msra.mxu0 0.0
    %1361 = vmatprep.subr.mxu0 0.0
    %1362 = vmatpush1.msra.mxu0 0.0
    %1363 = vmatprep.subr.mxu0 0.0
    %1364 = vmatpush1.msra.mxu0 0.0
    %1365 = vmatprep.subr.mxu0 0.0
    %1366 = vmatpush1.msra.mxu0 0.0
    %1367 = vmatprep.subr.mxu0 0.0
    %1368 = vmatpush1.msra.mxu0 0.0
    %1369 = vmatprep.subr.mxu0 0.0
    %1370 = vmatpush1.msra.mxu0 0.0
    %1371 = vmatprep.subr.mxu0 0.0
    %1372 = vmatpush1.msra.mxu0 0.0
    %1373 = vmatprep.mubr.f32.mxu0 0.0
    %1374 = vmatmul.mubr.f32.gmra.mrb[0].mxu0 %v1060
    %v1375 = vpop.f32.mrb[0].mxu0
    %v1376 = vadd.f32 0.0, %v1375
    %v1377 = vpop.f32.mrb[0].mxu0
    %v1378 = vadd.f32 0.0, %v1377
    %1379 = vdwg.mxu0
    %1380 = vmatprep.subr.mxu0 %v1198
    %1381 = vmatpush1.msra.mxu0 %v1197
    %1382 = vmatprep.subr.mxu0 %v1207
    %1383 = vmatpush1.msra.mxu0 %v1206
    %1384 = vmatprep.subr.mxu0 %v1216
    %1385 = vmatpush1.msra.mxu0 %v1215
    %1386 = vmatprep.subr.mxu0 %v1225
    %1387 = vmatpush1.msra.mxu0 %v1224
    %1388 = vmatprep.subr.mxu0 %v1234
    %1389 = vmatpush1.msra.mxu0 %v1233
    %1390 = vmatprep.subr.mxu0 0.0
    %1391 = vmatpush1.msra.mxu0 0.0
    %1392 = vmatprep.subr.mxu0 0.0
    %1393 = vmatpush1.msra.mxu0 0.0
    %1394 = vmatprep.subr.mxu0 0.0
    %1395 = vmatpush1.msra.mxu0 0.0
    %1396 = vmatprep.subr.mxu0 0.0
    %1397 = vmatpush1.msra.mxu0 0.0
    %1398 = vmatprep.subr.mxu0 0.0
    %1399 = vmatpush1.msra.mxu0 0.0
    %1400 = vmatprep.subr.mxu0 0.0
    %1401 = vmatpush1.msra.mxu0 0.0
    %1402 = vmatprep.subr.mxu0 0.0
    %1403 = vmatpush1.msra.mxu0 0.0
    %1404 = vmatprep.subr.mxu0 0.0
    %1405 = vmatpush1.msra.mxu0 0.0
    %1406 = vmatprep.subr.mxu0 0.0
    %1407 = vmatpush1.msra.mxu0 0.0
    %1408 = vmatprep.subr.mxu0 0.0
    %1409 = vmatpush1.msra.mxu0 0.0
    %1410 = vmatprep.subr.mxu0 0.0
    %1411 = vmatpush1.msra.mxu0 0.0
    %1412 = vmatprep.subr.mxu0 0.0
    %1413 = vmatpush1.msra.mxu0 0.0
    %1414 = vmatprep.subr.mxu0 0.0
    %1415 = vmatpush1.msra.mxu0 0.0
    %1416 = vmatprep.subr.mxu0 0.0
    %1417 = vmatpush1.msra.mxu0 0.0
    %1418 = vmatprep.subr.mxu0 0.0
    %1419 = vmatpush1.msra.mxu0 0.0
    %1420 = vmatprep.subr.mxu0 0.0
    %1421 = vmatpush1.msra.mxu0 0.0
    %1422 = vmatprep.subr.mxu0 0.0
    %1423 = vmatpush1.msra.mxu0 0.0
    %1424 = vmatprep.subr.mxu0 0.0
    %1425 = vmatpush1.msra.mxu0 0.0
    %1426 = vmatprep.subr.mxu0 0.0
    %1427 = vmatpush1.msra.mxu0 0.0
    %1428 = vmatprep.subr.mxu0 0.0
    %1429 = vmatpush1.msra.mxu0 0.0
    %1430 = vmatprep.subr.mxu0 0.0
    %1431 = vmatpush1.msra.mxu0 0.0
    %1432 = vmatprep.subr.mxu0 0.0
    %1433 = vmatpush1.msra.mxu0 0.0
    %1434 = vmatprep.subr.mxu0 0.0
    %1435 = vmatpush1.msra.mxu0 0.0
    %1436 = vmatprep.subr.mxu0 0.0
    %1437 = vmatpush1.msra.mxu0 0.0
    %1438 = vmatprep.subr.mxu0 0.0
    %1439 = vmatpush1.msra.mxu0 0.0
    %1440 = vmatprep.subr.mxu0 0.0
    %1441 = vmatpush1.msra.mxu0 0.0
    %1442 = vmatprep.subr.mxu0 0.0
    %1443 = vmatpush1.msra.mxu0 0.0
    %1444 = vmatprep.mubr.f32.mxu0 0.0
    %1445 = vmatmul.mubr.f32.gmra.mrb[0].mxu0 %v1060
    %v1446 = vpop.f32.mrb[0].mxu0
    %v1447 = vadd.f32 0.0, %v1446
    %v1448 = vpop.f32.mrb[0].mxu0
    %v1449 = vadd.f32 0.0, %v1448
    %1450 = vdwg.mxu0
    %1451 = vmatprep.subr.mxu0 %v1200
    %1452 = vmatpush1.msra.mxu0 %v1199
    %1453 = vmatprep.subr.mxu0 %v1209
    %1454 = vmatpush1.msra.mxu0 %v1208
    %1455 = vmatprep.subr.mxu0 %v1218
    %1456 = vmatpush1.msra.mxu0 %v1217
    %1457 = vmatprep.subr.mxu0 %v1227
    %1458 = vmatpush1.msra.mxu0 %v1226
    %1459 = vmatprep.subr.mxu0 %v1236
    %1460 = vmatpush1.msra.mxu0 %v1235
    %1461 = vmatprep.subr.mxu0 0.0
    %1462 = vmatpush1.msra.mxu0 0.0
    %1463 = vmatprep.subr.mxu0 0.0
    %1464 = vmatpush1.msra.mxu0 0.0
    %1465 = vmatprep.subr.mxu0 0.0
    %1466 = vmatpush1.msra.mxu0 0.0
    %1467 = vmatprep.subr.mxu0 0.0
    %1468 = vmatpush1.msra.mxu0 0.0
    %1469 = vmatprep.subr.mxu0 0.0
    %1470 = vmatpush1.msra.mxu0 0.0
    %1471 = vmatprep.subr.mxu0 0.0
    %1472 = vmatpush1.msra.mxu0 0.0
    %1473 = vmatprep.subr.mxu0 0.0
    %1474 = vmatpush1.msra.mxu0 0.0
    %1475 = vmatprep.subr.mxu0 0.0
    %1476 = vmatpush1.msra.mxu0 0.0
    %1477 = vmatprep.subr.mxu0 0.0
    %1478 = vmatpush1.msra.mxu0 0.0
    %1479 = vmatprep.subr.mxu0 0.0
    %1480 = vmatpush1.msra.mxu0 0.0
    %1481 = vmatprep.subr.mxu0 0.0
    %1482 = vmatpush1.msra.mxu0 0.0
    %1483 = vmatprep.subr.mxu0 0.0
    %1484 = vmatpush1.msra.mxu0 0.0
    %1485 = vmatprep.subr.mxu0 0.0
    %1486 = vmatpush1.msra.mxu0 0.0
    %1487 = vmatprep.subr.mxu0 0.0
    %1488 = vmatpush1.msra.mxu0 0.0
    %1489 = vmatprep.subr.mxu0 0.0
    %1490 = vmatpush1.msra.mxu0 0.0
    %1491 = vmatprep.subr.mxu0 0.0
    %1492 = vmatpush1.msra.mxu0 0.0
    %1493 = vmatprep.subr.mxu0 0.0
    %1494 = vmatpush1.msra.mxu0 0.0
    %1495 = vmatprep.subr.mxu0 0.0
    %1496 = vmatpush1.msra.mxu0 0.0
    %1497 = vmatprep.subr.mxu0 0.0
    %1498 = vmatpush1.msra.mxu0 0.0
    %1499 = vmatprep.subr.mxu0 0.0
    %1500 = vmatpush1.msra.mxu0 0.0
    %1501 = vmatprep.subr.mxu0 0.0
    %1502 = vmatpush1.msra.mxu0 0.0
    %1503 = vmatprep.subr.mxu0 0.0
    %1504 = vmatpush1.msra.mxu0 0.0
    %1505 = vmatprep.subr.mxu0 0.0
    %1506 = vmatpush1.msra.mxu0 0.0
    %1507 = vmatprep.subr.mxu0 0.0
    %1508 = vmatpush1.msra.mxu0 0.0
    %1509 = vmatprep.subr.mxu0 0.0
    %1510 = vmatpush1.msra.mxu0 0.0
    %1511 = vmatprep.subr.mxu0 0.0
    %1512 = vmatpush1.msra.mxu0 0.0
    %1513 = vmatprep.subr.mxu0 0.0
    %1514 = vmatpush1.msra.mxu0 0.0
    %1515 = vmatprep.mubr.f32.mxu0 0.0
    %1516 = vmatmul.mubr.f32.gmra.mrb[0].mxu0 %v1060
    %v1517 = vpop.f32.mrb[0].mxu0
    %v1518 = vadd.f32 0.0, %v1517
    %v1519 = vpop.f32.mrb[0].mxu0
    %v1520 = vadd.f32 0.0, %v1519
    %1521 = vdwg.mxu0
    %1522 = vmatprep.subr.mxu0 0.0
    %1523 = vmatpush1.msra.mxu0 %v1201
    %1524 = vmatprep.subr.mxu0 0.0
    %1525 = vmatpush1.msra.mxu0 %v1210
    %1526 = vmatprep.subr.mxu0 0.0
    %1527 = vmatpush1.msra.mxu0 %v1219
    %1528 = vmatprep.subr.mxu0 0.0
    %1529 = vmatpush1.msra.mxu0 %v1228
    %1530 = vmatprep.subr.mxu0 0.0
    %1531 = vmatpush1.msra.mxu0 %v1237
    %1532 = vmatprep.subr.mxu0 0.0
    %1533 = vmatpush1.msra.mxu0 0.0
    %1534 = vmatprep.subr.mxu0 0.0
    %1535 = vmatpush1.msra.mxu0 0.0
    %1536 = vmatprep.subr.mxu0 0.0
    %1537 = vmatpush1.msra.mxu0 0.0
    %1538 = vmatprep.subr.mxu0 0.0
    %1539 = vmatpush1.msra.mxu0 0.0
    %1540 = vmatprep.subr.mxu0 0.0
    %1541 = vmatpush1.msra.mxu0 0.0
    %1542 = vmatprep.subr.mxu0 0.0
    %1543 = vmatpush1.msra.mxu0 0.0
    %1544 = vmatprep.subr.mxu0 0.0
    %1545 = vmatpush1.msra.mxu0 0.0
    %1546 = vmatprep.subr.mxu0 0.0
    %1547 = vmatpush1.msra.mxu0 0.0
    %1548 = vmatprep.subr.mxu0 0.0
    %1549 = vmatpush1.msra.mxu0 0.0
    %1550 = vmatprep.subr.mxu0 0.0
    %1551 = vmatpush1.msra.mxu0 0.0
    %1552 = vmatprep.subr.mxu0 0.0
    %1553 = vmatpush1.msra.mxu0 0.0
    %1554 = vmatprep.subr.mxu0 0.0
    %1555 = vmatpush1.msra.mxu0 0.0
    %1556 = vmatprep.subr.mxu0 0.0
    %1557 = vmatpush1.msra.mxu0 0.0
    %1558 = vmatprep.subr.mxu0 0.0
    %1559 = vmatpush1.msra.mxu0 0.0
    %1560 = vmatprep.subr.mxu0 0.0
    %1561 = vmatpush1.msra.mxu0 0.0
    %1562 = vmatprep.subr.mxu0 0.0
    %1563 = vmatpush1.msra.mxu0 0.0
    %1564 = vmatprep.subr.mxu0 0.0
    %1565 = vmatpush1.msra.mxu0 0.0
    %1566 = vmatprep.subr.mxu0 0.0
    %1567 = vmatpush1.msra.mxu0 0.0
    %1568 = vmatprep.subr.mxu0 0.0
    %1569 = vmatpush1.msra.mxu0 0.0
    %1570 = vmatprep.subr.mxu0 0.0
    %1571 = vmatpush1.msra.mxu0 0.0
    %1572 = vmatprep.subr.mxu0 0.0
    %1573 = vmatpush1.msra.mxu0 0.0
    %1574 = vmatprep.subr.mxu0 0.0
    %1575 = vmatpush1.msra.mxu0 0.0
    %1576 = vmatprep.subr.mxu0 0.0
    %1577 = vmatpush1.msra.mxu0 0.0
    %1578 = vmatprep.subr.mxu0 0.0
    %1579 = vmatpush1.msra.mxu0 0.0
    %1580 = vmatprep.subr.mxu0 0.0
    %1581 = vmatpush1.msra.mxu0 0.0
    %1582 = vmatprep.subr.mxu0 0.0
    %1583 = vmatpush1.msra.mxu0 0.0
    %1584 = vmatprep.subr.mxu0 0.0
    %1585 = vmatpush1.msra.mxu0 0.0
    %1586 = vmatprep.mubr.f32.mxu0 0.0
    %1587 = vmatmul.mubr.f32.gmra.mrb[0].mxu0 %v1060
    %v1588 = vpop.f32.mrb[0].mxu0
    %v1589 = vadd.f32 0.0, %v1588
    %v1590 = vpop.f32.mrb[0].mxu0
    %1591 = vdwg.mxu0
    %vm1592 = vcmp.lt.f32.partialorder %v1305, %v1589
    %v1593 = vsel %vm1592, 1, 0
    %v1594 = vcvt.s32.f32 %v1593
    %v1595 = vadd.f32 %v1594, 0.0
    %vm1596 = vcmp.eq.f32.partialorder %v1305, %v1589
    %v1597 = vsel %vm1596, 1, 0
    %v1598 = vcvt.s32.f32 %v1597
    %vm1599 = vcmp.gt.f32.partialorder %v1192, 0.0
    %v1600 = vsel %vm1599, 1, 0
    %v1601 = vcvt.s32.f32 %v1600
    %v1603 = vlaneseq
    %v1604 = vshrl.u32 %v1603, 7
    %v1605 = vsub.s32 0, %v1604
    %v1606 = vrot.slane %v1601, %v1605
    %v1608 = vmul.f32 %v1598, %v1606
    %v1609 = vadd.f32 %v1595, %v1608
    %vm1610 = vcmp.lt.f32.partialorder %v1307, %v1589
    %v1611 = vsel %vm1610, 1, 0
    %v1612 = vcvt.s32.f32 %v1611
    %v1613 = vadd.f32 %v1609, %v1612
    %vm1614 = vcmp.eq.f32.partialorder %v1307, %v1589
    %v1615 = vsel %vm1614, 1, 0
    %v1616 = vcvt.s32.f32 %v1615
    %vm1617 = vcmp.gt.f32.partialorder %v1192, 1.0
    %v1618 = vsel %vm1617, 1, 0
    %v1619 = vcvt.s32.f32 %v1618
    %v1621 = vlaneseq
    %v1622 = vshrl.u32 %v1621, 7
    %v1623 = vsub.s32 0, %v1622
    %v1624 = vrot.slane %v1619, %v1623
    %v1626 = vmul.f32 %v1616, %v1624
    %v1627 = vadd.f32 %v1613, %v1626
    %vm1628 = vcmp.lt.f32.partialorder %v1376, %v1589
    %v1629 = vsel %vm1628, 1, 0
    %v1630 = vcvt.s32.f32 %v1629
    %v1631 = vadd.f32 %v1627, %v1630
    %vm1632 = vcmp.eq.f32.partialorder %v1376, %v1589
    %v1633 = vsel %vm1632, 1, 0
    %v1634 = vcvt.s32.f32 %v1633
    %vm1635 = vcmp.gt.f32.partialorder %v1192, 2.0
    %v1636 = vsel %vm1635, 1, 0
    %v1637 = vcvt.s32.f32 %v1636
    %v1639 = vlaneseq
    %v1640 = vshrl.u32 %v1639, 7
    %v1641 = vsub.s32 0, %v1640
    %v1642 = vrot.slane %v1637, %v1641
    %v1644 = vmul.f32 %v1634, %v1642
    %v1645 = vadd.f32 %v1631, %v1644
    %vm1646 = vcmp.lt.f32.partialorder %v1378, %v1589
    %v1647 = vsel %vm1646, 1, 0
    %v1648 = vcvt.s32.f32 %v1647
    %v1649 = vadd.f32 %v1645, %v1648
    %vm1650 = vcmp.eq.f32.partialorder %v1378, %v1589
    %v1651 = vsel %vm1650, 1, 0
    %v1652 = vcvt.s32.f32 %v1651
    %vm1653 = vcmp.gt.f32.partialorder %v1192, 3.0
    %v1654 = vsel %vm1653, 1, 0
    %v1655 = vcvt.s32.f32 %v1654
    %v1657 = vlaneseq
    %v1658 = vshrl.u32 %v1657, 7
    %v1659 = vsub.s32 0, %v1658
    %v1660 = vrot.slane %v1655, %v1659
    %v1662 = vmul.f32 %v1652, %v1660
    %v1663 = vadd.f32 %v1649, %v1662
    %vm1664 = vcmp.lt.f32.partialorder %v1447, %v1589
    %v1665 = vsel %vm1664, 1, 0
    %v1666 = vcvt.s32.f32 %v1665
    %v1667 = vadd.f32 %v1663, %v1666
    %vm1668 = vcmp.eq.f32.partialorder %v1447, %v1589
    %v1669 = vsel %vm1668, 1, 0
    %v1670 = vcvt.s32.f32 %v1669
    %vm1671 = vcmp.gt.f32.partialorder %v1192, 4.0
    %v1672 = vsel %vm1671, 1, 0
    %v1673 = vcvt.s32.f32 %v1672
    %v1675 = vlaneseq
    %v1676 = vshrl.u32 %v1675, 7
    %v1677 = vsub.s32 0, %v1676
    %v1678 = vrot.slane %v1673, %v1677
    %v1680 = vmul.f32 %v1670, %v1678
    %v1681 = vadd.f32 %v1667, %v1680
    %vm1682 = vcmp.lt.f32.partialorder %v1449, %v1589
    %v1683 = vsel %vm1682, 1, 0
    %v1684 = vcvt.s32.f32 %v1683
    %v1685 = vadd.f32 %v1681, %v1684
    %vm1686 = vcmp.eq.f32.partialorder %v1449, %v1589
    %v1687 = vsel %vm1686, 1, 0
    %v1688 = vcvt.s32.f32 %v1687
    %vm1689 = vcmp.gt.f32.partialorder %v1192, 5.0
    %v1690 = vsel %vm1689, 1, 0
    %v1691 = vcvt.s32.f32 %v1690
    %v1693 = vlaneseq
    %v1694 = vshrl.u32 %v1693, 7
    %v1695 = vsub.s32 0, %v1694
    %v1696 = vrot.slane %v1691, %v1695
    %v1698 = vmul.f32 %v1688, %v1696
    %v1699 = vadd.f32 %v1685, %v1698
    %vm1700 = vcmp.lt.f32.partialorder %v1518, %v1589
    %v1701 = vsel %vm1700, 1, 0
    %v1702 = vcvt.s32.f32 %v1701
    %v1703 = vadd.f32 %v1699, %v1702
    %vm1704 = vcmp.eq.f32.partialorder %v1518, %v1589
    %v1705 = vsel %vm1704, 1, 0
    %v1706 = vcvt.s32.f32 %v1705
    %vm1707 = vcmp.gt.f32.partialorder %v1192, 6.0
    %v1708 = vsel %vm1707, 1, 0
    %v1709 = vcvt.s32.f32 %v1708
    %v1711 = vlaneseq
    %v1712 = vshrl.u32 %v1711, 7
    %v1713 = vsub.s32 0, %v1712
    %v1714 = vrot.slane %v1709, %v1713
    %v1716 = vmul.f32 %v1706, %v1714
    %v1717 = vadd.f32 %v1703, %v1716
    %vm1718 = vcmp.lt.f32.partialorder %v1520, %v1589
    %v1719 = vsel %vm1718, 1, 0
    %v1720 = vcvt.s32.f32 %v1719
    %v1721 = vadd.f32 %v1717, %v1720
    %vm1722 = vcmp.eq.f32.partialorder %v1520, %v1589
    %v1723 = vsel %vm1722, 1, 0
    %v1724 = vcvt.s32.f32 %v1723
    %vm1725 = vcmp.gt.f32.partialorder %v1192, 7.0
    %v1726 = vsel %vm1725, 1, 0
    %v1727 = vcvt.s32.f32 %v1726
    %v1729 = vlaneseq
    %v1730 = vshrl.u32 %v1729, 7
    %v1731 = vsub.s32 0, %v1730
    %v1732 = vrot.slane %v1727, %v1731
    %v1734 = vmul.f32 %v1724, %v1732
    %v1735 = vadd.f32 %v1721, %v1734
    %v1737 = vsel %vm1058, %v1735, 0
    %1739 = vmatprep.subr.mxu0 %v1194
    %1740 = vmatpush1.msra.mxu0 %v1193
    %1741 = vmatprep.subr.mxu0 %v1203
    %1742 = vmatpush1.msra.mxu0 %v1202
    %1743 = vmatprep.subr.mxu0 %v1212
    %1744 = vmatpush1.msra.mxu0 %v1211
    %1745 = vmatprep.subr.mxu0 %v1221
    %1746 = vmatpush1.msra.mxu0 %v1220
    %1747 = vmatprep.subr.mxu0 %v1230
    %1748 = vmatpush1.msra.mxu0 %v1229
    %1749 = vmatprep.subr.mxu0 0.0
    %1750 = vmatpush1.msra.mxu0 0.0
    %1751 = vmatprep.subr.mxu0 0.0
    %1752 = vmatpush1.msra.mxu0 0.0
    %1753 = vmatprep.subr.mxu0 0.0
    %1754 = vmatpush1.msra.mxu0 0.0
    %1755 = vmatprep.subr.mxu0 0.0
    %1756 = vmatpush1.msra.mxu0 0.0
    %1757 = vmatprep.subr.mxu0 0.0
    %1758 = vmatpush1.msra.mxu0 0.0
    %1759 = vmatprep.subr.mxu0 0.0
    %1760 = vmatpush1.msra.mxu0 0.0
    %1761 = vmatprep.subr.mxu0 0.0
    %1762 = vmatpush1.msra.mxu0 0.0
    %1763 = vmatprep.subr.mxu0 0.0
    %1764 = vmatpush1.msra.mxu0 0.0
    %1765 = vmatprep.subr.mxu0 0.0
    %1766 = vmatpush1.msra.mxu0 0.0
    %1767 = vmatprep.subr.mxu0 0.0
    %1768 = vmatpush1.msra.mxu0 0.0
    %1769 = vmatprep.subr.mxu0 0.0
    %1770 = vmatpush1.msra.mxu0 0.0
    %1771 = vmatprep.subr.mxu0 0.0
    %1772 = vmatpush1.msra.mxu0 0.0
    %1773 = vmatprep.subr.mxu0 0.0
    %1774 = vmatpush1.msra.mxu0 0.0
    %1775 = vmatprep.subr.mxu0 0.0
    %1776 = vmatpush1.msra.mxu0 0.0
    %1777 = vmatprep.subr.mxu0 0.0
    %1778 = vmatpush1.msra.mxu0 0.0
    %1779 = vmatprep.subr.mxu0 0.0
    %1780 = vmatpush1.msra.mxu0 0.0
    %1781 = vmatprep.subr.mxu0 0.0
    %1782 = vmatpush1.msra.mxu0 0.0
    %1783 = vmatprep.subr.mxu0 0.0
    %1784 = vmatpush1.msra.mxu0 0.0
    %1785 = vmatprep.subr.mxu0 0.0
    %1786 = vmatpush1.msra.mxu0 0.0
    %1787 = vmatprep.subr.mxu0 0.0
    %1788 = vmatpush1.msra.mxu0 0.0
    %1789 = vmatprep.subr.mxu0 0.0
    %1790 = vmatpush1.msra.mxu0 0.0
    %1791 = vmatprep.subr.mxu0 0.0
    %1792 = vmatpush1.msra.mxu0 0.0
    %1793 = vmatprep.subr.mxu0 0.0
    %1794 = vmatpush1.msra.mxu0 0.0
    %1795 = vmatprep.subr.mxu0 0.0
    %1796 = vmatpush1.msra.mxu0 0.0
    %1797 = vmatprep.subr.mxu0 0.0
    %1798 = vmatpush1.msra.mxu0 0.0
    %1799 = vmatprep.subr.mxu0 0.0
    %1800 = vmatpush1.msra.mxu0 0.0
    %1801 = vmatprep.subr.mxu0 0.0
    %1802 = vmatpush1.msra.mxu0 0.0
    %1803 = vmatprep.mubr.f32.mxu0 0.0
    %1804 = vmatmul.mubr.f32.gmra.mrb[0].mxu0 %v1737
    %v1805 = vpop.f32.mrb[0].mxu0
    %v1806 = vadd.f32 0.0, %v1805
    %v1807 = vpop.f32.mrb[0].mxu0
    %v1808 = vadd.f32 0.0, %v1807
    %1809 = vdwg.mxu0
    %1810 = vmatprep.subr.mxu0 %v1196
    %1811 = vmatpush1.msra.mxu0 %v1195
    %1812 = vmatprep.subr.mxu0 %v1205
    %1813 = vmatpush1.msra.mxu0 %v1204
    %1814 = vmatprep.subr.mxu0 %v1214
    %1815 = vmatpush1.msra.mxu0 %v1213
    %1816 = vmatprep.subr.mxu0 %v1223
    %1817 = vmatpush1.msra.mxu0 %v1222
    %1818 = vmatprep.subr.mxu0 %v1232
    %1819 = vmatpush1.msra.mxu0 %v1231
    %1820 = vmatprep.subr.mxu0 0.0
    %1821 = vmatpush1.msra.mxu0 0.0
    %1822 = vmatprep.subr.mxu0 0.0
    %1823 = vmatpush1.msra.mxu0 0.0
    %1824 = vmatprep.subr.mxu0 0.0
    %1825 = vmatpush1.msra.mxu0 0.0
    %1826 = vmatprep.subr.mxu0 0.0
    %1827 = vmatpush1.msra.mxu0 0.0
    %1828 = vmatprep.subr.mxu0 0.0
    %1829 = vmatpush1.msra.mxu0 0.0
    %1830 = vmatprep.subr.mxu0 0.0
    %1831 = vmatpush1.msra.mxu0 0.0
    %1832 = vmatprep.subr.mxu0 0.0
    %1833 = vmatpush1.msra.mxu0 0.0
    %1834 = vmatprep.subr.mxu0 0.0
    %1835 = vmatpush1.msra.mxu0 0.0
    %1836 = vmatprep.subr.mxu0 0.0
    %1837 = vmatpush1.msra.mxu0 0.0
    %1838 = vmatprep.subr.mxu0 0.0
    %1839 = vmatpush1.msra.mxu0 0.0
    %1840 = vmatprep.subr.mxu0 0.0
    %1841 = vmatpush1.msra.mxu0 0.0
    %1842 = vmatprep.subr.mxu0 0.0
    %1843 = vmatpush1.msra.mxu0 0.0
    %1844 = vmatprep.subr.mxu0 0.0
    %1845 = vmatpush1.msra.mxu0 0.0
    %1846 = vmatprep.subr.mxu0 0.0
    %1847 = vmatpush1.msra.mxu0 0.0
    %1848 = vmatprep.subr.mxu0 0.0
    %1849 = vmatpush1.msra.mxu0 0.0
    %1850 = vmatprep.subr.mxu0 0.0
    %1851 = vmatpush1.msra.mxu0 0.0
    %1852 = vmatprep.subr.mxu0 0.0
    %1853 = vmatpush1.msra.mxu0 0.0
    %1854 = vmatprep.subr.mxu0 0.0
    %1855 = vmatpush1.msra.mxu0 0.0
    %1856 = vmatprep.subr.mxu0 0.0
    %1857 = vmatpush1.msra.mxu0 0.0
    %1858 = vmatprep.subr.mxu0 0.0
    %1859 = vmatpush1.msra.mxu0 0.0
    %1860 = vmatprep.subr.mxu0 0.0
    %1861 = vmatpush1.msra.mxu0 0.0
    %1862 = vmatprep.subr.mxu0 0.0
    %1863 = vmatpush1.msra.mxu0 0.0
    %1864 = vmatprep.subr.mxu0 0.0
    %1865 = vmatpush1.msra.mxu0 0.0
    %1866 = vmatprep.subr.mxu0 0.0
    %1867 = vmatpush1.msra.mxu0 0.0
    %1868 = vmatprep.subr.mxu0 0.0
    %1869 = vmatpush1.msra.mxu0 0.0
    %1870 = vmatprep.subr.mxu0 0.0
    %1871 = vmatpush1.msra.mxu0 0.0
    %1872 = vmatprep.subr.mxu0 0.0
    %1873 = vmatpush1.msra.mxu0 0.0
    %1874 = vmatprep.mubr.f32.mxu0 0.0
    %1875 = vmatmul.mubr.f32.gmra.mrb[0].mxu0 %v1737
    %v1876 = vpop.f32.mrb[0].mxu0
    %v1877 = vadd.f32 0.0, %v1876
    %v1878 = vpop.f32.mrb[0].mxu0
    %v1879 = vadd.f32 0.0, %v1878
    %1880 = vdwg.mxu0
    %1881 = vmatprep.subr.mxu0 %v1198
    %1882 = vmatpush1.msra.mxu0 %v1197
    %1883 = vmatprep.subr.mxu0 %v1207
    %1884 = vmatpush1.msra.mxu0 %v1206
    %1885 = vmatprep.subr.mxu0 %v1216
    %1886 = vmatpush1.msra.mxu0 %v1215
    %1887 = vmatprep.subr.mxu0 %v1225
    %1888 = vmatpush1.msra.mxu0 %v1224
    %1889 = vmatprep.subr.mxu0 %v1234
    %1890 = vmatpush1.msra.mxu0 %v1233
    %1891 = vmatprep.subr.mxu0 0.0
    %1892 = vmatpush1.msra.mxu0 0.0
    %1893 = vmatprep.subr.mxu0 0.0
    %1894 = vmatpush1.msra.mxu0 0.0
    %1895 = vmatprep.subr.mxu0 0.0
    %1896 = vmatpush1.msra.mxu0 0.0
    %1897 = vmatprep.subr.mxu0 0.0
    %1898 = vmatpush1.msra.mxu0 0.0
    %1899 = vmatprep.subr.mxu0 0.0
    %1900 = vmatpush1.msra.mxu0 0.0
    %1901 = vmatprep.subr.mxu0 0.0
    %1902 = vmatpush1.msra.mxu0 0.0
    %1903 = vmatprep.subr.mxu0 0.0
    %1904 = vmatpush1.msra.mxu0 0.0
    %1905 = vmatprep.subr.mxu0 0.0
    %1906 = vmatpush1.msra.mxu0 0.0
    %1907 = vmatprep.subr.mxu0 0.0
    %1908 = vmatpush1.msra.mxu0 0.0
    %1909 = vmatprep.subr.mxu0 0.0
    %1910 = vmatpush1.msra.mxu0 0.0
    %1911 = vmatprep.subr.mxu0 0.0
    %1912 = vmatpush1.msra.mxu0 0.0
    %1913 = vmatprep.subr.mxu0 0.0
    %1914 = vmatpush1.msra.mxu0 0.0
    %1915 = vmatprep.subr.mxu0 0.0
    %1916 = vmatpush1.msra.mxu0 0.0
    %1917 = vmatprep.subr.mxu0 0.0
    %1918 = vmatpush1.msra.mxu0 0.0
    %1919 = vmatprep.subr.mxu0 0.0
    %1920 = vmatpush1.msra.mxu0 0.0
    %1921 = vmatprep.subr.mxu0 0.0
    %1922 = vmatpush1.msra.mxu0 0.0
    %1923 = vmatprep.subr.mxu0 0.0
    %1924 = vmatpush1.msra.mxu0 0.0
    %1925 = vmatprep.subr.mxu0 0.0
    %1926 = vmatpush1.msra.mxu0 0.0
    %1927 = vmatprep.subr.mxu0 0.0
    %1928 = vmatpush1.msra.mxu0 0.0
    %1929 = vmatprep.subr.mxu0 0.0
    %1930 = vmatpush1.msra.mxu0 0.0
    %1931 = vmatprep.subr.mxu0 0.0
    %1932 = vmatpush1.msra.mxu0 0.0
    %1933 = vmatprep.subr.mxu0 0.0
    %1934 = vmatpush1.msra.mxu0 0.0
    %1935 = vmatprep.subr.mxu0 0.0
    %1936 = vmatpush1.msra.mxu0 0.0
    %1937 = vmatprep.subr.mxu0 0.0
    %1938 = vmatpush1.msra.mxu0 0.0
    %1939 = vmatprep.subr.mxu0 0.0
    %1940 = vmatpush1.msra.mxu0 0.0
    %1941 = vmatprep.subr.mxu0 0.0
    %1942 = vmatpush1.msra.mxu0 0.0
    %1943 = vmatprep.subr.mxu0 0.0
    %1944 = vmatpush1.msra.mxu0 0.0
    %1945 = vmatprep.mubr.f32.mxu0 0.0
    %1946 = vmatmul.mubr.f32.gmra.mrb[0].mxu0 %v1737
    %v1947 = vpop.f32.mrb[0].mxu0
    %v1948 = vadd.f32 0.0, %v1947
    %v1949 = vpop.f32.mrb[0].mxu0
    %v1950 = vadd.f32 0.0, %v1949
    %1951 = vdwg.mxu0
    %1952 = vmatprep.subr.mxu0 %v1200
    %1953 = vmatpush1.msra.mxu0 %v1199
    %1954 = vmatprep.subr.mxu0 %v1209
    %1955 = vmatpush1.msra.mxu0 %v1208
    %1956 = vmatprep.subr.mxu0 %v1218
    %1957 = vmatpush1.msra.mxu0 %v1217
    %1958 = vmatprep.subr.mxu0 %v1227
    %1959 = vmatpush1.msra.mxu0 %v1226
    %1960 = vmatprep.subr.mxu0 %v1236
    %1961 = vmatpush1.msra.mxu0 %v1235
    %1962 = vmatprep.subr.mxu0 0.0
    %1963 = vmatpush1.msra.mxu0 0.0
    %1964 = vmatprep.subr.mxu0 0.0
    %1965 = vmatpush1.msra.mxu0 0.0
    %1966 = vmatprep.subr.mxu0 0.0
    %1967 = vmatpush1.msra.mxu0 0.0
    %1968 = vmatprep.subr.mxu0 0.0
    %1969 = vmatpush1.msra.mxu0 0.0
    %1970 = vmatprep.subr.mxu0 0.0
    %1971 = vmatpush1.msra.mxu0 0.0
    %1972 = vmatprep.subr.mxu0 0.0
    %1973 = vmatpush1.msra.mxu0 0.0
    %1974 = vmatprep.subr.mxu0 0.0
    %1975 = vmatpush1.msra.mxu0 0.0
    %1976 = vmatprep.subr.mxu0 0.0
    %1977 = vmatpush1.msra.mxu0 0.0
    %1978 = vmatprep.subr.mxu0 0.0
    %1979 = vmatpush1.msra.mxu0 0.0
    %1980 = vmatprep.subr.mxu0 0.0
    %1981 = vmatpush1.msra.mxu0 0.0
    %1982 = vmatprep.subr.mxu0 0.0
    %1983 = vmatpush1.msra.mxu0 0.0
    %1984 = vmatprep.subr.mxu0 0.0
    %1985 = vmatpush1.msra.mxu0 0.0
    %1986 = vmatprep.subr.mxu0 0.0
    %1987 = vmatpush1.msra.mxu0 0.0
    %1988 = vmatprep.subr.mxu0 0.0
    %1989 = vmatpush1.msra.mxu0 0.0
    %1990 = vmatprep.subr.mxu0 0.0
    %1991 = vmatpush1.msra.mxu0 0.0
    %1992 = vmatprep.subr.mxu0 0.0
    %1993 = vmatpush1.msra.mxu0 0.0
    %1994 = vmatprep.subr.mxu0 0.0
    %1995 = vmatpush1.msra.mxu0 0.0
    %1996 = vmatprep.subr.mxu0 0.0
    %1997 = vmatpush1.msra.mxu0 0.0
    %1998 = vmatprep.subr.mxu0 0.0
    %1999 = vmatpush1.msra.mxu0 0.0
    %2000 = vmatprep.subr.mxu0 0.0
    %2001 = vmatpush1.msra.mxu0 0.0
    %2002 = vmatprep.subr.mxu0 0.0
    %2003 = vmatpush1.msra.mxu0 0.0
    %2004 = vmatprep.subr.mxu0 0.0
    %2005 = vmatpush1.msra.mxu0 0.0
    %2006 = vmatprep.subr.mxu0 0.0
    %2007 = vmatpush1.msra.mxu0 0.0
    %2008 = vmatprep.subr.mxu0 0.0
    %2009 = vmatpush1.msra.mxu0 0.0
    %2010 = vmatprep.subr.mxu0 0.0
    %2011 = vmatpush1.msra.mxu0 0.0
    %2012 = vmatprep.subr.mxu0 0.0
    %2013 = vmatpush1.msra.mxu0 0.0
    %2014 = vmatprep.subr.mxu0 0.0
    %2015 = vmatpush1.msra.mxu0 0.0
    %2016 = vmatprep.mubr.f32.mxu0 0.0
    %2017 = vmatmul.mubr.f32.gmra.mrb[0].mxu0 %v1737
    %v2018 = vpop.f32.mrb[0].mxu0
    %v2019 = vadd.f32 0.0, %v2018
    %v2020 = vpop.f32.mrb[0].mxu0
    %v2021 = vadd.f32 0.0, %v2020
    %2022 = vdwg.mxu0
    %v2024 = vlaneseq
    %v2025 = vshrl.u32 %v2024, 7
    %v2026 = vsub.s32 0, %v2025
    %v2027 = vrot.slane %v1192, %v2026
    %vm2029 = vcmp.eq.f32.partialorder %v1806, %v2027
    %v2030 = vsel %vm2029, %v1305, 0.0
    %v2031 = vadd.f32 %v2030, 0.0
    %vm2032 = vcmp.eq.f32.partialorder %v1808, %v2027
    %v2033 = vsel %vm2032, %v1307, 0.0
    %v2034 = vadd.f32 %v2031, %v2033
    %vm2035 = vcmp.eq.f32.partialorder %v1877, %v2027
    %v2036 = vsel %vm2035, %v1376, 0.0
    %v2037 = vadd.f32 %v2034, %v2036
    %vm2038 = vcmp.eq.f32.partialorder %v1879, %v2027
    %v2039 = vsel %vm2038, %v1378, 0.0
    %v2040 = vadd.f32 %v2037, %v2039
    %vm2041 = vcmp.eq.f32.partialorder %v1948, %v2027
    %v2042 = vsel %vm2041, %v1447, 0.0
    %v2043 = vadd.f32 %v2040, %v2042
    %vm2044 = vcmp.eq.f32.partialorder %v1950, %v2027
    %v2045 = vsel %vm2044, %v1449, 0.0
    %v2046 = vadd.f32 %v2043, %v2045
    %vm2047 = vcmp.eq.f32.partialorder %v2019, %v2027
    %v2048 = vsel %vm2047, %v1518, 0.0
    %v2049 = vadd.f32 %v2046, %v2048
    %vm2050 = vcmp.eq.f32.partialorder %v2021, %v2027
    %v2051 = vsel %vm2050, %v1520, 0.0
    %v2052 = vadd.f32 %v2049, %v2051
    %vm2053 = vcmp.le.f32.partialorder %v2027, %v1189
    %v2054 = vsel %vm2053, 1, 0
    %v2055 = vcvt.s32.f32 %v2054
    %v2056 = vmul.f32 %v2052, %v2055
    %v2057 = vld [vmem:[%s24] sm:$0xff]
    %v2058 = vld [vmem:[%s24 + $0x8] sm:$0xff]
    %v2059 = vld [vmem:[%s24 + $0x10] sm:$0xff]
    %v2060 = vld [vmem:[%s24 + $0x18] sm:$0xff]
    %v2061 = vld [vmem:[%s24 + $0x20] sm:$0xff]
    %2062 = vmatprep.subr.mxu0 0.0
    %2063 = vmatpush1.msra.mxu0 %v2057
    %2064 = vmatprep.subr.mxu0 0.0
    %2065 = vmatpush1.msra.mxu0 %v2058
    %2066 = vmatprep.subr.mxu0 0.0
    %2067 = vmatpush1.msra.mxu0 %v2059
    %2068 = vmatprep.subr.mxu0 0.0
    %2069 = vmatpush1.msra.mxu0 %v2060
    %2070 = vmatprep.subr.mxu0 0.0
    %2071 = vmatpush1.msra.mxu0 %v2061
    %2072 = vmatprep.subr.mxu0 0.0
    %2073 = vmatpush1.msra.mxu0 0.0
    %2074 = vmatprep.subr.mxu0 0.0
    %2075 = vmatpush1.msra.mxu0 0.0
    %2076 = vmatprep.subr.mxu0 0.0
    %2077 = vmatpush1.msra.mxu0 0.0
    %2078 = vmatprep.subr.mxu0 0.0
    %2079 = vmatpush1.msra.mxu0 0.0
    %2080 = vmatprep.subr.mxu0 0.0
    %2081 = vmatpush1.msra.mxu0 0.0
    %2082 = vmatprep.subr.mxu0 0.0
    %2083 = vmatpush1.msra.mxu0 0.0
    %2084 = vmatprep.subr.mxu0 0.0
    %2085 = vmatpush1.msra.mxu0 0.0
    %2086 = vmatprep.subr.mxu0 0.0
    %2087 = vmatpush1.msra.mxu0 0.0
    %2088 = vmatprep.subr.mxu0 0.0
    %2089 = vmatpush1.msra.mxu0 0.0
    %2090 = vmatprep.subr.mxu0 0.0
    %2091 = vmatpush1.msra.mxu0 0.0
    %2092 = vmatprep.subr.mxu0 0.0
    %2093 = vmatpush1.msra.mxu0 0.0
    %2094 = vmatprep.subr.mxu0 0.0
    %2095 = vmatpush1.msra.mxu0 0.0
    %2096 = vmatprep.subr.mxu0 0.0
    %2097 = vmatpush1.msra.mxu0 0.0
    %2098 = vmatprep.subr.mxu0 0.0
    %2099 = vmatpush1.msra.mxu0 0.0
    %2100 = vmatprep.subr.mxu0 0.0
    %2101 = vmatpush1.msra.mxu0 0.0
    %2102 = vmatprep.subr.mxu0 0.0
    %2103 = vmatpush1.msra.mxu0 0.0
    %2104 = vmatprep.subr.mxu0 0.0
    %2105 = vmatpush1.msra.mxu0 0.0
    %2106 = vmatprep.subr.mxu0 0.0
    %2107 = vmatpush1.msra.mxu0 0.0
    %2108 = vmatprep.subr.mxu0 0.0
    %2109 = vmatpush1.msra.mxu0 0.0
    %2110 = vmatprep.subr.mxu0 0.0
    %2111 = vmatpush1.msra.mxu0 0.0
    %2112 = vmatprep.subr.mxu0 0.0
    %2113 = vmatpush1.msra.mxu0 0.0
    %2114 = vmatprep.subr.mxu0 0.0
    %2115 = vmatpush1.msra.mxu0 0.0
    %2116 = vmatprep.subr.mxu0 0.0
    %2117 = vmatpush1.msra.mxu0 0.0
    %2118 = vmatprep.subr.mxu0 0.0
    %2119 = vmatpush1.msra.mxu0 0.0
    %2120 = vmatprep.subr.mxu0 0.0
    %2121 = vmatpush1.msra.mxu0 0.0
    %2122 = vmatprep.subr.mxu0 0.0
    %2123 = vmatpush1.msra.mxu0 0.0
    %2124 = vmatprep.subr.mxu0 0.0
    %2125 = vmatpush1.msra.mxu0 0.0
    %2126 = vmatprep.mubr.f32.mxu0 0.0
    %2127 = vmatmul.mubr.f32.gmra.mrb[0].mxu0 %v1060
    %v2128 = vpop.f32.mrb[0].mxu0
    %v2129 = vadd.f32 0.0, %v2128
    %v2130 = vpop.f32.mrb[0].mxu0
    %2131 = vdwg.mxu0
    %v2132 = vmul.f32 %v2129, 0.125
    %vm2133 = vcmp.le.f32.partialorder %v1735, %v1189
    %v2134 = vsel %vm2133, 1, 0
    %v2135 = vcvt.s32.f32 %v2134
    %v2136 = vmul.f32 %v682, %v2135
    %v2138 = vsel %vm1058, %v2136, 0
    %2140 = vmatprep.subr.mxu0 0.0
    %2141 = vmatpush1.msra.mxu0 %v2057
    %2142 = vmatprep.subr.mxu0 0.0
    %2143 = vmatpush1.msra.mxu0 %v2058
    %2144 = vmatprep.subr.mxu0 0.0
    %2145 = vmatpush1.msra.mxu0 %v2059
    %2146 = vmatprep.subr.mxu0 0.0
    %2147 = vmatpush1.msra.mxu0 %v2060
    %2148 = vmatprep.subr.mxu0 0.0
    %2149 = vmatpush1.msra.mxu0 %v2061
    %2150 = vmatprep.subr.mxu0 0.0
    %2151 = vmatpush1.msra.mxu0 0.0
    %2152 = vmatprep.subr.mxu0 0.0
    %2153 = vmatpush1.msra.mxu0 0.0
    %2154 = vmatprep.subr.mxu0 0.0
    %2155 = vmatpush1.msra.mxu0 0.0
    %2156 = vmatprep.subr.mxu0 0.0
    %2157 = vmatpush1.msra.mxu0 0.0
    %2158 = vmatprep.subr.mxu0 0.0
    %2159 = vmatpush1.msra.mxu0 0.0
    %2160 = vmatprep.subr.mxu0 0.0
    %2161 = vmatpush1.msra.mxu0 0.0
    %2162 = vmatprep.subr.mxu0 0.0
    %2163 = vmatpush1.msra.mxu0 0.0
    %2164 = vmatprep.subr.mxu0 0.0
    %2165 = vmatpush1.msra.mxu0 0.0
    %2166 = vmatprep.subr.mxu0 0.0
    %2167 = vmatpush1.msra.mxu0 0.0
    %2168 = vmatprep.subr.mxu0 0.0
    %2169 = vmatpush1.msra.mxu0 0.0
    %2170 = vmatprep.subr.mxu0 0.0
    %2171 = vmatpush1.msra.mxu0 0.0
    %2172 = vmatprep.subr.mxu0 0.0
    %2173 = vmatpush1.msra.mxu0 0.0
    %2174 = vmatprep.subr.mxu0 0.0
    %2175 = vmatpush1.msra.mxu0 0.0
    %2176 = vmatprep.subr.mxu0 0.0
    %2177 = vmatpush1.msra.mxu0 0.0
    %2178 = vmatprep.subr.mxu0 0.0
    %2179 = vmatpush1.msra.mxu0 0.0
    %2180 = vmatprep.subr.mxu0 0.0
    %2181 = vmatpush1.msra.mxu0 0.0
    %2182 = vmatprep.subr.mxu0 0.0
    %2183 = vmatpush1.msra.mxu0 0.0
    %2184 = vmatprep.subr.mxu0 0.0
    %2185 = vmatpush1.msra.mxu0 0.0
    %2186 = vmatprep.subr.mxu0 0.0
    %2187 = vmatpush1.msra.mxu0 0.0
    %2188 = vmatprep.subr.mxu0 0.0
    %2189 = vmatpush1.msra.mxu0 0.0
    %2190 = vmatprep.subr.mxu0 0.0
    %2191 = vmatpush1.msra.mxu0 0.0
    %2192 = vmatprep.subr.mxu0 0.0
    %2193 = vmatpush1.msra.mxu0 0.0
    %2194 = vmatprep.subr.mxu0 0.0
    %2195 = vmatpush1.msra.mxu0 0.0
    %2196 = vmatprep.subr.mxu0 0.0
    %2197 = vmatpush1.msra.mxu0 0.0
    %2198 = vmatprep.subr.mxu0 0.0
    %2199 = vmatpush1.msra.mxu0 0.0
    %2200 = vmatprep.subr.mxu0 0.0
    %2201 = vmatpush1.msra.mxu0 0.0
    %2202 = vmatprep.subr.mxu0 0.0
    %2203 = vmatpush1.msra.mxu0 0.0
    %2204 = vmatprep.mubr.f32.mxu0 0.0
    %2205 = vmatmul.mubr.f32.gmra.mrb[0].mxu0 %v2138
    %v2206 = vpop.f32.mrb[0].mxu0
    %v2207 = vadd.f32 0.0, %v2206
    %v2208 = vpop.f32.mrb[0].mxu0
    %2209 = vdwg.mxu0
    %v2210 = vmul.f32 %v2207, %v1191
    %vm2211 = vcmask 37888
    %2212 = vst.msk [vmem:[%s26] sm:$0x3f] %vm2211, %v2210
    %2214 = vrot.lane.b32.xlu0 %v2132, 5
    %v2215 = vpop.permute.xlu0 %2214
    %vm2217 = vcmask 78888
    %2218 = vst.msk [vmem:[%s26] sm:$0x3f] %vm2217, %v2215
    %2219 = vrot.lane.b32.xlu0 %v682, 10
    %v2220 = vpop.permute.xlu0 %2219
    %vm2222 = vcmask 406608
    %2223 = vst.msk [vmem:[%s26] sm:$0x3f] %vm2222, %v2220
    %2225 = vrot.lane.b32.xlu0 %v1159, 50
    %v2226 = vpop.permute.xlu0 %2225
    %vm2228 = vcmask 439696
    %2229 = vst.msk [vmem:[%s26] sm:$0x3f] %vm2228, %v2226
    %2230 = vrot.lane.b32.xlu0 %v598, 22
    %v2231 = vpop.permute.xlu0 %2230
    %vm2233 = vcmask 701872
    %2234 = vst.msk [vmem:[%s26] sm:$0x3f] %vm2233, %v2231
    %2235 = vrot.lane.b32.xlu0 %v966, 54
    %v2236 = vpop.permute.xlu0 %2235
    %vm2238 = vcmask 964272
    %2239 = vst.msk [vmem:[%s26] sm:$0x3f] %vm2238, %v2236
    %2241 = vrot.lane.b32.xlu0 %v2056, 118
    %v2242 = vpop.permute.xlu0 %2241
    %vm2244 = vcmask 1046448
    %2245 = vst.msk [vmem:[%s26] sm:$0x3f] %vm2244, %v2242
    %vm2246 = vcmask 242688
    %2247 = vst.msk [vmem:[%s26 + $0x8] sm:$0x3f] %vm2246, %v2242
    %2249 = vrot.lane.b32.xlu0 %v2055, 30
    %v2250 = vpop.permute.xlu0 %2249
    %vm2252 = vcmask 308464
    %2253 = vst.msk [vmem:[%s26 + $0x8] sm:$0x3f] %vm2252, %v2250
    %vm2254 = vcmask 1045808
    %2255 = vst.msk [vmem:[%s26 + $0x8] sm:$0x3f] %vm2254, 0.0
    // Predicated region
    $region154: #{forward.1} parent=1 // pred_check
      _
    $region155: #{forward.1} parent=1 // pred_check_branch
      %2257 = sbr.rel (0) target = $region157
    $region156: #{forward.1} parent=1 // pred_region
      _
    $region157: #{forward.1} parent=1 // pred_fallthru
      _
    // Predicated region
    $region158: #{forward.1} parent=1 // pred_check
      _
    $region159: #{forward.1} parent=1 // pred_check_branch
      %2259 = sbr.rel (0) target = $region161
    $region160: #{forward.1} parent=1 // pred_region
      _
    $region161: #{forward.1} parent=1 // pred_fallthru
      _
    %2260 = vsyncpa [#allocation3], 1
    %2261 = vsyncpa [#allocation5], 1
    %2262 = vsyncpa [#allocation8], 1
    %2263 = vsyncpa [#allocation11], 1
    %2264 = vsyncpa [#allocation14], 1
    %2265 = vsyncpa [#allocation17], 1
    %2266 = vsyncpa [#allocation20], 1

</llo_original>
